<compile_context>
chip_gen: v5e
topology: v5e:2x2
jax: 0.10.0
libtpu: 0.0.40
codegen_flags: <defaults>
</compile_context>

<pallas_src>
import functools

import jax
import jax.numpy as jnp
from jax import lax
from jax.experimental import pallas as pl
from jax.experimental.pallas import tpu as pltpu

KSIZE = 5
PAD = 2

# 1-D binomial taps g = [1, 4, 6, 4, 1] / 16; the 5x5 kernel is outer(g, g)
# (== binomial / 256).  Baked in as Python constants.
_G = (1.0 / 16.0, 4.0 / 16.0, 6.0 / 16.0, 4.0 / 16.0, 1.0 / 16.0)
# Separable factor of the 4*kernel used by the zero-insertion upsample conv.
_G_UP = tuple(2.0 * g for g in _G)


def make_gauss_kernel():
    # Deterministic "parameter" of the module (5x5 binomial / 256).
    k = jnp.array(
        [[1.0, 4.0, 6.0, 4.0, 1.0],
         [4.0, 16.0, 24.0, 16.0, 4.0],
         [6.0, 24.0, 36.0, 24.0, 6.0],
         [4.0, 16.0, 24.0, 16.0, 4.0],
         [1.0, 4.0, 6.0, 4.0, 1.0]],
        dtype=jnp.float32,
    )
    return k / 256.0


# ----------------------------- Pallas kernel --------------------------------


def _lap_pyramid_kernel(pred_ref, targ_ref, psum_ref, *, h, w, max_levels,
                        level_weights):
    """All pyramid levels, fused, for one block of image planes.

    pred_ref / targ_ref : (nb, h, w) input planes (any float dtype).
    psum_ref            : (1, 8, 128) lane-dense block partial loss
                          sum_l (1/(h_l*w_l)) * sum_px M_l * |lap_p - lap_t|.

    Levels >= 1 keep the coarse planes in an "a trous" (zero-stuffed)
    representation on the fine grid: level-l samples live at positions that
    are multiples of 2^l, everything else is 0.  Blur / upsample then become
    5-tap convolutions dilated by 2^l, and reflect padding on the *coarse*
    grid is emulated with contiguous-slice concatenation chosen so that every
    sample position in the halo carries the correct reflected value
    (non-sample halo values are garbage but are masked out before they can
    contribute to anything).  This avoids strided loads / lane deinterleaves
    entirely while keeping all coarse planes out of HBM.
    """
    xp = pred_ref[...].astype(jnp.float32)
    xt = targ_ref[...].astype(jnp.float32)

    # Index grids, built once and reused for every level's sample mask.
    row_ids = lax.broadcasted_iota(jnp.int32, (1, h, w), 1)
    col_ids = lax.broadcasted_iota(jnp.int32, (1, h, w), 2)

    def coarse_pad(x, step, axis):
        # Halo of width 2*step on each side along `axis`, built from
        # contiguous slices so that halo positions that are multiples of
        # `step` (the only ones the dilated conv reads for sample outputs)
        # hold the value required by reflect padding on the level's coarse
        # grid.  For step == 1 this is exactly reflect-pad-2.
        n = x.shape[axis]

        def sl(a, b):
            return x[:, a:b, :] if axis == 1 else x[:, :, a:b]

        return jnp.concatenate(
            [sl(2 * step, 3 * step), sl(step, 2 * step), x,
             sl(n - 2 * step, n - step), sl(n - 3 * step, n - 2 * step)],
            axis=axis)

    def dilated_blur(x, step, taps):
        # Separable 5-tap conv with taps dilated by `step`, coarse reflect pad.
        xr = coarse_pad(x, step, axis=1)
        acc = taps[0] * xr[:, 0:h, :]
        for t in range(1, KSIZE):
            acc = acc + taps[t] * xr[:, t * step:t * step + h, :]
        xc = coarse_pad(acc, step, axis=2)
        acc = taps[0] * xc[:, :, 0:w]
        for t in range(1, KSIZE):
            acc = acc + taps[t] * xc[:, :, t * step:t * step + w]
        return acc

    total = None
    mp, mt = xp, xt          # level-0 representation == the raw planes
    cur_mask = None          # level-0 sample mask is implicitly all-ones
    for lvl in range(max_levels):
        step = 1 << lvl
        # conv_gauss(current_level), valid at positions that are multiples of
        # `step` (garbage elsewhere, masked later).
        bp = dilated_blur(mp, step, _G)
        bt = dilated_blur(mt, step, _G)

        # Next-level zero-stuffed planes == zero_upsample(downsample(blur)).
        nstep = 2 * step
        nmask = (((row_ids & (nstep - 1)) | (col_ids & (nstep - 1))) == 0
                 ).astype(jnp.float32)
        mp_next = bp * nmask
        mt_next = bt * nmask

        # conv_gauss(zero_upsample(down), 4*kernel), valid at multiples of step.
        up_p = dilated_blur(mp_next, step, _G_UP)
        up_t = dilated_blur(mt_next, step, _G_UP)

        lap_diff = (mp - up_p) - (mt - up_t)
        a = jnp.abs(lap_diff)
        if cur_mask is None:
            contrib = level_weights[lvl] * a
        else:
            contrib = (level_weights[lvl] * cur_mask) * a
        total = contrib if total is None else total + contrib

        mp, mt, cur_mask = mp_next, mt_next, nmask

    # Single full reduce per block; broadcast the scalar into a lane-dense
    # (1, 8, 128) tile so the store is an unmasked vst.
    psum_ref[...] = jnp.full((1, 8, 128), jnp.sum(total), dtype=jnp.float32)


# ------------------------------ wrappers -------------------------------------


def _vmem_budgets():
    """Generation-aware scoped-VMEM limit and per-block working-set budget."""
    try:
        cap = pltpu.get_tpu_info().vmem_capacity_bytes
    except Exception:
        cap = 64 * 1024 * 1024                    # conservative (v7x-class)
    if cap >= 100 * 1024 * 1024:                  # v5e / v6e: 128 MiB physical
        vmem_limit = 64 * 1024 * 1024
    else:                                         # v7x-class: 64 MiB physical
        vmem_limit = 44 * 1024 * 1024
    block_budget = int(vmem_limit * 0.75)
    return block_budget, vmem_limit


def _pick_block_planes(n_planes, h, w, in_itemsize, max_levels, budget_bytes):
    """Largest divisor of n_planes whose fused working set fits the budget,
    keeping >= 2 grid steps when possible (pipelining + megacore sharding)."""
    halo = 4 * (1 << (max_levels - 1))
    hp, wp = h + halo, w + halo
    # ~24 live f32 fine-res temporaries inside the fused pyramid plus the
    # double-buffered pred/target input blocks.
    per_plane = (24 * 4 + 4 * in_itemsize) * hp * wp
    best = 1
    for d in range(1, n_planes + 1):
        if n_planes % d:
            continue
        if d * per_plane > budget_bytes:
            continue
        if d == n_planes and n_planes > 1:
            continue          # keep at least two grid steps when possible
        best = d
    return best


def lap_loss(pred, target, max_levels=3):
    """Laplacian-pyramid L1 loss (LapLoss.forward) on NCHW inputs."""
    b, c, h, w = pred.shape
    n = b * c
    lvls = max_levels
    # Same implicit requirement as the PyTorch reference (upsample(down) must
    # match `current`'s shape at every level).
    assert h % (1 << lvls) == 0 and w % (1 << lvls) == 0, \
        "H, W must be divisible by 2**max_levels"
    assert h >= 3 * (1 << (lvls - 1)) and w >= 3 * (1 << (lvls - 1)), \
        "deepest pyramid level must be at least 3 pixels wide"

    pred_planes = pred.reshape(n, h, w)
    targ_planes = target.reshape(n, h, w)
    # bf16/f16 inputs are read as-is (half the HBM traffic); math is f32.
    if pred_planes.dtype not in (jnp.bfloat16, jnp.float16, jnp.float32):
        pred_planes = pred_planes.astype(jnp.float32)
        targ_planes = targ_planes.astype(jnp.float32)

    block_budget, vmem_limit = _vmem_budgets()
    nb = _pick_block_planes(n, h, w, pred_planes.dtype.itemsize, lvls,
                            block_budget)
    num_blocks = n // nb

    # Per-level mean weights 1/(h_l * w_l) baked in as Python constants; the
    # remaining 1/n factor is applied once outside.
    level_weights = tuple(1.0 / float((h >> l) * (w >> l)) for l in range(lvls))

    kernel = functools.partial(_lap_pyramid_kernel, h=h, w=w,
                               max_levels=lvls, level_weights=level_weights)

    psums = pl.pallas_call(
        kernel,
        grid=(num_blocks,),
        in_specs=[
            pl.BlockSpec((nb, h, w), lambda i: (i, 0, 0)),
            pl.BlockSpec((nb, h, w), lambda i: (i, 0, 0)),
        ],
        out_specs=pl.BlockSpec((1, 8, 128), lambda i: (i, 0, 0)),
        out_shape=jax.ShapeDtypeStruct((num_blocks, 8, 128), jnp.float32),
        compiler_params=pltpu.CompilerParams(
            dimension_semantics=("parallel",),
            vmem_limit_bytes=vmem_limit,
        ),
    )(pred_planes, targ_planes)

    return jnp.sum(psums[:, 0, 0]) / jnp.float32(n)


# --------------------------- pure-JAX reference ------------------------------


def _conv_gauss_ref(x, kern):
    xpad = jnp.pad(x, ((0, 0), (PAD, PAD), (PAD, PAD)), mode="reflect")
    n, hp, wp = xpad.shape
    h, w = hp - 2 * PAD, wp - 2 * PAD
    acc = jnp.zeros((n, h, w), jnp.float32)
    for di in range(KSIZE):
        for dj in range(KSIZE):
            acc = acc + kern[di, dj] * xpad[:, di:di + h, dj:dj + w]
    return acc


def _zero_upsample(x):
    n, h, w = x.shape
    up = jnp.zeros((n, 2 * h, 2 * w), x.dtype)
    return up.at[:, ::2, ::2].set(x)


def lap_loss_ref(pred, target, max_levels=3):
    b, c, h, w = pred.shape
    kern = make_gauss_kernel()
    cur_p = pred.reshape(b * c, h, w).astype(jnp.float32)
    cur_t = target.reshape(b * c, h, w).astype(jnp.float32)
    loss = jnp.float32(0.0)
    for _ in range(max_levels):
        filt_p = _conv_gauss_ref(cur_p, kern)
        filt_t = _conv_gauss_ref(cur_t, kern)
        down_p = filt_p[:, ::2, ::2]
        down_t = filt_t[:, ::2, ::2]
        up_p = _conv_gauss_ref(_zero_upsample(down_p), 4.0 * kern)
        up_t = _conv_gauss_ref(_zero_upsample(down_t), 4.0 * kern)
        diff_p = cur_p - up_p
        diff_t = cur_t - up_t
        loss = loss + jnp.mean(jnp.abs(diff_p - diff_t))
        cur_p, cur_t = down_p, down_t
    return loss


if __name__ == "__main__":
    key = jax.random.PRNGKey(0)
    k1, k2 = jax.random.split(key)
    # Loss(...) builds LapLoss(channels=1): batch of 2 single-channel frames.
    pred = jax.random.uniform(k1, (2, 1, 32, 32), dtype=jnp.float32)
    target = jax.random.uniform(k2, (2, 1, 32, 32), dtype=jnp.float32)

    out = jax.jit(lap_loss)(pred, target)
    out = jax.block_until_ready(out)

    ref = lap_loss_ref(pred, target)
    assert jnp.allclose(out, ref, atol=1e-5, rtol=1e-4), (out, ref)

    print("KERNEL_OK")
</pallas_src>

<mosaic_0001>
module attributes {stable_mosaic.version = 11 : i64} {
  func.func @_lap_pyramid_kernel(%arg0: i32, %arg1: memref<1x32x32xf32, #tpu.memory_space<vmem>>, %arg2: memref<1x32x32xf32, #tpu.memory_space<vmem>>, %arg3: memref<1x8x128xf32, #tpu.memory_space<vmem>>) attributes {dimension_semantics = [#tpu.dimension_semantics<parallel>], iteration_bounds = array<i64: 2>, scalar_prefetch = 0 : i64, scratch_operands = 0 : i64, tpu.core_type = #tpu.core_type<tc>, window_params = [{transform_indices = @transform_0, window_bounds = array<i64: 1, 32, 32>}, {transform_indices = @transform_1, window_bounds = array<i64: 1, 32, 32>}, {transform_indices = @transform_2, window_bounds = array<i64: 1, 8, 128>}]} {
    %c0 = arith.constant 0 : index
    %c0_0 = arith.constant 0 : index
    %c0_1 = arith.constant 0 : index
    %0 = vector.load %arg1[%c0, %c0_0, %c0_1] : memref<1x32x32xf32, #tpu.memory_space<vmem>>, vector<1x32x32xf32>
    %c0_2 = arith.constant 0 : index
    %c0_3 = arith.constant 0 : index
    %c0_4 = arith.constant 0 : index
    %1 = vector.load %arg2[%c0_2, %c0_3, %c0_4] : memref<1x32x32xf32, #tpu.memory_space<vmem>>, vector<1x32x32xf32>
    %2 = tpu.iota {dimensions = array<i32: 1>} : vector<1x32x32xi32>
    %3 = tpu.iota {dimensions = array<i32: 2>} : vector<1x32x32xi32>
    %4 = vector.extract_strided_slice %0 {offsets = [0, 2, 0], sizes = [1, 1, 32], strides = [1, 1, 1]} : vector<1x32x32xf32> to vector<1x1x32xf32>
    %5 = vector.extract_strided_slice %0 {offsets = [0, 1, 0], sizes = [1, 1, 32], strides = [1, 1, 1]} : vector<1x32x32xf32> to vector<1x1x32xf32>
    %6 = vector.extract_strided_slice %0 {offsets = [0, 30, 0], sizes = [1, 1, 32], strides = [1, 1, 1]} : vector<1x32x32xf32> to vector<1x1x32xf32>
    %7 = vector.extract_strided_slice %0 {offsets = [0, 29, 0], sizes = [1, 1, 32], strides = [1, 1, 1]} : vector<1x32x32xf32> to vector<1x1x32xf32>
    %8 = tpu.concatenate %4, %5, %0, %6, %7 in 1 : vector<1x1x32xf32>, vector<1x1x32xf32>, vector<1x32x32xf32>, vector<1x1x32xf32>, vector<1x1x32xf32> -> vector<1x36x32xf32>
    %9 = vector.extract_strided_slice %8 {offsets = [0, 0, 0], sizes = [1, 32, 32], strides = [1, 1, 1]} : vector<1x36x32xf32> to vector<1x32x32xf32>
    %cst = arith.constant 6.250000e-02 : f32
    %10 = vector.broadcast %cst : f32 to vector<1x32x32xf32>
    %11 = arith.mulf %10, %9 : vector<1x32x32xf32>
    %12 = vector.extract_strided_slice %8 {offsets = [0, 1, 0], sizes = [1, 32, 32], strides = [1, 1, 1]} : vector<1x36x32xf32> to vector<1x32x32xf32>
    %cst_5 = arith.constant 2.500000e-01 : f32
    %13 = vector.broadcast %cst_5 : f32 to vector<1x32x32xf32>
    %14 = arith.mulf %13, %12 : vector<1x32x32xf32>
    %15 = arith.addf %11, %14 : vector<1x32x32xf32>
    %16 = vector.extract_strided_slice %8 {offsets = [0, 2, 0], sizes = [1, 32, 32], strides = [1, 1, 1]} : vector<1x36x32xf32> to vector<1x32x32xf32>
    %cst_6 = arith.constant 3.750000e-01 : f32
    %17 = vector.broadcast %cst_6 : f32 to vector<1x32x32xf32>
    %18 = arith.mulf %17, %16 : vector<1x32x32xf32>
    %19 = arith.addf %15, %18 : vector<1x32x32xf32>
    %20 = vector.extract_strided_slice %8 {offsets = [0, 3, 0], sizes = [1, 32, 32], strides = [1, 1, 1]} : vector<1x36x32xf32> to vector<1x32x32xf32>
    %cst_7 = arith.constant 2.500000e-01 : f32
    %21 = vector.broadcast %cst_7 : f32 to vector<1x32x32xf32>
    %22 = arith.mulf %21, %20 : vector<1x32x32xf32>
    %23 = arith.addf %19, %22 : vector<1x32x32xf32>
    %24 = vector.extract_strided_slice %8 {offsets = [0, 4, 0], sizes = [1, 32, 32], strides = [1, 1, 1]} : vector<1x36x32xf32> to vector<1x32x32xf32>
    %cst_8 = arith.constant 6.250000e-02 : f32
    %25 = vector.broadcast %cst_8 : f32 to vector<1x32x32xf32>
    %26 = arith.mulf %25, %24 : vector<1x32x32xf32>
    %27 = arith.addf %23, %26 : vector<1x32x32xf32>
    %28 = vector.extract_strided_slice %27 {offsets = [0, 0, 2], sizes = [1, 32, 1], strides = [1, 1, 1]} : vector<1x32x32xf32> to vector<1x32x1xf32>
    %29 = vector.extract_strided_slice %27 {offsets = [0, 0, 1], sizes = [1, 32, 1], strides = [1, 1, 1]} : vector<1x32x32xf32> to vector<1x32x1xf32>
    %30 = vector.extract_strided_slice %27 {offsets = [0, 0, 30], sizes = [1, 32, 1], strides = [1, 1, 1]} : vector<1x32x32xf32> to vector<1x32x1xf32>
    %31 = vector.extract_strided_slice %27 {offsets = [0, 0, 29], sizes = [1, 32, 1], strides = [1, 1, 1]} : vector<1x32x32xf32> to vector<1x32x1xf32>
    %32 = tpu.concatenate %28, %29, %27, %30, %31 in 2 : vector<1x32x1xf32>, vector<1x32x1xf32>, vector<1x32x32xf32>, vector<1x32x1xf32>, vector<1x32x1xf32> -> vector<1x32x36xf32>
    %33 = vector.extract_strided_slice %32 {offsets = [0, 0, 0], sizes = [1, 32, 32], strides = [1, 1, 1]} : vector<1x32x36xf32> to vector<1x32x32xf32>
    %cst_9 = arith.constant 6.250000e-02 : f32
    %34 = vector.broadcast %cst_9 : f32 to vector<1x32x32xf32>
    %35 = arith.mulf %34, %33 : vector<1x32x32xf32>
    %36 = vector.extract_strided_slice %32 {offsets = [0, 0, 1], sizes = [1, 32, 32], strides = [1, 1, 1]} : vector<1x32x36xf32> to vector<1x32x32xf32>
    %cst_10 = arith.constant 2.500000e-01 : f32
    %37 = vector.broadcast %cst_10 : f32 to vector<1x32x32xf32>
    %38 = arith.mulf %37, %36 : vector<1x32x32xf32>
    %39 = arith.addf %35, %38 : vector<1x32x32xf32>
    %40 = vector.extract_strided_slice %32 {offsets = [0, 0, 2], sizes = [1, 32, 32], strides = [1, 1, 1]} : vector<1x32x36xf32> to vector<1x32x32xf32>
    %cst_11 = arith.constant 3.750000e-01 : f32
    %41 = vector.broadcast %cst_11 : f32 to vector<1x32x32xf32>
    %42 = arith.mulf %41, %40 : vector<1x32x32xf32>
    %43 = arith.addf %39, %42 : vector<1x32x32xf32>
    %44 = vector.extract_strided_slice %32 {offsets = [0, 0, 3], sizes = [1, 32, 32], strides = [1, 1, 1]} : vector<1x32x36xf32> to vector<1x32x32xf32>
    %cst_12 = arith.constant 2.500000e-01 : f32
    %45 = vector.broadcast %cst_12 : f32 to vector<1x32x32xf32>
    %46 = arith.mulf %45, %44 : vector<1x32x32xf32>
    %47 = arith.addf %43, %46 : vector<1x32x32xf32>
    %48 = vector.extract_strided_slice %32 {offsets = [0, 0, 4], sizes = [1, 32, 32], strides = [1, 1, 1]} : vector<1x32x36xf32> to vector<1x32x32xf32>
    %cst_13 = arith.constant 6.250000e-02 : f32
    %49 = vector.broadcast %cst_13 : f32 to vector<1x32x32xf32>
    %50 = arith.mulf %49, %48 : vector<1x32x32xf32>
    %51 = arith.addf %47, %50 : vector<1x32x32xf32>
    %52 = vector.extract_strided_slice %1 {offsets = [0, 2, 0], sizes = [1, 1, 32], strides = [1, 1, 1]} : vector<1x32x32xf32> to vector<1x1x32xf32>
    %53 = vector.extract_strided_slice %1 {offsets = [0, 1, 0], sizes = [1, 1, 32], strides = [1, 1, 1]} : vector<1x32x32xf32> to vector<1x1x32xf32>
    %54 = vector.extract_strided_slice %1 {offsets = [0, 30, 0], sizes = [1, 1, 32], strides = [1, 1, 1]} : vector<1x32x32xf32> to vector<1x1x32xf32>
    %55 = vector.extract_strided_slice %1 {offsets = [0, 29, 0], sizes = [1, 1, 32], strides = [1, 1, 1]} : vector<1x32x32xf32> to vector<1x1x32xf32>
    %56 = tpu.concatenate %52, %53, %1, %54, %55 in 1 : vector<1x1x32xf32>, vector<1x1x32xf32>, vector<1x32x32xf32>, vector<1x1x32xf32>, vector<1x1x32xf32> -> vector<1x36x32xf32>
    %57 = vector.extract_strided_slice %56 {offsets = [0, 0, 0], sizes = [1, 32, 32], strides = [1, 1, 1]} : vector<1x36x32xf32> to vector<1x32x32xf32>
    %cst_14 = arith.constant 6.250000e-02 : f32
    %58 = vector.broadcast %cst_14 : f32 to vector<1x32x32xf32>
    %59 = arith.mulf %58, %57 : vector<1x32x32xf32>
    %60 = vector.extract_strided_slice %56 {offsets = [0, 1, 0], sizes = [1, 32, 32], strides = [1, 1, 1]} : vector<1x36x32xf32> to vector<1x32x32xf32>
    %cst_15 = arith.constant 2.500000e-01 : f32
    %61 = vector.broadcast %cst_15 : f32 to vector<1x32x32xf32>
    %62 = arith.mulf %61, %60 : vector<1x32x32xf32>
    %63 = arith.addf %59, %62 : vector<1x32x32xf32>
    %64 = vector.extract_strided_slice %56 {offsets = [0, 2, 0], sizes = [1, 32, 32], strides = [1, 1, 1]} : vector<1x36x32xf32> to vector<1x32x32xf32>
    %cst_16 = arith.constant 3.750000e-01 : f32
    %65 = vector.broadcast %cst_16 : f32 to vector<1x32x32xf32>
    %66 = arith.mulf %65, %64 : vector<1x32x32xf32>
    %67 = arith.addf %63, %66 : vector<1x32x32xf32>
    %68 = vector.extract_strided_slice %56 {offsets = [0, 3, 0], sizes = [1, 32, 32], strides = [1, 1, 1]} : vector<1x36x32xf32> to vector<1x32x32xf32>
    %cst_17 = arith.constant 2.500000e-01 : f32
    %69 = vector.broadcast %cst_17 : f32 to vector<1x32x32xf32>
    %70 = arith.mulf %69, %68 : vector<1x32x32xf32>
    %71 = arith.addf %67, %70 : vector<1x32x32xf32>
    %72 = vector.extract_strided_slice %56 {offsets = [0, 4, 0], sizes = [1, 32, 32], strides = [1, 1, 1]} : vector<1x36x32xf32> to vector<1x32x32xf32>
    %cst_18 = arith.constant 6.250000e-02 : f32
    %73 = vector.broadcast %cst_18 : f32 to vector<1x32x32xf32>
    %74 = arith.mulf %73, %72 : vector<1x32x32xf32>
    %75 = arith.addf %71, %74 : vector<1x32x32xf32>
    %76 = vector.extract_strided_slice %75 {offsets = [0, 0, 2], sizes = [1, 32, 1], strides = [1, 1, 1]} : vector<1x32x32xf32> to vector<1x32x1xf32>
    %77 = vector.extract_strided_slice %75 {offsets = [0, 0, 1], sizes = [1, 32, 1], strides = [1, 1, 1]} : vector<1x32x32xf32> to vector<1x32x1xf32>
    %78 = vector.extract_strided_slice %75 {offsets = [0, 0, 30], sizes = [1, 32, 1], strides = [1, 1, 1]} : vector<1x32x32xf32> to vector<1x32x1xf32>
    %79 = vector.extract_strided_slice %75 {offsets = [0, 0, 29], sizes = [1, 32, 1], strides = [1, 1, 1]} : vector<1x32x32xf32> to vector<1x32x1xf32>
    %80 = tpu.concatenate %76, %77, %75, %78, %79 in 2 : vector<1x32x1xf32>, vector<1x32x1xf32>, vector<1x32x32xf32>, vector<1x32x1xf32>, vector<1x32x1xf32> -> vector<1x32x36xf32>
    %81 = vector.extract_strided_slice %80 {offsets = [0, 0, 0], sizes = [1, 32, 32], strides = [1, 1, 1]} : vector<1x32x36xf32> to vector<1x32x32xf32>
    %cst_19 = arith.constant 6.250000e-02 : f32
    %82 = vector.broadcast %cst_19 : f32 to vector<1x32x32xf32>
    %83 = arith.mulf %82, %81 : vector<1x32x32xf32>
    %84 = vector.extract_strided_slice %80 {offsets = [0, 0, 1], sizes = [1, 32, 32], strides = [1, 1, 1]} : vector<1x32x36xf32> to vector<1x32x32xf32>
    %cst_20 = arith.constant 2.500000e-01 : f32
    %85 = vector.broadcast %cst_20 : f32 to vector<1x32x32xf32>
    %86 = arith.mulf %85, %84 : vector<1x32x32xf32>
    %87 = arith.addf %83, %86 : vector<1x32x32xf32>
    %88 = vector.extract_strided_slice %80 {offsets = [0, 0, 2], sizes = [1, 32, 32], strides = [1, 1, 1]} : vector<1x32x36xf32> to vector<1x32x32xf32>
    %cst_21 = arith.constant 3.750000e-01 : f32
    %89 = vector.broadcast %cst_21 : f32 to vector<1x32x32xf32>
    %90 = arith.mulf %89, %88 : vector<1x32x32xf32>
    %91 = arith.addf %87, %90 : vector<1x32x32xf32>
    %92 = vector.extract_strided_slice %80 {offsets = [0, 0, 3], sizes = [1, 32, 32], strides = [1, 1, 1]} : vector<1x32x36xf32> to vector<1x32x32xf32>
    %cst_22 = arith.constant 2.500000e-01 : f32
    %93 = vector.broadcast %cst_22 : f32 to vector<1x32x32xf32>
    %94 = arith.mulf %93, %92 : vector<1x32x32xf32>
    %95 = arith.addf %91, %94 : vector<1x32x32xf32>
    %96 = vector.extract_strided_slice %80 {offsets = [0, 0, 4], sizes = [1, 32, 32], strides = [1, 1, 1]} : vector<1x32x36xf32> to vector<1x32x32xf32>
    %cst_23 = arith.constant 6.250000e-02 : f32
    %97 = vector.broadcast %cst_23 : f32 to vector<1x32x32xf32>
    %98 = arith.mulf %97, %96 : vector<1x32x32xf32>
    %99 = arith.addf %95, %98 : vector<1x32x32xf32>
    %c1_i32 = arith.constant 1 : i32
    %100 = vector.broadcast %c1_i32 : i32 to vector<1x32x32xi32>
    %101 = arith.andi %2, %100 : vector<1x32x32xi32>
    %c1_i32_24 = arith.constant 1 : i32
    %102 = vector.broadcast %c1_i32_24 : i32 to vector<1x32x32xi32>
    %103 = arith.andi %3, %102 : vector<1x32x32xi32>
    %104 = arith.ori %101, %103 : vector<1x32x32xi32>
    %c0_i32 = arith.constant 0 : i32
    %105 = vector.broadcast %c0_i32 : i32 to vector<1x32x32xi32>
    %106 = arith.cmpi eq, %104, %105 : vector<1x32x32xi32>
    %107 = arith.extui %106 : vector<1x32x32xi1> to vector<1x32x32xi32>
    %108 = arith.sitofp %107 : vector<1x32x32xi32> to vector<1x32x32xf32>
    %109 = arith.mulf %51, %108 : vector<1x32x32xf32>
    %110 = arith.mulf %99, %108 : vector<1x32x32xf32>
    %111 = vector.extract_strided_slice %109 {offsets = [0, 2, 0], sizes = [1, 1, 32], strides = [1, 1, 1]} : vector<1x32x32xf32> to vector<1x1x32xf32>
    %112 = vector.extract_strided_slice %109 {offsets = [0, 1, 0], sizes = [1, 1, 32], strides = [1, 1, 1]} : vector<1x32x32xf32> to vector<1x1x32xf32>
    %113 = vector.extract_strided_slice %109 {offsets = [0, 30, 0], sizes = [1, 1, 32], strides = [1, 1, 1]} : vector<1x32x32xf32> to vector<1x1x32xf32>
    %114 = vector.extract_strided_slice %109 {offsets = [0, 29, 0], sizes = [1, 1, 32], strides = [1, 1, 1]} : vector<1x32x32xf32> to vector<1x1x32xf32>
    %115 = tpu.concatenate %111, %112, %109, %113, %114 in 1 : vector<1x1x32xf32>, vector<1x1x32xf32>, vector<1x32x32xf32>, vector<1x1x32xf32>, vector<1x1x32xf32> -> vector<1x36x32xf32>
    %116 = vector.extract_strided_slice %115 {offsets = [0, 0, 0], sizes = [1, 32, 32], strides = [1, 1, 1]} : vector<1x36x32xf32> to vector<1x32x32xf32>
    %cst_25 = arith.constant 1.250000e-01 : f32
    %117 = vector.broadcast %cst_25 : f32 to vector<1x32x32xf32>
    %118 = arith.mulf %117, %116 : vector<1x32x32xf32>
    %119 = vector.extract_strided_slice %115 {offsets = [0, 1, 0], sizes = [1, 32, 32], strides = [1, 1, 1]} : vector<1x36x32xf32> to vector<1x32x32xf32>
    %cst_26 = arith.constant 5.000000e-01 : f32
    %120 = vector.broadcast %cst_26 : f32 to vector<1x32x32xf32>
    %121 = arith.mulf %120, %119 : vector<1x32x32xf32>
    %122 = arith.addf %118, %121 : vector<1x32x32xf32>
    %123 = vector.extract_strided_slice %115 {offsets = [0, 2, 0], sizes = [1, 32, 32], strides = [1, 1, 1]} : vector<1x36x32xf32> to vector<1x32x32xf32>
    %cst_27 = arith.constant 7.500000e-01 : f32
    %124 = vector.broadcast %cst_27 : f32 to vector<1x32x32xf32>
    %125 = arith.mulf %124, %123 : vector<1x32x32xf32>
    %126 = arith.addf %122, %125 : vector<1x32x32xf32>
    %127 = vector.extract_strided_slice %115 {offsets = [0, 3, 0], sizes = [1, 32, 32], strides = [1, 1, 1]} : vector<1x36x32xf32> to vector<1x32x32xf32>
    %cst_28 = arith.constant 5.000000e-01 : f32
    %128 = vector.broadcast %cst_28 : f32 to vector<1x32x32xf32>
    %129 = arith.mulf %128, %127 : vector<1x32x32xf32>
    %130 = arith.addf %126, %129 : vector<1x32x32xf32>
    %131 = vector.extract_strided_slice %115 {offsets = [0, 4, 0], sizes = [1, 32, 32], strides = [1, 1, 1]} : vector<1x36x32xf32> to vector<1x32x32xf32>
    %cst_29 = arith.constant 1.250000e-01 : f32
    %132 = vector.broadcast %cst_29 : f32 to vector<1x32x32xf32>
    %133 = arith.mulf %132, %131 : vector<1x32x32xf32>
    %134 = arith.addf %130, %133 : vector<1x32x32xf32>
    %135 = vector.extract_strided_slice %134 {offsets = [0, 0, 2], sizes = [1, 32, 1], strides = [1, 1, 1]} : vector<1x32x32xf32> to vector<1x32x1xf32>
    %136 = vector.extract_strided_slice %134 {offsets = [0, 0, 1], sizes = [1, 32, 1], strides = [1, 1, 1]} : vector<1x32x32xf32> to vector<1x32x1xf32>
    %137 = vector.extract_strided_slice %134 {offsets = [0, 0, 30], sizes = [1, 32, 1], strides = [1, 1, 1]} : vector<1x32x32xf32> to vector<1x32x1xf32>
    %138 = vector.extract_strided_slice %134 {offsets = [0, 0, 29], sizes = [1, 32, 1], strides = [1, 1, 1]} : vector<1x32x32xf32> to vector<1x32x1xf32>
    %139 = tpu.concatenate %135, %136, %134, %137, %138 in 2 : vector<1x32x1xf32>, vector<1x32x1xf32>, vector<1x32x32xf32>, vector<1x32x1xf32>, vector<1x32x1xf32> -> vector<1x32x36xf32>
    %140 = vector.extract_strided_slice %139 {offsets = [0, 0, 0], sizes = [1, 32, 32], strides = [1, 1, 1]} : vector<1x32x36xf32> to vector<1x32x32xf32>
    %cst_30 = arith.constant 1.250000e-01 : f32
    %141 = vector.broadcast %cst_30 : f32 to vector<1x32x32xf32>
    %142 = arith.mulf %141, %140 : vector<1x32x32xf32>
    %143 = vector.extract_strided_slice %139 {offsets = [0, 0, 1], sizes = [1, 32, 32], strides = [1, 1, 1]} : vector<1x32x36xf32> to vector<1x32x32xf32>
    %cst_31 = arith.constant 5.000000e-01 : f32
    %144 = vector.broadcast %cst_31 : f32 to vector<1x32x32xf32>
    %145 = arith.mulf %144, %143 : vector<1x32x32xf32>
    %146 = arith.addf %142, %145 : vector<1x32x32xf32>
    %147 = vector.extract_strided_slice %139 {offsets = [0, 0, 2], sizes = [1, 32, 32], strides = [1, 1, 1]} : vector<1x32x36xf32> to vector<1x32x32xf32>
    %cst_32 = arith.constant 7.500000e-01 : f32
    %148 = vector.broadcast %cst_32 : f32 to vector<1x32x32xf32>
    %149 = arith.mulf %148, %147 : vector<1x32x32xf32>
    %150 = arith.addf %146, %149 : vector<1x32x32xf32>
    %151 = vector.extract_strided_slice %139 {offsets = [0, 0, 3], sizes = [1, 32, 32], strides = [1, 1, 1]} : vector<1x32x36xf32> to vector<1x32x32xf32>
    %cst_33 = arith.constant 5.000000e-01 : f32
    %152 = vector.broadcast %cst_33 : f32 to vector<1x32x32xf32>
    %153 = arith.mulf %152, %151 : vector<1x32x32xf32>
    %154 = arith.addf %150, %153 : vector<1x32x32xf32>
    %155 = vector.extract_strided_slice %139 {offsets = [0, 0, 4], sizes = [1, 32, 32], strides = [1, 1, 1]} : vector<1x32x36xf32> to vector<1x32x32xf32>
    %cst_34 = arith.constant 1.250000e-01 : f32
    %156 = vector.broadcast %cst_34 : f32 to vector<1x32x32xf32>
    %157 = arith.mulf %156, %155 : vector<1x32x32xf32>
    %158 = arith.addf %154, %157 : vector<1x32x32xf32>
    %159 = vector.extract_strided_slice %110 {offsets = [0, 2, 0], sizes = [1, 1, 32], strides = [1, 1, 1]} : vector<1x32x32xf32> to vector<1x1x32xf32>
    %160 = vector.extract_strided_slice %110 {offsets = [0, 1, 0], sizes = [1, 1, 32], strides = [1, 1, 1]} : vector<1x32x32xf32> to vector<1x1x32xf32>
    %161 = vector.extract_strided_slice %110 {offsets = [0, 30, 0], sizes = [1, 1, 32], strides = [1, 1, 1]} : vector<1x32x32xf32> to vector<1x1x32xf32>
    %162 = vector.extract_strided_slice %110 {offsets = [0, 29, 0], sizes = [1, 1, 32], strides = [1, 1, 1]} : vector<1x32x32xf32> to vector<1x1x32xf32>
    %163 = tpu.concatenate %159, %160, %110, %161, %162 in 1 : vector<1x1x32xf32>, vector<1x1x32xf32>, vector<1x32x32xf32>, vector<1x1x32xf32>, vector<1x1x32xf32> -> vector<1x36x32xf32>
    %164 = vector.extract_strided_slice %163 {offsets = [0, 0, 0], sizes = [1, 32, 32], strides = [1, 1, 1]} : vector<1x36x32xf32> to vector<1x32x32xf32>
    %cst_35 = arith.constant 1.250000e-01 : f32
    %165 = vector.broadcast %cst_35 : f32 to vector<1x32x32xf32>
    %166 = arith.mulf %165, %164 : vector<1x32x32xf32>
    %167 = vector.extract_strided_slice %163 {offsets = [0, 1, 0], sizes = [1, 32, 32], strides = [1, 1, 1]} : vector<1x36x32xf32> to vector<1x32x32xf32>
    %cst_36 = arith.constant 5.000000e-01 : f32
    %168 = vector.broadcast %cst_36 : f32 to vector<1x32x32xf32>
    %169 = arith.mulf %168, %167 : vector<1x32x32xf32>
    %170 = arith.addf %166, %169 : vector<1x32x32xf32>
    %171 = vector.extract_strided_slice %163 {offsets = [0, 2, 0], sizes = [1, 32, 32], strides = [1, 1, 1]} : vector<1x36x32xf32> to vector<1x32x32xf32>
    %cst_37 = arith.constant 7.500000e-01 : f32
    %172 = vector.broadcast %cst_37 : f32 to vector<1x32x32xf32>
    %173 = arith.mulf %172, %171 : vector<1x32x32xf32>
    %174 = arith.addf %170, %173 : vector<1x32x32xf32>
    %175 = vector.extract_strided_slice %163 {offsets = [0, 3, 0], sizes = [1, 32, 32], strides = [1, 1, 1]} : vector<1x36x32xf32> to vector<1x32x32xf32>
    %cst_38 = arith.constant 5.000000e-01 : f32
    %176 = vector.broadcast %cst_38 : f32 to vector<1x32x32xf32>
    %177 = arith.mulf %176, %175 : vector<1x32x32xf32>
    %178 = arith.addf %174, %177 : vector<1x32x32xf32>
    %179 = vector.extract_strided_slice %163 {offsets = [0, 4, 0], sizes = [1, 32, 32], strides = [1, 1, 1]} : vector<1x36x32xf32> to vector<1x32x32xf32>
    %cst_39 = arith.constant 1.250000e-01 : f32
    %180 = vector.broadcast %cst_39 : f32 to vector<1x32x32xf32>
    %181 = arith.mulf %180, %179 : vector<1x32x32xf32>
    %182 = arith.addf %178, %181 : vector<1x32x32xf32>
    %183 = vector.extract_strided_slice %182 {offsets = [0, 0, 2], sizes = [1, 32, 1], strides = [1, 1, 1]} : vector<1x32x32xf32> to vector<1x32x1xf32>
    %184 = vector.extract_strided_slice %182 {offsets = [0, 0, 1], sizes = [1, 32, 1], strides = [1, 1, 1]} : vector<1x32x32xf32> to vector<1x32x1xf32>
    %185 = vector.extract_strided_slice %182 {offsets = [0, 0, 30], sizes = [1, 32, 1], strides = [1, 1, 1]} : vector<1x32x32xf32> to vector<1x32x1xf32>
    %186 = vector.extract_strided_slice %182 {offsets = [0, 0, 29], sizes = [1, 32, 1], strides = [1, 1, 1]} : vector<1x32x32xf32> to vector<1x32x1xf32>
    %187 = tpu.concatenate %183, %184, %182, %185, %186 in 2 : vector<1x32x1xf32>, vector<1x32x1xf32>, vector<1x32x32xf32>, vector<1x32x1xf32>, vector<1x32x1xf32> -> vector<1x32x36xf32>
    %188 = vector.extract_strided_slice %187 {offsets = [0, 0, 0], sizes = [1, 32, 32], strides = [1, 1, 1]} : vector<1x32x36xf32> to vector<1x32x32xf32>
    %cst_40 = arith.constant 1.250000e-01 : f32
    %189 = vector.broadcast %cst_40 : f32 to vector<1x32x32xf32>
    %190 = arith.mulf %189, %188 : vector<1x32x32xf32>
    %191 = vector.extract_strided_slice %187 {offsets = [0, 0, 1], sizes = [1, 32, 32], strides = [1, 1, 1]} : vector<1x32x36xf32> to vector<1x32x32xf32>
    %cst_41 = arith.constant 5.000000e-01 : f32
    %192 = vector.broadcast %cst_41 : f32 to vector<1x32x32xf32>
    %193 = arith.mulf %192, %191 : vector<1x32x32xf32>
    %194 = arith.addf %190, %193 : vector<1x32x32xf32>
    %195 = vector.extract_strided_slice %187 {offsets = [0, 0, 2], sizes = [1, 32, 32], strides = [1, 1, 1]} : vector<1x32x36xf32> to vector<1x32x32xf32>
    %cst_42 = arith.constant 7.500000e-01 : f32
    %196 = vector.broadcast %cst_42 : f32 to vector<1x32x32xf32>
    %197 = arith.mulf %196, %195 : vector<1x32x32xf32>
    %198 = arith.addf %194, %197 : vector<1x32x32xf32>
    %199 = vector.extract_strided_slice %187 {offsets = [0, 0, 3], sizes = [1, 32, 32], strides = [1, 1, 1]} : vector<1x32x36xf32> to vector<1x32x32xf32>
    %cst_43 = arith.constant 5.000000e-01 : f32
    %200 = vector.broadcast %cst_43 : f32 to vector<1x32x32xf32>
    %201 = arith.mulf %200, %199 : vector<1x32x32xf32>
    %202 = arith.addf %198, %201 : vector<1x32x32xf32>
    %203 = vector.extract_strided_slice %187 {offsets = [0, 0, 4], sizes = [1, 32, 32], strides = [1, 1, 1]} : vector<1x32x36xf32> to vector<1x32x32xf32>
    %cst_44 = arith.constant 1.250000e-01 : f32
    %204 = vector.broadcast %cst_44 : f32 to vector<1x32x32xf32>
    %205 = arith.mulf %204, %203 : vector<1x32x32xf32>
    %206 = arith.addf %202, %205 : vector<1x32x32xf32>
    %207 = arith.subf %0, %158 : vector<1x32x32xf32>
    %208 = arith.subf %1, %206 : vector<1x32x32xf32>
    %209 = arith.subf %207, %208 : vector<1x32x32xf32>
    %210 = math.absf %209 : vector<1x32x32xf32>
    %cst_45 = arith.constant 9.765625E-4 : f32
    %211 = vector.broadcast %cst_45 : f32 to vector<1x32x32xf32>
    %212 = arith.mulf %211, %210 : vector<1x32x32xf32>
    %213 = vector.extract_strided_slice %109 {offsets = [0, 4, 0], sizes = [1, 2, 32], strides = [1, 1, 1]} : vector<1x32x32xf32> to vector<1x2x32xf32>
    %214 = vector.extract_strided_slice %109 {offsets = [0, 2, 0], sizes = [1, 2, 32], strides = [1, 1, 1]} : vector<1x32x32xf32> to vector<1x2x32xf32>
    %215 = vector.extract_strided_slice %109 {offsets = [0, 28, 0], sizes = [1, 2, 32], strides = [1, 1, 1]} : vector<1x32x32xf32> to vector<1x2x32xf32>
    %216 = vector.extract_strided_slice %109 {offsets = [0, 26, 0], sizes = [1, 2, 32], strides = [1, 1, 1]} : vector<1x32x32xf32> to vector<1x2x32xf32>
    %217 = tpu.concatenate %213, %214, %109, %215, %216 in 1 : vector<1x2x32xf32>, vector<1x2x32xf32>, vector<1x32x32xf32>, vector<1x2x32xf32>, vector<1x2x32xf32> -> vector<1x40x32xf32>
    %218 = vector.extract_strided_slice %217 {offsets = [0, 0, 0], sizes = [1, 32, 32], strides = [1, 1, 1]} : vector<1x40x32xf32> to vector<1x32x32xf32>
    %cst_46 = arith.constant 6.250000e-02 : f32
    %219 = vector.broadcast %cst_46 : f32 to vector<1x32x32xf32>
    %220 = arith.mulf %219, %218 : vector<1x32x32xf32>
    %221 = vector.extract_strided_slice %217 {offsets = [0, 2, 0], sizes = [1, 32, 32], strides = [1, 1, 1]} : vector<1x40x32xf32> to vector<1x32x32xf32>
    %cst_47 = arith.constant 2.500000e-01 : f32
    %222 = vector.broadcast %cst_47 : f32 to vector<1x32x32xf32>
    %223 = arith.mulf %222, %221 : vector<1x32x32xf32>
    %224 = arith.addf %220, %223 : vector<1x32x32xf32>
    %225 = vector.extract_strided_slice %217 {offsets = [0, 4, 0], sizes = [1, 32, 32], strides = [1, 1, 1]} : vector<1x40x32xf32> to vector<1x32x32xf32>
    %cst_48 = arith.constant 3.750000e-01 : f32
    %226 = vector.broadcast %cst_48 : f32 to vector<1x32x32xf32>
    %227 = arith.mulf %226, %225 : vector<1x32x32xf32>
    %228 = arith.addf %224, %227 : vector<1x32x32xf32>
    %229 = vector.extract_strided_slice %217 {offsets = [0, 6, 0], sizes = [1, 32, 32], strides = [1, 1, 1]} : vector<1x40x32xf32> to vector<1x32x32xf32>
    %cst_49 = arith.constant 2.500000e-01 : f32
    %230 = vector.broadcast %cst_49 : f32 to vector<1x32x32xf32>
    %231 = arith.mulf %230, %229 : vector<1x32x32xf32>
    %232 = arith.addf %228, %231 : vector<1x32x32xf32>
    %233 = vector.extract_strided_slice %217 {offsets = [0, 8, 0], sizes = [1, 32, 32], strides = [1, 1, 1]} : vector<1x40x32xf32> to vector<1x32x32xf32>
    %cst_50 = arith.constant 6.250000e-02 : f32
    %234 = vector.broadcast %cst_50 : f32 to vector<1x32x32xf32>
    %235 = arith.mulf %234, %233 : vector<1x32x32xf32>
    %236 = arith.addf %232, %235 : vector<1x32x32xf32>
    %237 = vector.extract_strided_slice %236 {offsets = [0, 0, 4], sizes = [1, 32, 2], strides = [1, 1, 1]} : vector<1x32x32xf32> to vector<1x32x2xf32>
    %238 = vector.extract_strided_slice %236 {offsets = [0, 0, 2], sizes = [1, 32, 2], strides = [1, 1, 1]} : vector<1x32x32xf32> to vector<1x32x2xf32>
    %239 = vector.extract_strided_slice %236 {offsets = [0, 0, 28], sizes = [1, 32, 2], strides = [1, 1, 1]} : vector<1x32x32xf32> to vector<1x32x2xf32>
    %240 = vector.extract_strided_slice %236 {offsets = [0, 0, 26], sizes = [1, 32, 2], strides = [1, 1, 1]} : vector<1x32x32xf32> to vector<1x32x2xf32>
    %241 = tpu.concatenate %237, %238, %236, %239, %240 in 2 : vector<1x32x2xf32>, vector<1x32x2xf32>, vector<1x32x32xf32>, vector<1x32x2xf32>, vector<1x32x2xf32> -> vector<1x32x40xf32>
    %242 = vector.extract_strided_slice %241 {offsets = [0, 0, 0], sizes = [1, 32, 32], strides = [1, 1, 1]} : vector<1x32x40xf32> to vector<1x32x32xf32>
    %cst_51 = arith.constant 6.250000e-02 : f32
    %243 = vector.broadcast %cst_51 : f32 to vector<1x32x32xf32>
    %244 = arith.mulf %243, %242 : vector<1x32x32xf32>
    %245 = vector.extract_strided_slice %241 {offsets = [0, 0, 2], sizes = [1, 32, 32], strides = [1, 1, 1]} : vector<1x32x40xf32> to vector<1x32x32xf32>
    %cst_52 = arith.constant 2.500000e-01 : f32
    %246 = vector.broadcast %cst_52 : f32 to vector<1x32x32xf32>
    %247 = arith.mulf %246, %245 : vector<1x32x32xf32>
    %248 = arith.addf %244, %247 : vector<1x32x32xf32>
    %249 = vector.extract_strided_slice %241 {offsets = [0, 0, 4], sizes = [1, 32, 32], strides = [1, 1, 1]} : vector<1x32x40xf32> to vector<1x32x32xf32>
    %cst_53 = arith.constant 3.750000e-01 : f32
    %250 = vector.broadcast %cst_53 : f32 to vector<1x32x32xf32>
    %251 = arith.mulf %250, %249 : vector<1x32x32xf32>
    %252 = arith.addf %248, %251 : vector<1x32x32xf32>
    %253 = vector.extract_strided_slice %241 {offsets = [0, 0, 6], sizes = [1, 32, 32], strides = [1, 1, 1]} : vector<1x32x40xf32> to vector<1x32x32xf32>
    %cst_54 = arith.constant 2.500000e-01 : f32
    %254 = vector.broadcast %cst_54 : f32 to vector<1x32x32xf32>
    %255 = arith.mulf %254, %253 : vector<1x32x32xf32>
    %256 = arith.addf %252, %255 : vector<1x32x32xf32>
    %257 = vector.extract_strided_slice %241 {offsets = [0, 0, 8], sizes = [1, 32, 32], strides = [1, 1, 1]} : vector<1x32x40xf32> to vector<1x32x32xf32>
    %cst_55 = arith.constant 6.250000e-02 : f32
    %258 = vector.broadcast %cst_55 : f32 to vector<1x32x32xf32>
    %259 = arith.mulf %258, %257 : vector<1x32x32xf32>
    %260 = arith.addf %256, %259 : vector<1x32x32xf32>
    %261 = vector.extract_strided_slice %110 {offsets = [0, 4, 0], sizes = [1, 2, 32], strides = [1, 1, 1]} : vector<1x32x32xf32> to vector<1x2x32xf32>
    %262 = vector.extract_strided_slice %110 {offsets = [0, 2, 0], sizes = [1, 2, 32], strides = [1, 1, 1]} : vector<1x32x32xf32> to vector<1x2x32xf32>
    %263 = vector.extract_strided_slice %110 {offsets = [0, 28, 0], sizes = [1, 2, 32], strides = [1, 1, 1]} : vector<1x32x32xf32> to vector<1x2x32xf32>
    %264 = vector.extract_strided_slice %110 {offsets = [0, 26, 0], sizes = [1, 2, 32], strides = [1, 1, 1]} : vector<1x32x32xf32> to vector<1x2x32xf32>
    %265 = tpu.concatenate %261, %262, %110, %263, %264 in 1 : vector<1x2x32xf32>, vector<1x2x32xf32>, vector<1x32x32xf32>, vector<1x2x32xf32>, vector<1x2x32xf32> -> vector<1x40x32xf32>
    %266 = vector.extract_strided_slice %265 {offsets = [0, 0, 0], sizes = [1, 32, 32], strides = [1, 1, 1]} : vector<1x40x32xf32> to vector<1x32x32xf32>
    %cst_56 = arith.constant 6.250000e-02 : f32
    %267 = vector.broadcast %cst_56 : f32 to vector<1x32x32xf32>
    %268 = arith.mulf %267, %266 : vector<1x32x32xf32>
    %269 = vector.extract_strided_slice %265 {offsets = [0, 2, 0], sizes = [1, 32, 32], strides = [1, 1, 1]} : vector<1x40x32xf32> to vector<1x32x32xf32>
    %cst_57 = arith.constant 2.500000e-01 : f32
    %270 = vector.broadcast %cst_57 : f32 to vector<1x32x32xf32>
    %271 = arith.mulf %270, %269 : vector<1x32x32xf32>
    %272 = arith.addf %268, %271 : vector<1x32x32xf32>
    %273 = vector.extract_strided_slice %265 {offsets = [0, 4, 0], sizes = [1, 32, 32], strides = [1, 1, 1]} : vector<1x40x32xf32> to vector<1x32x32xf32>
    %cst_58 = arith.constant 3.750000e-01 : f32
    %274 = vector.broadcast %cst_58 : f32 to vector<1x32x32xf32>
    %275 = arith.mulf %274, %273 : vector<1x32x32xf32>
    %276 = arith.addf %272, %275 : vector<1x32x32xf32>
    %277 = vector.extract_strided_slice %265 {offsets = [0, 6, 0], sizes = [1, 32, 32], strides = [1, 1, 1]} : vector<1x40x32xf32> to vector<1x32x32xf32>
    %cst_59 = arith.constant 2.500000e-01 : f32
    %278 = vector.broadcast %cst_59 : f32 to vector<1x32x32xf32>
    %279 = arith.mulf %278, %277 : vector<1x32x32xf32>
    %280 = arith.addf %276, %279 : vector<1x32x32xf32>
    %281 = vector.extract_strided_slice %265 {offsets = [0, 8, 0], sizes = [1, 32, 32], strides = [1, 1, 1]} : vector<1x40x32xf32> to vector<1x32x32xf32>
    %cst_60 = arith.constant 6.250000e-02 : f32
    %282 = vector.broadcast %cst_60 : f32 to vector<1x32x32xf32>
    %283 = arith.mulf %282, %281 : vector<1x32x32xf32>
    %284 = arith.addf %280, %283 : vector<1x32x32xf32>
    %285 = vector.extract_strided_slice %284 {offsets = [0, 0, 4], sizes = [1, 32, 2], strides = [1, 1, 1]} : vector<1x32x32xf32> to vector<1x32x2xf32>
    %286 = vector.extract_strided_slice %284 {offsets = [0, 0, 2], sizes = [1, 32, 2], strides = [1, 1, 1]} : vector<1x32x32xf32> to vector<1x32x2xf32>
    %287 = vector.extract_strided_slice %284 {offsets = [0, 0, 28], sizes = [1, 32, 2], strides = [1, 1, 1]} : vector<1x32x32xf32> to vector<1x32x2xf32>
    %288 = vector.extract_strided_slice %284 {offsets = [0, 0, 26], sizes = [1, 32, 2], strides = [1, 1, 1]} : vector<1x32x32xf32> to vector<1x32x2xf32>
    %289 = tpu.concatenate %285, %286, %284, %287, %288 in 2 : vector<1x32x2xf32>, vector<1x32x2xf32>, vector<1x32x32xf32>, vector<1x32x2xf32>, vector<1x32x2xf32> -> vector<1x32x40xf32>
    %290 = vector.extract_strided_slice %289 {offsets = [0, 0, 0], sizes = [1, 32, 32], strides = [1, 1, 1]} : vector<1x32x40xf32> to vector<1x32x32xf32>
    %cst_61 = arith.constant 6.250000e-02 : f32
    %291 = vector.broadcast %cst_61 : f32 to vector<1x32x32xf32>
    %292 = arith.mulf %291, %290 : vector<1x32x32xf32>
    %293 = vector.extract_strided_slice %289 {offsets = [0, 0, 2], sizes = [1, 32, 32], strides = [1, 1, 1]} : vector<1x32x40xf32> to vector<1x32x32xf32>
    %cst_62 = arith.constant 2.500000e-01 : f32
    %294 = vector.broadcast %cst_62 : f32 to vector<1x32x32xf32>
    %295 = arith.mulf %294, %293 : vector<1x32x32xf32>
    %296 = arith.addf %292, %295 : vector<1x32x32xf32>
    %297 = vector.extract_strided_slice %289 {offsets = [0, 0, 4], sizes = [1, 32, 32], strides = [1, 1, 1]} : vector<1x32x40xf32> to vector<1x32x32xf32>
    %cst_63 = arith.constant 3.750000e-01 : f32
    %298 = vector.broadcast %cst_63 : f32 to vector<1x32x32xf32>
    %299 = arith.mulf %298, %297 : vector<1x32x32xf32>
    %300 = arith.addf %296, %299 : vector<1x32x32xf32>
    %301 = vector.extract_strided_slice %289 {offsets = [0, 0, 6], sizes = [1, 32, 32], strides = [1, 1, 1]} : vector<1x32x40xf32> to vector<1x32x32xf32>
    %cst_64 = arith.constant 2.500000e-01 : f32
    %302 = vector.broadcast %cst_64 : f32 to vector<1x32x32xf32>
    %303 = arith.mulf %302, %301 : vector<1x32x32xf32>
    %304 = arith.addf %300, %303 : vector<1x32x32xf32>
    %305 = vector.extract_strided_slice %289 {offsets = [0, 0, 8], sizes = [1, 32, 32], strides = [1, 1, 1]} : vector<1x32x40xf32> to vector<1x32x32xf32>
    %cst_65 = arith.constant 6.250000e-02 : f32
    %306 = vector.broadcast %cst_65 : f32 to vector<1x32x32xf32>
    %307 = arith.mulf %306, %305 : vector<1x32x32xf32>
    %308 = arith.addf %304, %307 : vector<1x32x32xf32>
    %c3_i32 = arith.constant 3 : i32
    %309 = vector.broadcast %c3_i32 : i32 to vector<1x32x32xi32>
    %310 = arith.andi %2, %309 : vector<1x32x32xi32>
    %c3_i32_66 = arith.constant 3 : i32
    %311 = vector.broadcast %c3_i32_66 : i32 to vector<1x32x32xi32>
    %312 = arith.andi %3, %311 : vector<1x32x32xi32>
    %313 = arith.ori %310, %312 : vector<1x32x32xi32>
    %c0_i32_67 = arith.constant 0 : i32
    %314 = vector.broadcast %c0_i32_67 : i32 to vector<1x32x32xi32>
    %315 = arith.cmpi eq, %313, %314 : vector<1x32x32xi32>
    %316 = arith.extui %315 : vector<1x32x32xi1> to vector<1x32x32xi32>
    %317 = arith.sitofp %316 : vector<1x32x32xi32> to vector<1x32x32xf32>
    %318 = arith.mulf %260, %317 : vector<1x32x32xf32>
    %319 = arith.mulf %308, %317 : vector<1x32x32xf32>
    %320 = vector.extract_strided_slice %318 {offsets = [0, 4, 0], sizes = [1, 2, 32], strides = [1, 1, 1]} : vector<1x32x32xf32> to vector<1x2x32xf32>
    %321 = vector.extract_strided_slice %318 {offsets = [0, 2, 0], sizes = [1, 2, 32], strides = [1, 1, 1]} : vector<1x32x32xf32> to vector<1x2x32xf32>
    %322 = vector.extract_strided_slice %318 {offsets = [0, 28, 0], sizes = [1, 2, 32], strides = [1, 1, 1]} : vector<1x32x32xf32> to vector<1x2x32xf32>
    %323 = vector.extract_strided_slice %318 {offsets = [0, 26, 0], sizes = [1, 2, 32], strides = [1, 1, 1]} : vector<1x32x32xf32> to vector<1x2x32xf32>
    %324 = tpu.concatenate %320, %321, %318, %322, %323 in 1 : vector<1x2x32xf32>, vector<1x2x32xf32>, vector<1x32x32xf32>, vector<1x2x32xf32>, vector<1x2x32xf32> -> vector<1x40x32xf32>
    %325 = vector.extract_strided_slice %324 {offsets = [0, 0, 0], sizes = [1, 32, 32], strides = [1, 1, 1]} : vector<1x40x32xf32> to vector<1x32x32xf32>
    %cst_68 = arith.constant 1.250000e-01 : f32
    %326 = vector.broadcast %cst_68 : f32 to vector<1x32x32xf32>
    %327 = arith.mulf %326, %325 : vector<1x32x32xf32>
    %328 = vector.extract_strided_slice %324 {offsets = [0, 2, 0], sizes = [1, 32, 32], strides = [1, 1, 1]} : vector<1x40x32xf32> to vector<1x32x32xf32>
    %cst_69 = arith.constant 5.000000e-01 : f32
    %329 = vector.broadcast %cst_69 : f32 to vector<1x32x32xf32>
    %330 = arith.mulf %329, %328 : vector<1x32x32xf32>
    %331 = arith.addf %327, %330 : vector<1x32x32xf32>
    %332 = vector.extract_strided_slice %324 {offsets = [0, 4, 0], sizes = [1, 32, 32], strides = [1, 1, 1]} : vector<1x40x32xf32> to vector<1x32x32xf32>
    %cst_70 = arith.constant 7.500000e-01 : f32
    %333 = vector.broadcast %cst_70 : f32 to vector<1x32x32xf32>
    %334 = arith.mulf %333, %332 : vector<1x32x32xf32>
    %335 = arith.addf %331, %334 : vector<1x32x32xf32>
    %336 = vector.extract_strided_slice %324 {offsets = [0, 6, 0], sizes = [1, 32, 32], strides = [1, 1, 1]} : vector<1x40x32xf32> to vector<1x32x32xf32>
    %cst_71 = arith.constant 5.000000e-01 : f32
    %337 = vector.broadcast %cst_71 : f32 to vector<1x32x32xf32>
    %338 = arith.mulf %337, %336 : vector<1x32x32xf32>
    %339 = arith.addf %335, %338 : vector<1x32x32xf32>
    %340 = vector.extract_strided_slice %324 {offsets = [0, 8, 0], sizes = [1, 32, 32], strides = [1, 1, 1]} : vector<1x40x32xf32> to vector<1x32x32xf32>
    %cst_72 = arith.constant 1.250000e-01 : f32
    %341 = vector.broadcast %cst_72 : f32 to vector<1x32x32xf32>
    %342 = arith.mulf %341, %340 : vector<1x32x32xf32>
    %343 = arith.addf %339, %342 : vector<1x32x32xf32>
    %344 = vector.extract_strided_slice %343 {offsets = [0, 0, 4], sizes = [1, 32, 2], strides = [1, 1, 1]} : vector<1x32x32xf32> to vector<1x32x2xf32>
    %345 = vector.extract_strided_slice %343 {offsets = [0, 0, 2], sizes = [1, 32, 2], strides = [1, 1, 1]} : vector<1x32x32xf32> to vector<1x32x2xf32>
    %346 = vector.extract_strided_slice %343 {offsets = [0, 0, 28], sizes = [1, 32, 2], strides = [1, 1, 1]} : vector<1x32x32xf32> to vector<1x32x2xf32>
    %347 = vector.extract_strided_slice %343 {offsets = [0, 0, 26], sizes = [1, 32, 2], strides = [1, 1, 1]} : vector<1x32x32xf32> to vector<1x32x2xf32>
    %348 = tpu.concatenate %344, %345, %343, %346, %347 in 2 : vector<1x32x2xf32>, vector<1x32x2xf32>, vector<1x32x32xf32>, vector<1x32x2xf32>, vector<1x32x2xf32> -> vector<1x32x40xf32>
    %349 = vector.extract_strided_slice %348 {offsets = [0, 0, 0], sizes = [1, 32, 32], strides = [1, 1, 1]} : vector<1x32x40xf32> to vector<1x32x32xf32>
    %cst_73 = arith.constant 1.250000e-01 : f32
    %350 = vector.broadcast %cst_73 : f32 to vector<1x32x32xf32>
    %351 = arith.mulf %350, %349 : vector<1x32x32xf32>
    %352 = vector.extract_strided_slice %348 {offsets = [0, 0, 2], sizes = [1, 32, 32], strides = [1, 1, 1]} : vector<1x32x40xf32> to vector<1x32x32xf32>
    %cst_74 = arith.constant 5.000000e-01 : f32
    %353 = vector.broadcast %cst_74 : f32 to vector<1x32x32xf32>
    %354 = arith.mulf %353, %352 : vector<1x32x32xf32>
    %355 = arith.addf %351, %354 : vector<1x32x32xf32>
    %356 = vector.extract_strided_slice %348 {offsets = [0, 0, 4], sizes = [1, 32, 32], strides = [1, 1, 1]} : vector<1x32x40xf32> to vector<1x32x32xf32>
    %cst_75 = arith.constant 7.500000e-01 : f32
    %357 = vector.broadcast %cst_75 : f32 to vector<1x32x32xf32>
    %358 = arith.mulf %357, %356 : vector<1x32x32xf32>
    %359 = arith.addf %355, %358 : vector<1x32x32xf32>
    %360 = vector.extract_strided_slice %348 {offsets = [0, 0, 6], sizes = [1, 32, 32], strides = [1, 1, 1]} : vector<1x32x40xf32> to vector<1x32x32xf32>
    %cst_76 = arith.constant 5.000000e-01 : f32
    %361 = vector.broadcast %cst_76 : f32 to vector<1x32x32xf32>
    %362 = arith.mulf %361, %360 : vector<1x32x32xf32>
    %363 = arith.addf %359, %362 : vector<1x32x32xf32>
    %364 = vector.extract_strided_slice %348 {offsets = [0, 0, 8], sizes = [1, 32, 32], strides = [1, 1, 1]} : vector<1x32x40xf32> to vector<1x32x32xf32>
    %cst_77 = arith.constant 1.250000e-01 : f32
    %365 = vector.broadcast %cst_77 : f32 to vector<1x32x32xf32>
    %366 = arith.mulf %365, %364 : vector<1x32x32xf32>
    %367 = arith.addf %363, %366 : vector<1x32x32xf32>
    %368 = vector.extract_strided_slice %319 {offsets = [0, 4, 0], sizes = [1, 2, 32], strides = [1, 1, 1]} : vector<1x32x32xf32> to vector<1x2x32xf32>
    %369 = vector.extract_strided_slice %319 {offsets = [0, 2, 0], sizes = [1, 2, 32], strides = [1, 1, 1]} : vector<1x32x32xf32> to vector<1x2x32xf32>
    %370 = vector.extract_strided_slice %319 {offsets = [0, 28, 0], sizes = [1, 2, 32], strides = [1, 1, 1]} : vector<1x32x32xf32> to vector<1x2x32xf32>
    %371 = vector.extract_strided_slice %319 {offsets = [0, 26, 0], sizes = [1, 2, 32], strides = [1, 1, 1]} : vector<1x32x32xf32> to vector<1x2x32xf32>
    %372 = tpu.concatenate %368, %369, %319, %370, %371 in 1 : vector<1x2x32xf32>, vector<1x2x32xf32>, vector<1x32x32xf32>, vector<1x2x32xf32>, vector<1x2x32xf32> -> vector<1x40x32xf32>
    %373 = vector.extract_strided_slice %372 {offsets = [0, 0, 0], sizes = [1, 32, 32], strides = [1, 1, 1]} : vector<1x40x32xf32> to vector<1x32x32xf32>
    %cst_78 = arith.constant 1.250000e-01 : f32
    %374 = vector.broadcast %cst_78 : f32 to vector<1x32x32xf32>
    %375 = arith.mulf %374, %373 : vector<1x32x32xf32>
    %376 = vector.extract_strided_slice %372 {offsets = [0, 2, 0], sizes = [1, 32, 32], strides = [1, 1, 1]} : vector<1x40x32xf32> to vector<1x32x32xf32>
    %cst_79 = arith.constant 5.000000e-01 : f32
    %377 = vector.broadcast %cst_79 : f32 to vector<1x32x32xf32>
    %378 = arith.mulf %377, %376 : vector<1x32x32xf32>
    %379 = arith.addf %375, %378 : vector<1x32x32xf32>
    %380 = vector.extract_strided_slice %372 {offsets = [0, 4, 0], sizes = [1, 32, 32], strides = [1, 1, 1]} : vector<1x40x32xf32> to vector<1x32x32xf32>
    %cst_80 = arith.constant 7.500000e-01 : f32
    %381 = vector.broadcast %cst_80 : f32 to vector<1x32x32xf32>
    %382 = arith.mulf %381, %380 : vector<1x32x32xf32>
    %383 = arith.addf %379, %382 : vector<1x32x32xf32>
    %384 = vector.extract_strided_slice %372 {offsets = [0, 6, 0], sizes = [1, 32, 32], strides = [1, 1, 1]} : vector<1x40x32xf32> to vector<1x32x32xf32>
    %cst_81 = arith.constant 5.000000e-01 : f32
    %385 = vector.broadcast %cst_81 : f32 to vector<1x32x32xf32>
    %386 = arith.mulf %385, %384 : vector<1x32x32xf32>
    %387 = arith.addf %383, %386 : vector<1x32x32xf32>
    %388 = vector.extract_strided_slice %372 {offsets = [0, 8, 0], sizes = [1, 32, 32], strides = [1, 1, 1]} : vector<1x40x32xf32> to vector<1x32x32xf32>
    %cst_82 = arith.constant 1.250000e-01 : f32
    %389 = vector.broadcast %cst_82 : f32 to vector<1x32x32xf32>
    %390 = arith.mulf %389, %388 : vector<1x32x32xf32>
    %391 = arith.addf %387, %390 : vector<1x32x32xf32>
    %392 = vector.extract_strided_slice %391 {offsets = [0, 0, 4], sizes = [1, 32, 2], strides = [1, 1, 1]} : vector<1x32x32xf32> to vector<1x32x2xf32>
    %393 = vector.extract_strided_slice %391 {offsets = [0, 0, 2], sizes = [1, 32, 2], strides = [1, 1, 1]} : vector<1x32x32xf32> to vector<1x32x2xf32>
    %394 = vector.extract_strided_slice %391 {offsets = [0, 0, 28], sizes = [1, 32, 2], strides = [1, 1, 1]} : vector<1x32x32xf32> to vector<1x32x2xf32>
    %395 = vector.extract_strided_slice %391 {offsets = [0, 0, 26], sizes = [1, 32, 2], strides = [1, 1, 1]} : vector<1x32x32xf32> to vector<1x32x2xf32>
    %396 = tpu.concatenate %392, %393, %391, %394, %395 in 2 : vector<1x32x2xf32>, vector<1x32x2xf32>, vector<1x32x32xf32>, vector<1x32x2xf32>, vector<1x32x2xf32> -> vector<1x32x40xf32>
    %397 = vector.extract_strided_slice %396 {offsets = [0, 0, 0], sizes = [1, 32, 32], strides = [1, 1, 1]} : vector<1x32x40xf32> to vector<1x32x32xf32>
    %cst_83 = arith.constant 1.250000e-01 : f32
    %398 = vector.broadcast %cst_83 : f32 to vector<1x32x32xf32>
    %399 = arith.mulf %398, %397 : vector<1x32x32xf32>
    %400 = vector.extract_strided_slice %396 {offsets = [0, 0, 2], sizes = [1, 32, 32], strides = [1, 1, 1]} : vector<1x32x40xf32> to vector<1x32x32xf32>
    %cst_84 = arith.constant 5.000000e-01 : f32
    %401 = vector.broadcast %cst_84 : f32 to vector<1x32x32xf32>
    %402 = arith.mulf %401, %400 : vector<1x32x32xf32>
    %403 = arith.addf %399, %402 : vector<1x32x32xf32>
    %404 = vector.extract_strided_slice %396 {offsets = [0, 0, 4], sizes = [1, 32, 32], strides = [1, 1, 1]} : vector<1x32x40xf32> to vector<1x32x32xf32>
    %cst_85 = arith.constant 7.500000e-01 : f32
    %405 = vector.broadcast %cst_85 : f32 to vector<1x32x32xf32>
    %406 = arith.mulf %405, %404 : vector<1x32x32xf32>
    %407 = arith.addf %403, %406 : vector<1x32x32xf32>
    %408 = vector.extract_strided_slice %396 {offsets = [0, 0, 6], sizes = [1, 32, 32], strides = [1, 1, 1]} : vector<1x32x40xf32> to vector<1x32x32xf32>
    %cst_86 = arith.constant 5.000000e-01 : f32
    %409 = vector.broadcast %cst_86 : f32 to vector<1x32x32xf32>
    %410 = arith.mulf %409, %408 : vector<1x32x32xf32>
    %411 = arith.addf %407, %410 : vector<1x32x32xf32>
    %412 = vector.extract_strided_slice %396 {offsets = [0, 0, 8], sizes = [1, 32, 32], strides = [1, 1, 1]} : vector<1x32x40xf32> to vector<1x32x32xf32>
    %cst_87 = arith.constant 1.250000e-01 : f32
    %413 = vector.broadcast %cst_87 : f32 to vector<1x32x32xf32>
    %414 = arith.mulf %413, %412 : vector<1x32x32xf32>
    %415 = arith.addf %411, %414 : vector<1x32x32xf32>
    %416 = arith.subf %109, %367 : vector<1x32x32xf32>
    %417 = arith.subf %110, %415 : vector<1x32x32xf32>
    %418 = arith.subf %416, %417 : vector<1x32x32xf32>
    %419 = math.absf %418 : vector<1x32x32xf32>
    %cst_88 = arith.constant 3.906250e-03 : f32
    %420 = vector.broadcast %cst_88 : f32 to vector<1x32x32xf32>
    %421 = arith.mulf %420, %108 : vector<1x32x32xf32>
    %422 = arith.mulf %421, %419 : vector<1x32x32xf32>
    %423 = arith.addf %212, %422 : vector<1x32x32xf32>
    %424 = vector.extract_strided_slice %318 {offsets = [0, 8, 0], sizes = [1, 4, 32], strides = [1, 1, 1]} : vector<1x32x32xf32> to vector<1x4x32xf32>
    %425 = vector.extract_strided_slice %318 {offsets = [0, 4, 0], sizes = [1, 4, 32], strides = [1, 1, 1]} : vector<1x32x32xf32> to vector<1x4x32xf32>
    %426 = vector.extract_strided_slice %318 {offsets = [0, 24, 0], sizes = [1, 4, 32], strides = [1, 1, 1]} : vector<1x32x32xf32> to vector<1x4x32xf32>
    %427 = vector.extract_strided_slice %318 {offsets = [0, 20, 0], sizes = [1, 4, 32], strides = [1, 1, 1]} : vector<1x32x32xf32> to vector<1x4x32xf32>
    %428 = tpu.concatenate %424, %425, %318, %426, %427 in 1 : vector<1x4x32xf32>, vector<1x4x32xf32>, vector<1x32x32xf32>, vector<1x4x32xf32>, vector<1x4x32xf32> -> vector<1x48x32xf32>
    %429 = vector.extract_strided_slice %428 {offsets = [0, 0, 0], sizes = [1, 32, 32], strides = [1, 1, 1]} : vector<1x48x32xf32> to vector<1x32x32xf32>
    %cst_89 = arith.constant 6.250000e-02 : f32
    %430 = vector.broadcast %cst_89 : f32 to vector<1x32x32xf32>
    %431 = arith.mulf %430, %429 : vector<1x32x32xf32>
    %432 = vector.extract_strided_slice %428 {offsets = [0, 4, 0], sizes = [1, 32, 32], strides = [1, 1, 1]} : vector<1x48x32xf32> to vector<1x32x32xf32>
    %cst_90 = arith.constant 2.500000e-01 : f32
    %433 = vector.broadcast %cst_90 : f32 to vector<1x32x32xf32>
    %434 = arith.mulf %433, %432 : vector<1x32x32xf32>
    %435 = arith.addf %431, %434 : vector<1x32x32xf32>
    %436 = vector.extract_strided_slice %428 {offsets = [0, 8, 0], sizes = [1, 32, 32], strides = [1, 1, 1]} : vector<1x48x32xf32> to vector<1x32x32xf32>
    %cst_91 = arith.constant 3.750000e-01 : f32
    %437 = vector.broadcast %cst_91 : f32 to vector<1x32x32xf32>
    %438 = arith.mulf %437, %436 : vector<1x32x32xf32>
    %439 = arith.addf %435, %438 : vector<1x32x32xf32>
    %440 = vector.extract_strided_slice %428 {offsets = [0, 12, 0], sizes = [1, 32, 32], strides = [1, 1, 1]} : vector<1x48x32xf32> to vector<1x32x32xf32>
    %cst_92 = arith.constant 2.500000e-01 : f32
    %441 = vector.broadcast %cst_92 : f32 to vector<1x32x32xf32>
    %442 = arith.mulf %441, %440 : vector<1x32x32xf32>
    %443 = arith.addf %439, %442 : vector<1x32x32xf32>
    %444 = vector.extract_strided_slice %428 {offsets = [0, 16, 0], sizes = [1, 32, 32], strides = [1, 1, 1]} : vector<1x48x32xf32> to vector<1x32x32xf32>
    %cst_93 = arith.constant 6.250000e-02 : f32
    %445 = vector.broadcast %cst_93 : f32 to vector<1x32x32xf32>
    %446 = arith.mulf %445, %444 : vector<1x32x32xf32>
    %447 = arith.addf %443, %446 : vector<1x32x32xf32>
    %448 = vector.extract_strided_slice %447 {offsets = [0, 0, 8], sizes = [1, 32, 4], strides = [1, 1, 1]} : vector<1x32x32xf32> to vector<1x32x4xf32>
    %449 = vector.extract_strided_slice %447 {offsets = [0, 0, 4], sizes = [1, 32, 4], strides = [1, 1, 1]} : vector<1x32x32xf32> to vector<1x32x4xf32>
    %450 = vector.extract_strided_slice %447 {offsets = [0, 0, 24], sizes = [1, 32, 4], strides = [1, 1, 1]} : vector<1x32x32xf32> to vector<1x32x4xf32>
    %451 = vector.extract_strided_slice %447 {offsets = [0, 0, 20], sizes = [1, 32, 4], strides = [1, 1, 1]} : vector<1x32x32xf32> to vector<1x32x4xf32>
    %452 = tpu.concatenate %448, %449, %447, %450, %451 in 2 : vector<1x32x4xf32>, vector<1x32x4xf32>, vector<1x32x32xf32>, vector<1x32x4xf32>, vector<1x32x4xf32> -> vector<1x32x48xf32>
    %453 = vector.extract_strided_slice %452 {offsets = [0, 0, 0], sizes = [1, 32, 32], strides = [1, 1, 1]} : vector<1x32x48xf32> to vector<1x32x32xf32>
    %cst_94 = arith.constant 6.250000e-02 : f32
    %454 = vector.broadcast %cst_94 : f32 to vector<1x32x32xf32>
    %455 = arith.mulf %454, %453 : vector<1x32x32xf32>
    %456 = vector.extract_strided_slice %452 {offsets = [0, 0, 4], sizes = [1, 32, 32], strides = [1, 1, 1]} : vector<1x32x48xf32> to vector<1x32x32xf32>
    %cst_95 = arith.constant 2.500000e-01 : f32
    %457 = vector.broadcast %cst_95 : f32 to vector<1x32x32xf32>
    %458 = arith.mulf %457, %456 : vector<1x32x32xf32>
    %459 = arith.addf %455, %458 : vector<1x32x32xf32>
    %460 = vector.extract_strided_slice %452 {offsets = [0, 0, 8], sizes = [1, 32, 32], strides = [1, 1, 1]} : vector<1x32x48xf32> to vector<1x32x32xf32>
    %cst_96 = arith.constant 3.750000e-01 : f32
    %461 = vector.broadcast %cst_96 : f32 to vector<1x32x32xf32>
    %462 = arith.mulf %461, %460 : vector<1x32x32xf32>
    %463 = arith.addf %459, %462 : vector<1x32x32xf32>
    %464 = vector.extract_strided_slice %452 {offsets = [0, 0, 12], sizes = [1, 32, 32], strides = [1, 1, 1]} : vector<1x32x48xf32> to vector<1x32x32xf32>
    %cst_97 = arith.constant 2.500000e-01 : f32
    %465 = vector.broadcast %cst_97 : f32 to vector<1x32x32xf32>
    %466 = arith.mulf %465, %464 : vector<1x32x32xf32>
    %467 = arith.addf %463, %466 : vector<1x32x32xf32>
    %468 = vector.extract_strided_slice %452 {offsets = [0, 0, 16], sizes = [1, 32, 32], strides = [1, 1, 1]} : vector<1x32x48xf32> to vector<1x32x32xf32>
    %cst_98 = arith.constant 6.250000e-02 : f32
    %469 = vector.broadcast %cst_98 : f32 to vector<1x32x32xf32>
    %470 = arith.mulf %469, %468 : vector<1x32x32xf32>
    %471 = arith.addf %467, %470 : vector<1x32x32xf32>
    %472 = vector.extract_strided_slice %319 {offsets = [0, 8, 0], sizes = [1, 4, 32], strides = [1, 1, 1]} : vector<1x32x32xf32> to vector<1x4x32xf32>
    %473 = vector.extract_strided_slice %319 {offsets = [0, 4, 0], sizes = [1, 4, 32], strides = [1, 1, 1]} : vector<1x32x32xf32> to vector<1x4x32xf32>
    %474 = vector.extract_strided_slice %319 {offsets = [0, 24, 0], sizes = [1, 4, 32], strides = [1, 1, 1]} : vector<1x32x32xf32> to vector<1x4x32xf32>
    %475 = vector.extract_strided_slice %319 {offsets = [0, 20, 0], sizes = [1, 4, 32], strides = [1, 1, 1]} : vector<1x32x32xf32> to vector<1x4x32xf32>
    %476 = tpu.concatenate %472, %473, %319, %474, %475 in 1 : vector<1x4x32xf32>, vector<1x4x32xf32>, vector<1x32x32xf32>, vector<1x4x32xf32>, vector<1x4x32xf32> -> vector<1x48x32xf32>
    %477 = vector.extract_strided_slice %476 {offsets = [0, 0, 0], sizes = [1, 32, 32], strides = [1, 1, 1]} : vector<1x48x32xf32> to vector<1x32x32xf32>
    %cst_99 = arith.constant 6.250000e-02 : f32
    %478 = vector.broadcast %cst_99 : f32 to vector<1x32x32xf32>
    %479 = arith.mulf %478, %477 : vector<1x32x32xf32>
    %480 = vector.extract_strided_slice %476 {offsets = [0, 4, 0], sizes = [1, 32, 32], strides = [1, 1, 1]} : vector<1x48x32xf32> to vector<1x32x32xf32>
    %cst_100 = arith.constant 2.500000e-01 : f32
    %481 = vector.broadcast %cst_100 : f32 to vector<1x32x32xf32>
    %482 = arith.mulf %481, %480 : vector<1x32x32xf32>
    %483 = arith.addf %479, %482 : vector<1x32x32xf32>
    %484 = vector.extract_strided_slice %476 {offsets = [0, 8, 0], sizes = [1, 32, 32], strides = [1, 1, 1]} : vector<1x48x32xf32> to vector<1x32x32xf32>
    %cst_101 = arith.constant 3.750000e-01 : f32
    %485 = vector.broadcast %cst_101 : f32 to vector<1x32x32xf32>
    %486 = arith.mulf %485, %484 : vector<1x32x32xf32>
    %487 = arith.addf %483, %486 : vector<1x32x32xf32>
    %488 = vector.extract_strided_slice %476 {offsets = [0, 12, 0], sizes = [1, 32, 32], strides = [1, 1, 1]} : vector<1x48x32xf32> to vector<1x32x32xf32>
    %cst_102 = arith.constant 2.500000e-01 : f32
    %489 = vector.broadcast %cst_102 : f32 to vector<1x32x32xf32>
    %490 = arith.mulf %489, %488 : vector<1x32x32xf32>
    %491 = arith.addf %487, %490 : vector<1x32x32xf32>
    %492 = vector.extract_strided_slice %476 {offsets = [0, 16, 0], sizes = [1, 32, 32], strides = [1, 1, 1]} : vector<1x48x32xf32> to vector<1x32x32xf32>
    %cst_103 = arith.constant 6.250000e-02 : f32
    %493 = vector.broadcast %cst_103 : f32 to vector<1x32x32xf32>
    %494 = arith.mulf %493, %492 : vector<1x32x32xf32>
    %495 = arith.addf %491, %494 : vector<1x32x32xf32>
    %496 = vector.extract_strided_slice %495 {offsets = [0, 0, 8], sizes = [1, 32, 4], strides = [1, 1, 1]} : vector<1x32x32xf32> to vector<1x32x4xf32>
    %497 = vector.extract_strided_slice %495 {offsets = [0, 0, 4], sizes = [1, 32, 4], strides = [1, 1, 1]} : vector<1x32x32xf32> to vector<1x32x4xf32>
    %498 = vector.extract_strided_slice %495 {offsets = [0, 0, 24], sizes = [1, 32, 4], strides = [1, 1, 1]} : vector<1x32x32xf32> to vector<1x32x4xf32>
    %499 = vector.extract_strided_slice %495 {offsets = [0, 0, 20], sizes = [1, 32, 4], strides = [1, 1, 1]} : vector<1x32x32xf32> to vector<1x32x4xf32>
    %500 = tpu.concatenate %496, %497, %495, %498, %499 in 2 : vector<1x32x4xf32>, vector<1x32x4xf32>, vector<1x32x32xf32>, vector<1x32x4xf32>, vector<1x32x4xf32> -> vector<1x32x48xf32>
    %501 = vector.extract_strided_slice %500 {offsets = [0, 0, 0], sizes = [1, 32, 32], strides = [1, 1, 1]} : vector<1x32x48xf32> to vector<1x32x32xf32>
    %cst_104 = arith.constant 6.250000e-02 : f32
    %502 = vector.broadcast %cst_104 : f32 to vector<1x32x32xf32>
    %503 = arith.mulf %502, %501 : vector<1x32x32xf32>
    %504 = vector.extract_strided_slice %500 {offsets = [0, 0, 4], sizes = [1, 32, 32], strides = [1, 1, 1]} : vector<1x32x48xf32> to vector<1x32x32xf32>
    %cst_105 = arith.constant 2.500000e-01 : f32
    %505 = vector.broadcast %cst_105 : f32 to vector<1x32x32xf32>
    %506 = arith.mulf %505, %504 : vector<1x32x32xf32>
    %507 = arith.addf %503, %506 : vector<1x32x32xf32>
    %508 = vector.extract_strided_slice %500 {offsets = [0, 0, 8], sizes = [1, 32, 32], strides = [1, 1, 1]} : vector<1x32x48xf32> to vector<1x32x32xf32>
    %cst_106 = arith.constant 3.750000e-01 : f32
    %509 = vector.broadcast %cst_106 : f32 to vector<1x32x32xf32>
    %510 = arith.mulf %509, %508 : vector<1x32x32xf32>
    %511 = arith.addf %507, %510 : vector<1x32x32xf32>
    %512 = vector.extract_strided_slice %500 {offsets = [0, 0, 12], sizes = [1, 32, 32], strides = [1, 1, 1]} : vector<1x32x48xf32> to vector<1x32x32xf32>
    %cst_107 = arith.constant 2.500000e-01 : f32
    %513 = vector.broadcast %cst_107 : f32 to vector<1x32x32xf32>
    %514 = arith.mulf %513, %512 : vector<1x32x32xf32>
    %515 = arith.addf %511, %514 : vector<1x32x32xf32>
    %516 = vector.extract_strided_slice %500 {offsets = [0, 0, 16], sizes = [1, 32, 32], strides = [1, 1, 1]} : vector<1x32x48xf32> to vector<1x32x32xf32>
    %cst_108 = arith.constant 6.250000e-02 : f32
    %517 = vector.broadcast %cst_108 : f32 to vector<1x32x32xf32>
    %518 = arith.mulf %517, %516 : vector<1x32x32xf32>
    %519 = arith.addf %515, %518 : vector<1x32x32xf32>
    %c7_i32 = arith.constant 7 : i32
    %520 = vector.broadcast %c7_i32 : i32 to vector<1x32x32xi32>
    %521 = arith.andi %2, %520 : vector<1x32x32xi32>
    %c7_i32_109 = arith.constant 7 : i32
    %522 = vector.broadcast %c7_i32_109 : i32 to vector<1x32x32xi32>
    %523 = arith.andi %3, %522 : vector<1x32x32xi32>
    %524 = arith.ori %521, %523 : vector<1x32x32xi32>
    %c0_i32_110 = arith.constant 0 : i32
    %525 = vector.broadcast %c0_i32_110 : i32 to vector<1x32x32xi32>
    %526 = arith.cmpi eq, %524, %525 : vector<1x32x32xi32>
    %527 = arith.extui %526 : vector<1x32x32xi1> to vector<1x32x32xi32>
    %528 = arith.sitofp %527 : vector<1x32x32xi32> to vector<1x32x32xf32>
    %529 = arith.mulf %471, %528 : vector<1x32x32xf32>
    %530 = arith.mulf %519, %528 : vector<1x32x32xf32>
    %531 = vector.extract_strided_slice %529 {offsets = [0, 8, 0], sizes = [1, 4, 32], strides = [1, 1, 1]} : vector<1x32x32xf32> to vector<1x4x32xf32>
    %532 = vector.extract_strided_slice %529 {offsets = [0, 4, 0], sizes = [1, 4, 32], strides = [1, 1, 1]} : vector<1x32x32xf32> to vector<1x4x32xf32>
    %533 = vector.extract_strided_slice %529 {offsets = [0, 24, 0], sizes = [1, 4, 32], strides = [1, 1, 1]} : vector<1x32x32xf32> to vector<1x4x32xf32>
    %534 = vector.extract_strided_slice %529 {offsets = [0, 20, 0], sizes = [1, 4, 32], strides = [1, 1, 1]} : vector<1x32x32xf32> to vector<1x4x32xf32>
    %535 = tpu.concatenate %531, %532, %529, %533, %534 in 1 : vector<1x4x32xf32>, vector<1x4x32xf32>, vector<1x32x32xf32>, vector<1x4x32xf32>, vector<1x4x32xf32> -> vector<1x48x32xf32>
    %536 = vector.extract_strided_slice %535 {offsets = [0, 0, 0], sizes = [1, 32, 32], strides = [1, 1, 1]} : vector<1x48x32xf32> to vector<1x32x32xf32>
    %cst_111 = arith.constant 1.250000e-01 : f32
    %537 = vector.broadcast %cst_111 : f32 to vector<1x32x32xf32>
    %538 = arith.mulf %537, %536 : vector<1x32x32xf32>
    %539 = vector.extract_strided_slice %535 {offsets = [0, 4, 0], sizes = [1, 32, 32], strides = [1, 1, 1]} : vector<1x48x32xf32> to vector<1x32x32xf32>
    %cst_112 = arith.constant 5.000000e-01 : f32
    %540 = vector.broadcast %cst_112 : f32 to vector<1x32x32xf32>
    %541 = arith.mulf %540, %539 : vector<1x32x32xf32>
    %542 = arith.addf %538, %541 : vector<1x32x32xf32>
    %543 = vector.extract_strided_slice %535 {offsets = [0, 8, 0], sizes = [1, 32, 32], strides = [1, 1, 1]} : vector<1x48x32xf32> to vector<1x32x32xf32>
    %cst_113 = arith.constant 7.500000e-01 : f32
    %544 = vector.broadcast %cst_113 : f32 to vector<1x32x32xf32>
    %545 = arith.mulf %544, %543 : vector<1x32x32xf32>
    %546 = arith.addf %542, %545 : vector<1x32x32xf32>
    %547 = vector.extract_strided_slice %535 {offsets = [0, 12, 0], sizes = [1, 32, 32], strides = [1, 1, 1]} : vector<1x48x32xf32> to vector<1x32x32xf32>
    %cst_114 = arith.constant 5.000000e-01 : f32
    %548 = vector.broadcast %cst_114 : f32 to vector<1x32x32xf32>
    %549 = arith.mulf %548, %547 : vector<1x32x32xf32>
    %550 = arith.addf %546, %549 : vector<1x32x32xf32>
    %551 = vector.extract_strided_slice %535 {offsets = [0, 16, 0], sizes = [1, 32, 32], strides = [1, 1, 1]} : vector<1x48x32xf32> to vector<1x32x32xf32>
    %cst_115 = arith.constant 1.250000e-01 : f32
    %552 = vector.broadcast %cst_115 : f32 to vector<1x32x32xf32>
    %553 = arith.mulf %552, %551 : vector<1x32x32xf32>
    %554 = arith.addf %550, %553 : vector<1x32x32xf32>
    %555 = vector.extract_strided_slice %554 {offsets = [0, 0, 8], sizes = [1, 32, 4], strides = [1, 1, 1]} : vector<1x32x32xf32> to vector<1x32x4xf32>
    %556 = vector.extract_strided_slice %554 {offsets = [0, 0, 4], sizes = [1, 32, 4], strides = [1, 1, 1]} : vector<1x32x32xf32> to vector<1x32x4xf32>
    %557 = vector.extract_strided_slice %554 {offsets = [0, 0, 24], sizes = [1, 32, 4], strides = [1, 1, 1]} : vector<1x32x32xf32> to vector<1x32x4xf32>
    %558 = vector.extract_strided_slice %554 {offsets = [0, 0, 20], sizes = [1, 32, 4], strides = [1, 1, 1]} : vector<1x32x32xf32> to vector<1x32x4xf32>
    %559 = tpu.concatenate %555, %556, %554, %557, %558 in 2 : vector<1x32x4xf32>, vector<1x32x4xf32>, vector<1x32x32xf32>, vector<1x32x4xf32>, vector<1x32x4xf32> -> vector<1x32x48xf32>
    %560 = vector.extract_strided_slice %559 {offsets = [0, 0, 0], sizes = [1, 32, 32], strides = [1, 1, 1]} : vector<1x32x48xf32> to vector<1x32x32xf32>
    %cst_116 = arith.constant 1.250000e-01 : f32
    %561 = vector.broadcast %cst_116 : f32 to vector<1x32x32xf32>
    %562 = arith.mulf %561, %560 : vector<1x32x32xf32>
    %563 = vector.extract_strided_slice %559 {offsets = [0, 0, 4], sizes = [1, 32, 32], strides = [1, 1, 1]} : vector<1x32x48xf32> to vector<1x32x32xf32>
    %cst_117 = arith.constant 5.000000e-01 : f32
    %564 = vector.broadcast %cst_117 : f32 to vector<1x32x32xf32>
    %565 = arith.mulf %564, %563 : vector<1x32x32xf32>
    %566 = arith.addf %562, %565 : vector<1x32x32xf32>
    %567 = vector.extract_strided_slice %559 {offsets = [0, 0, 8], sizes = [1, 32, 32], strides = [1, 1, 1]} : vector<1x32x48xf32> to vector<1x32x32xf32>
    %cst_118 = arith.constant 7.500000e-01 : f32
    %568 = vector.broadcast %cst_118 : f32 to vector<1x32x32xf32>
    %569 = arith.mulf %568, %567 : vector<1x32x32xf32>
    %570 = arith.addf %566, %569 : vector<1x32x32xf32>
    %571 = vector.extract_strided_slice %559 {offsets = [0, 0, 12], sizes = [1, 32, 32], strides = [1, 1, 1]} : vector<1x32x48xf32> to vector<1x32x32xf32>
    %cst_119 = arith.constant 5.000000e-01 : f32
    %572 = vector.broadcast %cst_119 : f32 to vector<1x32x32xf32>
    %573 = arith.mulf %572, %571 : vector<1x32x32xf32>
    %574 = arith.addf %570, %573 : vector<1x32x32xf32>
    %575 = vector.extract_strided_slice %559 {offsets = [0, 0, 16], sizes = [1, 32, 32], strides = [1, 1, 1]} : vector<1x32x48xf32> to vector<1x32x32xf32>
    %cst_120 = arith.constant 1.250000e-01 : f32
    %576 = vector.broadcast %cst_120 : f32 to vector<1x32x32xf32>
    %577 = arith.mulf %576, %575 : vector<1x32x32xf32>
    %578 = arith.addf %574, %577 : vector<1x32x32xf32>
    %579 = vector.extract_strided_slice %530 {offsets = [0, 8, 0], sizes = [1, 4, 32], strides = [1, 1, 1]} : vector<1x32x32xf32> to vector<1x4x32xf32>
    %580 = vector.extract_strided_slice %530 {offsets = [0, 4, 0], sizes = [1, 4, 32], strides = [1, 1, 1]} : vector<1x32x32xf32> to vector<1x4x32xf32>
    %581 = vector.extract_strided_slice %530 {offsets = [0, 24, 0], sizes = [1, 4, 32], strides = [1, 1, 1]} : vector<1x32x32xf32> to vector<1x4x32xf32>
    %582 = vector.extract_strided_slice %530 {offsets = [0, 20, 0], sizes = [1, 4, 32], strides = [1, 1, 1]} : vector<1x32x32xf32> to vector<1x4x32xf32>
    %583 = tpu.concatenate %579, %580, %530, %581, %582 in 1 : vector<1x4x32xf32>, vector<1x4x32xf32>, vector<1x32x32xf32>, vector<1x4x32xf32>, vector<1x4x32xf32> -> vector<1x48x32xf32>
    %584 = vector.extract_strided_slice %583 {offsets = [0, 0, 0], sizes = [1, 32, 32], strides = [1, 1, 1]} : vector<1x48x32xf32> to vector<1x32x32xf32>
    %cst_121 = arith.constant 1.250000e-01 : f32
    %585 = vector.broadcast %cst_121 : f32 to vector<1x32x32xf32>
    %586 = arith.mulf %585, %584 : vector<1x32x32xf32>
    %587 = vector.extract_strided_slice %583 {offsets = [0, 4, 0], sizes = [1, 32, 32], strides = [1, 1, 1]} : vector<1x48x32xf32> to vector<1x32x32xf32>
    %cst_122 = arith.constant 5.000000e-01 : f32
    %588 = vector.broadcast %cst_122 : f32 to vector<1x32x32xf32>
    %589 = arith.mulf %588, %587 : vector<1x32x32xf32>
    %590 = arith.addf %586, %589 : vector<1x32x32xf32>
    %591 = vector.extract_strided_slice %583 {offsets = [0, 8, 0], sizes = [1, 32, 32], strides = [1, 1, 1]} : vector<1x48x32xf32> to vector<1x32x32xf32>
    %cst_123 = arith.constant 7.500000e-01 : f32
    %592 = vector.broadcast %cst_123 : f32 to vector<1x32x32xf32>
    %593 = arith.mulf %592, %591 : vector<1x32x32xf32>
    %594 = arith.addf %590, %593 : vector<1x32x32xf32>
    %595 = vector.extract_strided_slice %583 {offsets = [0, 12, 0], sizes = [1, 32, 32], strides = [1, 1, 1]} : vector<1x48x32xf32> to vector<1x32x32xf32>
    %cst_124 = arith.constant 5.000000e-01 : f32
    %596 = vector.broadcast %cst_124 : f32 to vector<1x32x32xf32>
    %597 = arith.mulf %596, %595 : vector<1x32x32xf32>
    %598 = arith.addf %594, %597 : vector<1x32x32xf32>
    %599 = vector.extract_strided_slice %583 {offsets = [0, 16, 0], sizes = [1, 32, 32], strides = [1, 1, 1]} : vector<1x48x32xf32> to vector<1x32x32xf32>
    %cst_125 = arith.constant 1.250000e-01 : f32
    %600 = vector.broadcast %cst_125 : f32 to vector<1x32x32xf32>
    %601 = arith.mulf %600, %599 : vector<1x32x32xf32>
    %602 = arith.addf %598, %601 : vector<1x32x32xf32>
    %603 = vector.extract_strided_slice %602 {offsets = [0, 0, 8], sizes = [1, 32, 4], strides = [1, 1, 1]} : vector<1x32x32xf32> to vector<1x32x4xf32>
    %604 = vector.extract_strided_slice %602 {offsets = [0, 0, 4], sizes = [1, 32, 4], strides = [1, 1, 1]} : vector<1x32x32xf32> to vector<1x32x4xf32>
    %605 = vector.extract_strided_slice %602 {offsets = [0, 0, 24], sizes = [1, 32, 4], strides = [1, 1, 1]} : vector<1x32x32xf32> to vector<1x32x4xf32>
    %606 = vector.extract_strided_slice %602 {offsets = [0, 0, 20], sizes = [1, 32, 4], strides = [1, 1, 1]} : vector<1x32x32xf32> to vector<1x32x4xf32>
    %607 = tpu.concatenate %603, %604, %602, %605, %606 in 2 : vector<1x32x4xf32>, vector<1x32x4xf32>, vector<1x32x32xf32>, vector<1x32x4xf32>, vector<1x32x4xf32> -> vector<1x32x48xf32>
    %608 = vector.extract_strided_slice %607 {offsets = [0, 0, 0], sizes = [1, 32, 32], strides = [1, 1, 1]} : vector<1x32x48xf32> to vector<1x32x32xf32>
    %cst_126 = arith.constant 1.250000e-01 : f32
    %609 = vector.broadcast %cst_126 : f32 to vector<1x32x32xf32>
    %610 = arith.mulf %609, %608 : vector<1x32x32xf32>
    %611 = vector.extract_strided_slice %607 {offsets = [0, 0, 4], sizes = [1, 32, 32], strides = [1, 1, 1]} : vector<1x32x48xf32> to vector<1x32x32xf32>
    %cst_127 = arith.constant 5.000000e-01 : f32
    %612 = vector.broadcast %cst_127 : f32 to vector<1x32x32xf32>
    %613 = arith.mulf %612, %611 : vector<1x32x32xf32>
    %614 = arith.addf %610, %613 : vector<1x32x32xf32>
    %615 = vector.extract_strided_slice %607 {offsets = [0, 0, 8], sizes = [1, 32, 32], strides = [1, 1, 1]} : vector<1x32x48xf32> to vector<1x32x32xf32>
    %cst_128 = arith.constant 7.500000e-01 : f32
    %616 = vector.broadcast %cst_128 : f32 to vector<1x32x32xf32>
    %617 = arith.mulf %616, %615 : vector<1x32x32xf32>
    %618 = arith.addf %614, %617 : vector<1x32x32xf32>
    %619 = vector.extract_strided_slice %607 {offsets = [0, 0, 12], sizes = [1, 32, 32], strides = [1, 1, 1]} : vector<1x32x48xf32> to vector<1x32x32xf32>
    %cst_129 = arith.constant 5.000000e-01 : f32
    %620 = vector.broadcast %cst_129 : f32 to vector<1x32x32xf32>
    %621 = arith.mulf %620, %619 : vector<1x32x32xf32>
    %622 = arith.addf %618, %621 : vector<1x32x32xf32>
    %623 = vector.extract_strided_slice %607 {offsets = [0, 0, 16], sizes = [1, 32, 32], strides = [1, 1, 1]} : vector<1x32x48xf32> to vector<1x32x32xf32>
    %cst_130 = arith.constant 1.250000e-01 : f32
    %624 = vector.broadcast %cst_130 : f32 to vector<1x32x32xf32>
    %625 = arith.mulf %624, %623 : vector<1x32x32xf32>
    %626 = arith.addf %622, %625 : vector<1x32x32xf32>
    %627 = arith.subf %318, %578 : vector<1x32x32xf32>
    %628 = arith.subf %319, %626 : vector<1x32x32xf32>
    %629 = arith.subf %627, %628 : vector<1x32x32xf32>
    %630 = math.absf %629 : vector<1x32x32xf32>
    %cst_131 = arith.constant 1.562500e-02 : f32
    %631 = vector.broadcast %cst_131 : f32 to vector<1x32x32xf32>
    %632 = arith.mulf %631, %317 : vector<1x32x32xf32>
    %633 = arith.mulf %632, %630 : vector<1x32x32xf32>
    %634 = arith.addf %423, %633 : vector<1x32x32xf32>
    %635 = vector.shape_cast %634 : vector<1x32x32xf32> to vector<1x1x32x32xf32>
    %cst_132 = arith.constant dense<0.000000e+00> : vector<1xf32>
    %636 = vector.multi_reduction <add>, %635, %cst_132 [1, 2, 3] : vector<1x1x32x32xf32> to vector<1xf32>
    %637 = vector.shape_cast %636 : vector<1xf32> to vector<1x1x1x1xf32>
    %638 = vector.extract %637[0, 0, 0, 0] : f32 from vector<1x1x1x1xf32>
    %639 = vector.broadcast %638 : f32 to vector<1x8x128xf32>
    %c0_133 = arith.constant 0 : index
    %c0_134 = arith.constant 0 : index
    %c0_135 = arith.constant 0 : index
    %640 = vector.load %arg3[%c0_133, %c0_134, %c0_135] : memref<1x8x128xf32, #tpu.memory_space<vmem>>, vector<1x8x128xf32>
    tpu.vector_store %arg3[%c0_133, %c0_134, %c0_135], %639 {strides = array<i32>} : memref<1x8x128xf32, #tpu.memory_space<vmem>>, vector<1x8x128xf32>,
    return
  }
  func.func @transform_0(%arg0: i32) -> (i32, i32, i32) {
    %c0_i32 = arith.constant 0 : i32
    %c0_i32_0 = arith.constant 0 : i32
    %c0_i32_1 = arith.constant 0 : i32
    return %arg0, %c0_i32, %c0_i32_0 : i32, i32, i32
  }
  func.func @transform_1(%arg0: i32) -> (i32, i32, i32) {
    %c0_i32 = arith.constant 0 : i32
    %c0_i32_0 = arith.constant 0 : i32
    %c0_i32_1 = arith.constant 0 : i32
    return %arg0, %c0_i32, %c0_i32_0 : i32, i32, i32
  }
  func.func @transform_2(%arg0: i32) -> (i32, i32, i32) {
    %c0_i32 = arith.constant 0 : i32
    %c0_i32_0 = arith.constant 0 : i32
    %c0_i32_1 = arith.constant 0 : i32
    return %arg0, %c0_i32, %c0_i32_0 : i32, i32, i32
  }
}

</mosaic_0001>

<llo_original>
// kernel: lap_loss.1
$region0: #{lap_loss.1}
  #allocation0 [shape = 'u32[]', space=smem, size = 0x4, offset = 0x4, fixed_abs, tag = 'smem constant byte address 0x4 - core index']
  #allocation1 [shape = 'u32[72,128]{1,0:T(1,128)}', space=vmem, size = 0x9000, scoped, tag = 'internal scratch']
  %s0 = inlined_call_operand.hbm [shape: f32[2,32,32], index: 0, kind: input, shape index: {}]
  %s1 = inlined_call_operand.hbm [shape: f32[2,32,32], index: 1, kind: input, shape index: {}]
  %s2 = inlined_call_operand.vmem [shape: f32[2,8,128], index: 2, kind: output, shape index: {}]
  %s3 = sld [smem:[#allocation0]]
  $region49: #{lap_loss.1} parent=0
    _
  %s5 = ssub.s32 1, %s3
  %s6 = scalar_select 0, %s5, %s3
  $region1: #{lap_loss.1} parent=0
    #allocation2 [shape = 'u8[32768]{0}', space=vmem, size = 0x8000, scoped, tag = 'input window, operand 0']
    #allocation3 [shape = 's32[2]{0}', space=sflag, size = 0x8, scoped, tag = 'scoped memory for lap_loss.1']
    #allocation4 [shape = 'u8[32768]{0}', space=vmem, size = 0x8000, scoped, tag = 'input window, operand 1']
    #allocation5 [shape = 's32[2]{0}', space=sflag, size = 0x8, scoped, tag = 'scoped memory for lap_loss.1']
    %7 = vsyncpa [#allocation3], 0
    %s8 = scalar_lea.sflag [#allocation3], 1
    %9 = vsyncpa %s8, 0
    %10 = vsyncpa [#allocation5], 0
    %s11 = scalar_lea.sflag [#allocation5], 1
    %12 = vsyncpa %s11, 0
    loop: start=0, step=1, limit=4
    $region2: #{lap_loss.1} parent=1 // loop_pre_header
      _
    $region3: #{lap_loss.1} parent=1 // loop_header
      %s14 = sphi 0, %s18
      %p15 = scmp.ge.s32.totalorder %s14, 4
      %s24 = sphi 0, %s26
      %s27 = sphi 0, %s24
      %s28 = sphi 0, %s27
      %s44 = sphi 0, %s28
      %s50 = sphi 0, %s52
      %s53 = sphi 0, %s50
      %s54 = sphi 0, %s53
      %s70 = sphi 0, %s54
      %s76 = sphi 0, %s78
      %s79 = sphi 0, %s76
      %s80 = sphi 0, %s79
      %s96 = sphi 0, %s80
    $region4: #{lap_loss.1} parent=1 // loop_header_branch
      %17 = sbr.rel (%p15) target = $region8
    $region5: #{lap_loss.1} parent=1 // loop_body
      %s19 = ssub.s32 %s14, 1
      %s20 = ssub.s32 %s14, 2
      %s21 = sadd.s32 %s14, 1
      %s22 = ssub.s32 %s14, %s21
      %p23 = scmp.eq.s32.totalorder %s22, 0
      %s25 = sadd.s32 %s24, 1
      %s26 = scalar_select %p23, %s24, %s25
      %p29 = pneg %p23
      %p30 = scmp.eq.s32.totalorder %s14, 1
      %p31 = por %p29, %p30
      %p32 = scmp.ne.s32.totalorder %s24, %s27
      %p33 = scmp.eq.s32.totalorder %s14, 0
      %p34 = por %p32, %p33
      %p35 = scmp.ne.s32.totalorder %s24, %s27
      %p36 = scmp.eq.s32.totalorder %s19, 1
      %p37 = por %p35, %p36
      %p38 = scmp.ne.s32.totalorder %s27, %s28
      %p39 = scmp.eq.s32.totalorder %s19, 0
      %p40 = por %p38, %p39
      %p41 = scmp.ne.s32.totalorder %s27, %s28
      %p42 = scmp.eq.s32.totalorder %s20, 1
      %p43 = por %p41, %p42
      %p45 = scmp.ne.s32.totalorder %s28, %s44
      %p46 = scmp.eq.s32.totalorder %s20, 0
      %p47 = por %p45, %p46
      %s48 = ssub.s32 %s14, %s21
      %p49 = scmp.eq.s32.totalorder %s48, 0
      %s51 = sadd.s32 %s50, 1
      %s52 = scalar_select %p49, %s50, %s51
      %p55 = pneg %p49
      %p56 = scmp.eq.s32.totalorder %s14, 1
      %p57 = por %p55, %p56
      %p58 = scmp.ne.s32.totalorder %s50, %s53
      %p59 = scmp.eq.s32.totalorder %s14, 0
      %p60 = por %p58, %p59
      %p61 = scmp.ne.s32.totalorder %s50, %s53
      %p62 = scmp.eq.s32.totalorder %s19, 1
      %p63 = por %p61, %p62
      %p64 = scmp.ne.s32.totalorder %s53, %s54
      %p65 = scmp.eq.s32.totalorder %s19, 0
      %p66 = por %p64, %p65
      %p67 = scmp.ne.s32.totalorder %s53, %s54
      %p68 = scmp.eq.s32.totalorder %s20, 1
      %p69 = por %p67, %p68
      %p71 = scmp.ne.s32.totalorder %s54, %s70
      %p72 = scmp.eq.s32.totalorder %s20, 0
      %p73 = por %p71, %p72
      %s74 = ssub.s32 %s14, %s21
      %p75 = scmp.eq.s32.totalorder %s74, 0
      %s77 = sadd.s32 %s76, 1
      %s78 = scalar_select %p75, %s76, %s77
      %p81 = pneg %p75
      %p82 = scmp.eq.s32.totalorder %s14, 1
      %p83 = por %p81, %p82
      %p84 = scmp.ne.s32.totalorder %s76, %s79
      %p85 = scmp.eq.s32.totalorder %s14, 0
      %p86 = por %p84, %p85
      %p87 = scmp.ne.s32.totalorder %s76, %s79
      %p88 = scmp.eq.s32.totalorder %s19, 1
      %p89 = por %p87, %p88
      %p90 = scmp.ne.s32.totalorder %s79, %s80
      %p91 = scmp.eq.s32.totalorder %s19, 0
      %p92 = por %p90, %p91
      %p93 = scmp.ne.s32.totalorder %s79, %s80
      %p94 = scmp.eq.s32.totalorder %s20, 1
      %p95 = por %p93, %p94
      %p97 = scmp.ne.s32.totalorder %s80, %s96
      %p98 = scmp.eq.s32.totalorder %s20, 0
      %p99 = por %p97, %p98
      %p100 = scmp.le.s32.totalorder 1, %s14
      %p101 = scmp.lt.s32.totalorder %s14, 3
      %p102 = pnand %p100, %p101
      %p103 = pneg %p102
      // Predicated region
      $region9: #{lap_loss.1} parent=5 // pred_check
        _
      $region10: #{lap_loss.1} parent=5 // pred_check_branch
        %105 = sbr.rel (%p102) target = $region12
      $region11: #{lap_loss.1} parent=5 // pred_region
        %s106 = ssub.s32 %s14, 1
      $region12: #{lap_loss.1} parent=5 // pred_fallthru
        _
      %p107 = scmp.lt.s32.totalorder %s14, 2
      // Predicated region
      $region13: #{lap_loss.1} parent=5 // pred_check
        %p108 = pneg %p107
      $region14: #{lap_loss.1} parent=5 // pred_check_branch
        %110 = sbr.rel (%p108) target = $region16
      $region15: #{lap_loss.1} parent=5 // pred_region
        // Predicated region
        $region17: #{lap_loss.1} parent=15 // pred_check
          %p111 = pneg %p34
        $region18: #{lap_loss.1} parent=15 // pred_check_branch
          %113 = sbr.rel (%p111) target = $region20
        $region19: #{lap_loss.1} parent=15 // pred_region
          %s114 = sand.u32 %s24, 1
          %s115 = scalar_lea.sflag [#allocation3], %s114
          %s116 = sand.u32 %s24, 1
          %s117 = smul.addr %s116, 32
          %s118 = scalar_lea.vmem [#allocation2], %s117
          %120 = vsyncadd %s115, 0
          %s121 = smul.addr %s14, 4
          %s122 = smul.addr %s121, 8
          %s123 = scalar_lea.hbm %s0, %s122
          %s124 = sshll.u32 %s123, 4
          %s125 = int_to_ptr.hbm [resolvable:$true] %s124
          %s126 = sshll.u32 %s118, 4
          %s127 = int_to_ptr.vmem [resolvable:$true] %s126
          %132 = dma.hbm_to_vmem [thread:$0]  %s125, 512, %s127, %s115, 128, 128, 8
        $region20: #{lap_loss.1} parent=15 // pred_fallthru
          _
        // Predicated region
        $region21: #{lap_loss.1} parent=15 // pred_check
          %p133 = pneg %p60
        $region22: #{lap_loss.1} parent=15 // pred_check_branch
          %135 = sbr.rel (%p133) target = $region24
        $region23: #{lap_loss.1} parent=15 // pred_region
          %s136 = sand.u32 %s50, 1
          %s137 = scalar_lea.sflag [#allocation5], %s136
          %s138 = sand.u32 %s50, 1
          %s139 = smul.addr %s138, 32
          %s140 = scalar_lea.vmem [#allocation4], %s139
          %142 = vsyncadd %s137, 0
          %s143 = smul.addr %s14, 4
          %s144 = smul.addr %s143, 8
          %s145 = scalar_lea.hbm %s1, %s144
          %s146 = sshll.u32 %s145, 4
          %s147 = int_to_ptr.hbm [resolvable:$true] %s146
          %s148 = sshll.u32 %s140, 4
          %s149 = int_to_ptr.vmem [resolvable:$true] %s148
          %154 = dma.hbm_to_vmem [thread:$0]  %s147, 512, %s149, %s137, 128, 128, 8
        $region24: #{lap_loss.1} parent=15 // pred_fallthru
          _
      $region16: #{lap_loss.1} parent=5 // pred_fallthru
        _
      %p155 = scmp.le.s32.totalorder 1, %s14
      %p156 = scmp.lt.s32.totalorder %s14, 3
      %p157 = pnand %p155, %p156
      %p158 = pneg %p157
      // Predicated region
      $region25: #{lap_loss.1} parent=5 // pred_check
        _
      $region26: #{lap_loss.1} parent=5 // pred_check_branch
        %160 = sbr.rel (%p157) target = $region28
      $region27: #{lap_loss.1} parent=5 // pred_region
        %s161 = ssub.s32 %s14, 1
        %s162 = sand.u32 %s27, 1
        %s163 = scalar_lea.sflag [#allocation3], %s162
        %s164 = sand.u32 %s27, 1
        %s165 = smul.addr %s164, 32
        %s166 = scalar_lea.vmem [#allocation2], %s165
        // Predicated region
        $region29: #{lap_loss.1} parent=27 // pred_check
          %p167 = pneg %p40
        $region30: #{lap_loss.1} parent=27 // pred_check_branch
          %169 = sbr.rel (%p167) target = $region32
        $region31: #{lap_loss.1} parent=27 // pred_region
          %171 = dma.done %s163, 512
        $region32: #{lap_loss.1} parent=27 // pred_fallthru
          _
        %s172 = sand.u32 %s53, 1
        %s173 = scalar_lea.sflag [#allocation5], %s172
        %s174 = sand.u32 %s53, 1
        %s175 = smul.addr %s174, 32
        %s176 = scalar_lea.vmem [#allocation4], %s175
        // Predicated region
        $region33: #{lap_loss.1} parent=27 // pred_check
          %p177 = pneg %p66
        $region34: #{lap_loss.1} parent=27 // pred_check_branch
          %179 = sbr.rel (%p177) target = $region36
        $region35: #{lap_loss.1} parent=27 // pred_region
          %181 = dma.done %s173, 512
        $region36: #{lap_loss.1} parent=27 // pred_fallthru
          _
        %s182 = sand.u32 %s27, 1
        %s183 = scalar_lea.sflag [#allocation3], %s182
        %s184 = sand.u32 %s27, 1
        %s185 = smul.addr %s184, 32
        %s186 = scalar_lea.vmem [#allocation2], %s185
        %p187 = pneg %p40
        %p188 = pneg %p37
        %s189 = sand.u32 %s53, 1
        %s190 = scalar_lea.sflag [#allocation5], %s189
        %s191 = sand.u32 %s53, 1
        %s192 = smul.addr %s191, 32
        %s193 = scalar_lea.vmem [#allocation4], %s192
        %p194 = pneg %p66
        %p195 = pneg %p63
        %p196 = pneg %p92
        %p197 = pneg %p89
        %p198 = scmp.lt.s32.totalorder %s19, 1
        %s199 = scalar_select %p198, %s19, 1
        %s200 = smul.addr %s199, 8
        %s201 = scalar_lea.vmem %s2, %s200
        %p202 = scmp.lt.s32.totalorder %s19, 1
        %s203 = scalar_select %p202, %s19, 1
        %s204 = smul.addr %s203, 8
        %s205 = scalar_lea.vmem %s2, %s204
        %v206 = vld [vmem:[%s166] sm:$0xff]
        %v207 = vld [vmem:[%s166 + $0x8] sm:$0xff]
        %v208 = vld [vmem:[%s166 + $0x10] sm:$0xff]
        %v209 = vld [vmem:[%s166 + $0x18] sm:$0xff]
        %v210 = vld [vmem:[%s176] sm:$0xff]
        %v211 = vld [vmem:[%s176 + $0x8] sm:$0xff]
        %v212 = vld [vmem:[%s176 + $0x10] sm:$0xff]
        %v213 = vld [vmem:[%s176 + $0x18] sm:$0xff]
        %v214 = vlaneseq
        %v215 = vshrl.u32 %v214, 7
        %v216 = vadd.s32 %v215, 8
        %v217 = vadd.s32 %v215, 16
        %v218 = vadd.s32 %v215, 24
        %v219 = vlaneseq
        %v220 = vand.u32 %v219, 127
        %v222 = vrot.slane %v206, 2
        %vm227 = vcmask 1041408
        %v228 = vrot.slane %v206, 6
        %v229 = vrot.slane %v207, 6
        %v230 = vsel %vm227, %v228, %v229
        %v231 = vrot.slane %v208, 6
        %v232 = vsel %vm227, %v229, %v231
        %v233 = vrot.slane %v209, 6
        %v234 = vsel %vm227, %v231, %v233
        %v240 = vrot.slane %v209, 4
        %v242 = vrot.slane %v209, 2
        %vm244 = vcmask 1040384
        %v245 = vsel %vm244, %v222, %v206
        %v246 = vsel %vm227, %v245, %v228
        %v247 = vsel %vm227, %v233, %v240
        %vm248 = vcmask 1042432
        %v249 = vsel %vm248, %v247, %v242
        %v250 = vmul.f32 %v246, 0.0625
        %v251 = vmul.f32 %v230, 0.0625
        %v252 = vmul.f32 %v232, 0.0625
        %v253 = vmul.f32 %v234, 0.0625
        %v254 = vmul.f32 %v246, 0.25
        %v255 = vmul.f32 %v230, 0.25
        %v256 = vmul.f32 %v232, 0.25
        %v257 = vmul.f32 %v234, 0.25
        %v258 = vmul.f32 %v249, 0.25
        %vm264 = vcmask 1046528
        %v265 = vrot.slane %v254, 1
        %v266 = vrot.slane %v255, 1
        %v267 = vsel %vm264, %v265, %v266
        %v268 = vrot.slane %v256, 1
        %v269 = vsel %vm264, %v266, %v268
        %v270 = vrot.slane %v257, 1
        %v271 = vsel %vm264, %v268, %v270
        %v272 = vrot.slane %v258, 1
        %v273 = vsel %vm264, %v270, %v272
        %v278 = vadd.f32 %v250, %v267
        %v279 = vadd.f32 %v251, %v269
        %v280 = vadd.f32 %v252, %v271
        %v281 = vadd.f32 %v253, %v273
        %v282 = vmul.f32 %v246, 0.375
        %v283 = vmul.f32 %v230, 0.375
        %v284 = vmul.f32 %v232, 0.375
        %v285 = vmul.f32 %v234, 0.375
        %v286 = vmul.f32 %v249, 0.375
        %vm292 = vcmask 1045504
        %v293 = vrot.slane %v282, 2
        %v294 = vrot.slane %v283, 2
        %v295 = vsel %vm292, %v293, %v294
        %v296 = vrot.slane %v284, 2
        %v297 = vsel %vm292, %v294, %v296
        %v298 = vrot.slane %v285, 2
        %v299 = vsel %vm292, %v296, %v298
        %v300 = vrot.slane %v286, 2
        %v301 = vsel %vm292, %v298, %v300
        %v306 = vadd.f32 %v278, %v295
        %v307 = vadd.f32 %v279, %v297
        %v308 = vadd.f32 %v280, %v299
        %v309 = vadd.f32 %v281, %v301
        %vm310 = vcmask 1044480
        %v311 = vrot.slane %v254, 3
        %v312 = vrot.slane %v255, 3
        %v313 = vsel %vm310, %v311, %v312
        %v314 = vrot.slane %v256, 3
        %v315 = vsel %vm310, %v312, %v314
        %v316 = vrot.slane %v257, 3
        %v317 = vsel %vm310, %v314, %v316
        %v318 = vrot.slane %v258, 3
        %v319 = vsel %vm310, %v316, %v318
        %v324 = vadd.f32 %v306, %v313
        %v325 = vadd.f32 %v307, %v315
        %v326 = vadd.f32 %v308, %v317
        %v327 = vadd.f32 %v309, %v319
        %v328 = vmul.f32 %v249, 0.0625
        %vm334 = vcmask 1043456
        %v335 = vrot.slane %v250, 4
        %v336 = vrot.slane %v251, 4
        %v337 = vsel %vm334, %v335, %v336
        %v338 = vrot.slane %v252, 4
        %v339 = vsel %vm334, %v336, %v338
        %v340 = vrot.slane %v253, 4
        %v341 = vsel %vm334, %v338, %v340
        %v342 = vrot.slane %v328, 4
        %v343 = vsel %vm334, %v340, %v342
        %v348 = vadd.f32 %v324, %v337
        %v349 = vadd.f32 %v325, %v339
        %v350 = vadd.f32 %v326, %v341
        %v351 = vadd.f32 %v327, %v343
        %356 = vrot.lane.b32.xlu0 %v348, 126
        %v357 = vpop.permute.xlu0 %356
        %358 = vrot.lane.b32.xlu0 %v349, 126
        %v359 = vpop.permute.xlu0 %358
        %360 = vrot.lane.b32.xlu0 %v350, 126
        %v361 = vpop.permute.xlu0 %360
        %362 = vrot.lane.b32.xlu0 %v351, 126
        %v363 = vpop.permute.xlu0 %362
        %368 = vrot.lane.b32.xlu0 %v348, 2
        %v369 = vpop.permute.xlu0 %368
        %370 = vrot.lane.b32.xlu0 %v349, 2
        %v371 = vpop.permute.xlu0 %370
        %372 = vrot.lane.b32.xlu0 %v350, 2
        %v373 = vpop.permute.xlu0 %372
        %374 = vrot.lane.b32.xlu0 %v351, 2
        %v375 = vpop.permute.xlu0 %374
        %380 = vrot.lane.b32.xlu0 %v348, 4
        %v381 = vpop.permute.xlu0 %380
        %382 = vrot.lane.b32.xlu0 %v349, 4
        %v383 = vpop.permute.xlu0 %382
        %384 = vrot.lane.b32.xlu0 %v350, 4
        %v385 = vpop.permute.xlu0 %384
        %386 = vrot.lane.b32.xlu0 %v351, 4
        %v387 = vpop.permute.xlu0 %386
        %392 = vrot.lane.b32.xlu0 %v348, 6
        %v393 = vpop.permute.xlu0 %392
        %394 = vrot.lane.b32.xlu0 %v349, 6
        %v395 = vpop.permute.xlu0 %394
        %396 = vrot.lane.b32.xlu0 %v350, 6
        %v397 = vpop.permute.xlu0 %396
        %398 = vrot.lane.b32.xlu0 %v351, 6
        %v399 = vpop.permute.xlu0 %398
        %vm404 = vcmask 7168
        %v405 = vsel %vm404, %v357, %v348
        %v406 = vsel %vm404, %v359, %v349
        %v407 = vsel %vm404, %v361, %v350
        %v408 = vsel %vm404, %v363, %v351
        %vm409 = vcmask 15360
        %v410 = vsel %vm409, %v405, %v369
        %v411 = vsel %vm409, %v406, %v371
        %v412 = vsel %vm409, %v407, %v373
        %v413 = vsel %vm409, %v408, %v375
        %vm414 = vcmask 277504
        %v415 = vsel %vm414, %v410, %v381
        %v416 = vsel %vm414, %v411, %v383
        %v417 = vsel %vm414, %v412, %v385
        %v418 = vsel %vm414, %v413, %v387
        %vm419 = vcmask 285696
        %v420 = vsel %vm419, %v415, %v393
        %v421 = vsel %vm419, %v416, %v395
        %v422 = vsel %vm419, %v417, %v397
        %v423 = vsel %vm419, %v418, %v399
        %v424 = vmul.f32 %v420, 0.0625
        %v425 = vmul.f32 %v421, 0.0625
        %v426 = vmul.f32 %v422, 0.0625
        %v427 = vmul.f32 %v423, 0.0625
        %v428 = vmul.f32 %v420, 0.25
        %v429 = vmul.f32 %v421, 0.25
        %v430 = vmul.f32 %v422, 0.25
        %v431 = vmul.f32 %v423, 0.25
        %436 = vrot.lane.b32.xlu0 %v428, 127
        %v437 = vpop.permute.xlu0 %436
        %438 = vrot.lane.b32.xlu0 %v429, 127
        %v439 = vpop.permute.xlu0 %438
        %440 = vrot.lane.b32.xlu0 %v430, 127
        %v441 = vpop.permute.xlu0 %440
        %442 = vrot.lane.b32.xlu0 %v431, 127
        %v443 = vpop.permute.xlu0 %442
        %v448 = vadd.f32 %v424, %v437
        %v449 = vadd.f32 %v425, %v439
        %v450 = vadd.f32 %v426, %v441
        %v451 = vadd.f32 %v427, %v443
        %v452 = vmul.f32 %v420, 0.375
        %v453 = vmul.f32 %v421, 0.375
        %v454 = vmul.f32 %v422, 0.375
        %v455 = vmul.f32 %v423, 0.375
        %460 = vrot.lane.b32.xlu0 %v452, 126
        %v461 = vpop.permute.xlu0 %460
        %462 = vrot.lane.b32.xlu0 %v453, 126
        %v463 = vpop.permute.xlu0 %462
        %464 = vrot.lane.b32.xlu0 %v454, 126
        %v465 = vpop.permute.xlu0 %464
        %466 = vrot.lane.b32.xlu0 %v455, 126
        %v467 = vpop.permute.xlu0 %466
        %v472 = vadd.f32 %v448, %v461
        %v473 = vadd.f32 %v449, %v463
        %v474 = vadd.f32 %v450, %v465
        %v475 = vadd.f32 %v451, %v467
        %476 = vrot.lane.b32.xlu0 %v428, 125
        %v477 = vpop.permute.xlu0 %476
        %478 = vrot.lane.b32.xlu0 %v429, 125
        %v479 = vpop.permute.xlu0 %478
        %480 = vrot.lane.b32.xlu0 %v430, 125
        %v481 = vpop.permute.xlu0 %480
        %482 = vrot.lane.b32.xlu0 %v431, 125
        %v483 = vpop.permute.xlu0 %482
        %v488 = vadd.f32 %v472, %v477
        %v489 = vadd.f32 %v473, %v479
        %v490 = vadd.f32 %v474, %v481
        %v491 = vadd.f32 %v475, %v483
        %496 = vrot.lane.b32.xlu0 %v424, 124
        %v497 = vpop.permute.xlu0 %496
        %498 = vrot.lane.b32.xlu0 %v425, 124
        %v499 = vpop.permute.xlu0 %498
        %500 = vrot.lane.b32.xlu0 %v426, 124
        %v501 = vpop.permute.xlu0 %500
        %502 = vrot.lane.b32.xlu0 %v427, 124
        %v503 = vpop.permute.xlu0 %502
        %v508 = vadd.f32 %v488, %v497
        %v509 = vadd.f32 %v489, %v499
        %v510 = vadd.f32 %v490, %v501
        %v511 = vadd.f32 %v491, %v503
        %v513 = vrot.slane %v210, 2
        %v518 = vrot.slane %v210, 6
        %v519 = vrot.slane %v211, 6
        %v520 = vsel %vm227, %v518, %v519
        %v521 = vrot.slane %v212, 6
        %v522 = vsel %vm227, %v519, %v521
        %v523 = vrot.slane %v213, 6
        %v524 = vsel %vm227, %v521, %v523
        %v530 = vrot.slane %v213, 4
        %v532 = vrot.slane %v213, 2
        %v534 = vsel %vm244, %v513, %v210
        %v535 = vsel %vm227, %v534, %v518
        %v536 = vsel %vm227, %v523, %v530
        %v537 = vsel %vm248, %v536, %v532
        %v538 = vmul.f32 %v535, 0.0625
        %v539 = vmul.f32 %v520, 0.0625
        %v540 = vmul.f32 %v522, 0.0625
        %v541 = vmul.f32 %v524, 0.0625
        %v542 = vmul.f32 %v535, 0.25
        %v543 = vmul.f32 %v520, 0.25
        %v544 = vmul.f32 %v522, 0.25
        %v545 = vmul.f32 %v524, 0.25
        %v546 = vmul.f32 %v537, 0.25
        %v552 = vrot.slane %v542, 1
        %v553 = vrot.slane %v543, 1
        %v554 = vsel %vm264, %v552, %v553
        %v555 = vrot.slane %v544, 1
        %v556 = vsel %vm264, %v553, %v555
        %v557 = vrot.slane %v545, 1
        %v558 = vsel %vm264, %v555, %v557
        %v559 = vrot.slane %v546, 1
        %v560 = vsel %vm264, %v557, %v559
        %v565 = vadd.f32 %v538, %v554
        %v566 = vadd.f32 %v539, %v556
        %v567 = vadd.f32 %v540, %v558
        %v568 = vadd.f32 %v541, %v560
        %v569 = vmul.f32 %v535, 0.375
        %v570 = vmul.f32 %v520, 0.375
        %v571 = vmul.f32 %v522, 0.375
        %v572 = vmul.f32 %v524, 0.375
        %v573 = vmul.f32 %v537, 0.375
        %v579 = vrot.slane %v569, 2
        %v580 = vrot.slane %v570, 2
        %v581 = vsel %vm292, %v579, %v580
        %v582 = vrot.slane %v571, 2
        %v583 = vsel %vm292, %v580, %v582
        %v584 = vrot.slane %v572, 2
        %v585 = vsel %vm292, %v582, %v584
        %v586 = vrot.slane %v573, 2
        %v587 = vsel %vm292, %v584, %v586
        %v592 = vadd.f32 %v565, %v581
        %v593 = vadd.f32 %v566, %v583
        %v594 = vadd.f32 %v567, %v585
        %v595 = vadd.f32 %v568, %v587
        %v596 = vrot.slane %v542, 3
        %v597 = vrot.slane %v543, 3
        %v598 = vsel %vm310, %v596, %v597
        %v599 = vrot.slane %v544, 3
        %v600 = vsel %vm310, %v597, %v599
        %v601 = vrot.slane %v545, 3
        %v602 = vsel %vm310, %v599, %v601
        %v603 = vrot.slane %v546, 3
        %v604 = vsel %vm310, %v601, %v603
        %v609 = vadd.f32 %v592, %v598
        %v610 = vadd.f32 %v593, %v600
        %v611 = vadd.f32 %v594, %v602
        %v612 = vadd.f32 %v595, %v604
        %v613 = vmul.f32 %v537, 0.0625
        %v619 = vrot.slane %v538, 4
        %v620 = vrot.slane %v539, 4
        %v621 = vsel %vm334, %v619, %v620
        %v622 = vrot.slane %v540, 4
        %v623 = vsel %vm334, %v620, %v622
        %v624 = vrot.slane %v541, 4
        %v625 = vsel %vm334, %v622, %v624
        %v626 = vrot.slane %v613, 4
        %v627 = vsel %vm334, %v624, %v626
        %v632 = vadd.f32 %v609, %v621
        %v633 = vadd.f32 %v610, %v623
        %v634 = vadd.f32 %v611, %v625
        %v635 = vadd.f32 %v612, %v627
        %640 = vrot.lane.b32.xlu0 %v632, 126
        %v641 = vpop.permute.xlu0 %640
        %642 = vrot.lane.b32.xlu0 %v633, 126
        %v643 = vpop.permute.xlu0 %642
        %644 = vrot.lane.b32.xlu0 %v634, 126
        %v645 = vpop.permute.xlu0 %644
        %646 = vrot.lane.b32.xlu0 %v635, 126
        %v647 = vpop.permute.xlu0 %646
        %652 = vrot.lane.b32.xlu0 %v632, 2
        %v653 = vpop.permute.xlu0 %652
        %654 = vrot.lane.b32.xlu0 %v633, 2
        %v655 = vpop.permute.xlu0 %654
        %656 = vrot.lane.b32.xlu0 %v634, 2
        %v657 = vpop.permute.xlu0 %656
        %658 = vrot.lane.b32.xlu0 %v635, 2
        %v659 = vpop.permute.xlu0 %658
        %664 = vrot.lane.b32.xlu0 %v632, 4
        %v665 = vpop.permute.xlu0 %664
        %666 = vrot.lane.b32.xlu0 %v633, 4
        %v667 = vpop.permute.xlu0 %666
        %668 = vrot.lane.b32.xlu0 %v634, 4
        %v669 = vpop.permute.xlu0 %668
        %670 = vrot.lane.b32.xlu0 %v635, 4
        %v671 = vpop.permute.xlu0 %670
        %676 = vrot.lane.b32.xlu0 %v632, 6
        %v677 = vpop.permute.xlu0 %676
        %678 = vrot.lane.b32.xlu0 %v633, 6
        %v679 = vpop.permute.xlu0 %678
        %680 = vrot.lane.b32.xlu0 %v634, 6
        %v681 = vpop.permute.xlu0 %680
        %682 = vrot.lane.b32.xlu0 %v635, 6
        %v683 = vpop.permute.xlu0 %682
        %v688 = vsel %vm404, %v641, %v632
        %v689 = vsel %vm404, %v643, %v633
        %v690 = vsel %vm404, %v645, %v634
        %v691 = vsel %vm404, %v647, %v635
        %v692 = vsel %vm409, %v688, %v653
        %v693 = vsel %vm409, %v689, %v655
        %v694 = vsel %vm409, %v690, %v657
        %v695 = vsel %vm409, %v691, %v659
        %v696 = vsel %vm414, %v692, %v665
        %v697 = vsel %vm414, %v693, %v667
        %v698 = vsel %vm414, %v694, %v669
        %v699 = vsel %vm414, %v695, %v671
        %v700 = vsel %vm419, %v696, %v677
        %v701 = vsel %vm419, %v697, %v679
        %v702 = vsel %vm419, %v698, %v681
        %v703 = vsel %vm419, %v699, %v683
        %v704 = vmul.f32 %v700, 0.0625
        %v705 = vmul.f32 %v701, 0.0625
        %v706 = vmul.f32 %v702, 0.0625
        %v707 = vmul.f32 %v703, 0.0625
        %v708 = vmul.f32 %v700, 0.25
        %v709 = vmul.f32 %v701, 0.25
        %v710 = vmul.f32 %v702, 0.25
        %v711 = vmul.f32 %v703, 0.25
        %716 = vrot.lane.b32.xlu0 %v708, 127
        %v717 = vpop.permute.xlu0 %716
        %718 = vrot.lane.b32.xlu0 %v709, 127
        %v719 = vpop.permute.xlu0 %718
        %720 = vrot.lane.b32.xlu0 %v710, 127
        %v721 = vpop.permute.xlu0 %720
        %722 = vrot.lane.b32.xlu0 %v711, 127
        %v723 = vpop.permute.xlu0 %722
        %v728 = vadd.f32 %v704, %v717
        %v729 = vadd.f32 %v705, %v719
        %v730 = vadd.f32 %v706, %v721
        %v731 = vadd.f32 %v707, %v723
        %v732 = vmul.f32 %v700, 0.375
        %v733 = vmul.f32 %v701, 0.375
        %v734 = vmul.f32 %v702, 0.375
        %v735 = vmul.f32 %v703, 0.375
        %740 = vrot.lane.b32.xlu0 %v732, 126
        %v741 = vpop.permute.xlu0 %740
        %742 = vrot.lane.b32.xlu0 %v733, 126
        %v743 = vpop.permute.xlu0 %742
        %744 = vrot.lane.b32.xlu0 %v734, 126
        %v745 = vpop.permute.xlu0 %744
        %746 = vrot.lane.b32.xlu0 %v735, 126
        %v747 = vpop.permute.xlu0 %746
        %v752 = vadd.f32 %v728, %v741
        %v753 = vadd.f32 %v729, %v743
        %v754 = vadd.f32 %v730, %v745
        %v755 = vadd.f32 %v731, %v747
        %756 = vrot.lane.b32.xlu0 %v708, 125
        %v757 = vpop.permute.xlu0 %756
        %758 = vrot.lane.b32.xlu0 %v709, 125
        %v759 = vpop.permute.xlu0 %758
        %760 = vrot.lane.b32.xlu0 %v710, 125
        %v761 = vpop.permute.xlu0 %760
        %762 = vrot.lane.b32.xlu0 %v711, 125
        %v763 = vpop.permute.xlu0 %762
        %v768 = vadd.f32 %v752, %v757
        %v769 = vadd.f32 %v753, %v759
        %v770 = vadd.f32 %v754, %v761
        %v771 = vadd.f32 %v755, %v763
        %776 = vrot.lane.b32.xlu0 %v704, 124
        %v777 = vpop.permute.xlu0 %776
        %778 = vrot.lane.b32.xlu0 %v705, 124
        %v779 = vpop.permute.xlu0 %778
        %780 = vrot.lane.b32.xlu0 %v706, 124
        %v781 = vpop.permute.xlu0 %780
        %782 = vrot.lane.b32.xlu0 %v707, 124
        %v783 = vpop.permute.xlu0 %782
        %v788 = vadd.f32 %v768, %v777
        %v789 = vadd.f32 %v769, %v779
        %v790 = vadd.f32 %v770, %v781
        %v791 = vadd.f32 %v771, %v783
        %v792 = vand.u32 %v215, 1
        %v793 = vand.u32 %v216, 1
        %v794 = vand.u32 %v217, 1
        %v795 = vand.u32 %v218, 1
        %v796 = vand.u32 %v220, 1
        %v797 = vor.u32 %v792, %v796
        %v798 = vor.u32 %v793, %v796
        %v799 = vor.u32 %v794, %v796
        %v800 = vor.u32 %v795, %v796
        %vm801 = vcmp.eq.s32.totalorder %v797, 0
        %vm802 = vcmp.eq.s32.totalorder %v798, 0
        %vm803 = vcmp.eq.s32.totalorder %v799, 0
        %vm804 = vcmp.eq.s32.totalorder %v800, 0
        %v805 = vsel %vm801, 1, 0
        %v806 = vsel %vm802, 1, 0
        %v807 = vsel %vm803, 1, 0
        %v808 = vsel %vm804, 1, 0
        %v809 = vcvt.s32.f32 %v805
        %v810 = vcvt.s32.f32 %v806
        %v811 = vcvt.s32.f32 %v807
        %v812 = vcvt.s32.f32 %v808
        %v813 = vmul.f32 %v508, %v809
        %v814 = vmul.f32 %v509, %v810
        %v815 = vmul.f32 %v510, %v811
        %v816 = vmul.f32 %v511, %v812
        %v817 = vmul.f32 %v788, %v809
        %v818 = vmul.f32 %v789, %v810
        %v819 = vmul.f32 %v790, %v811
        %v820 = vmul.f32 %v791, %v812
        %v822 = vrot.slane %v813, 2
        %v827 = vrot.slane %v813, 6
        %v828 = vrot.slane %v814, 6
        %v829 = vsel %vm227, %v827, %v828
        %v830 = vrot.slane %v815, 6
        %v831 = vsel %vm227, %v828, %v830
        %v832 = vrot.slane %v816, 6
        %v833 = vsel %vm227, %v830, %v832
        %v839 = vrot.slane %v816, 4
        %v841 = vrot.slane %v816, 2
        %v843 = vsel %vm244, %v822, %v813
        %v844 = vsel %vm227, %v843, %v827
        %v845 = vsel %vm227, %v832, %v839
        %v846 = vsel %vm248, %v845, %v841
        %v847 = vmul.f32 %v844, 0.125
        %v848 = vmul.f32 %v829, 0.125
        %v849 = vmul.f32 %v831, 0.125
        %v850 = vmul.f32 %v833, 0.125
        %v851 = vmul.f32 %v844, 0.5
        %v852 = vmul.f32 %v829, 0.5
        %v853 = vmul.f32 %v831, 0.5
        %v854 = vmul.f32 %v833, 0.5
        %v855 = vmul.f32 %v846, 0.5
        %v861 = vrot.slane %v851, 1
        %v862 = vrot.slane %v852, 1
        %v863 = vsel %vm264, %v861, %v862
        %v864 = vrot.slane %v853, 1
        %v865 = vsel %vm264, %v862, %v864
        %v866 = vrot.slane %v854, 1
        %v867 = vsel %vm264, %v864, %v866
        %v868 = vrot.slane %v855, 1
        %v869 = vsel %vm264, %v866, %v868
        %v874 = vadd.f32 %v847, %v863
        %v875 = vadd.f32 %v848, %v865
        %v876 = vadd.f32 %v849, %v867
        %v877 = vadd.f32 %v850, %v869
        %v878 = vmul.f32 %v844, 0.75
        %v879 = vmul.f32 %v829, 0.75
        %v880 = vmul.f32 %v831, 0.75
        %v881 = vmul.f32 %v833, 0.75
        %v882 = vmul.f32 %v846, 0.75
        %v888 = vrot.slane %v878, 2
        %v889 = vrot.slane %v879, 2
        %v890 = vsel %vm292, %v888, %v889
        %v891 = vrot.slane %v880, 2
        %v892 = vsel %vm292, %v889, %v891
        %v893 = vrot.slane %v881, 2
        %v894 = vsel %vm292, %v891, %v893
        %v895 = vrot.slane %v882, 2
        %v896 = vsel %vm292, %v893, %v895
        %v901 = vadd.f32 %v874, %v890
        %v902 = vadd.f32 %v875, %v892
        %v903 = vadd.f32 %v876, %v894
        %v904 = vadd.f32 %v877, %v896
        %v905 = vrot.slane %v851, 3
        %v906 = vrot.slane %v852, 3
        %v907 = vsel %vm310, %v905, %v906
        %v908 = vrot.slane %v853, 3
        %v909 = vsel %vm310, %v906, %v908
        %v910 = vrot.slane %v854, 3
        %v911 = vsel %vm310, %v908, %v910
        %v912 = vrot.slane %v855, 3
        %v913 = vsel %vm310, %v910, %v912
        %v918 = vadd.f32 %v901, %v907
        %v919 = vadd.f32 %v902, %v909
        %v920 = vadd.f32 %v903, %v911
        %v921 = vadd.f32 %v904, %v913
        %v922 = vmul.f32 %v846, 0.125
        %v928 = vrot.slane %v847, 4
        %v929 = vrot.slane %v848, 4
        %v930 = vsel %vm334, %v928, %v929
        %v931 = vrot.slane %v849, 4
        %v932 = vsel %vm334, %v929, %v931
        %v933 = vrot.slane %v850, 4
        %v934 = vsel %vm334, %v931, %v933
        %v935 = vrot.slane %v922, 4
        %v936 = vsel %vm334, %v933, %v935
        %v941 = vadd.f32 %v918, %v930
        %v942 = vadd.f32 %v919, %v932
        %v943 = vadd.f32 %v920, %v934
        %v944 = vadd.f32 %v921, %v936
        %949 = vrot.lane.b32.xlu0 %v941, 126
        %v950 = vpop.permute.xlu0 %949
        %951 = vrot.lane.b32.xlu0 %v942, 126
        %v952 = vpop.permute.xlu0 %951
        %953 = vrot.lane.b32.xlu0 %v943, 126
        %v954 = vpop.permute.xlu0 %953
        %955 = vrot.lane.b32.xlu0 %v944, 126
        %v956 = vpop.permute.xlu0 %955
        %961 = vrot.lane.b32.xlu0 %v941, 2
        %v962 = vpop.permute.xlu0 %961
        %963 = vrot.lane.b32.xlu0 %v942, 2
        %v964 = vpop.permute.xlu0 %963
        %965 = vrot.lane.b32.xlu0 %v943, 2
        %v966 = vpop.permute.xlu0 %965
        %967 = vrot.lane.b32.xlu0 %v944, 2
        %v968 = vpop.permute.xlu0 %967
        %973 = vrot.lane.b32.xlu0 %v941, 4
        %v974 = vpop.permute.xlu0 %973
        %975 = vrot.lane.b32.xlu0 %v942, 4
        %v976 = vpop.permute.xlu0 %975
        %977 = vrot.lane.b32.xlu0 %v943, 4
        %v978 = vpop.permute.xlu0 %977
        %979 = vrot.lane.b32.xlu0 %v944, 4
        %v980 = vpop.permute.xlu0 %979
        %985 = vrot.lane.b32.xlu0 %v941, 6
        %v986 = vpop.permute.xlu0 %985
        %987 = vrot.lane.b32.xlu0 %v942, 6
        %v988 = vpop.permute.xlu0 %987
        %989 = vrot.lane.b32.xlu0 %v943, 6
        %v990 = vpop.permute.xlu0 %989
        %991 = vrot.lane.b32.xlu0 %v944, 6
        %v992 = vpop.permute.xlu0 %991
        %v997 = vsel %vm404, %v950, %v941
        %v998 = vsel %vm404, %v952, %v942
        %v999 = vsel %vm404, %v954, %v943
        %v1000 = vsel %vm404, %v956, %v944
        %v1001 = vsel %vm409, %v997, %v962
        %v1002 = vsel %vm409, %v998, %v964
        %v1003 = vsel %vm409, %v999, %v966
        %v1004 = vsel %vm409, %v1000, %v968
        %v1005 = vsel %vm414, %v1001, %v974
        %v1006 = vsel %vm414, %v1002, %v976
        %v1007 = vsel %vm414, %v1003, %v978
        %v1008 = vsel %vm414, %v1004, %v980
        %v1009 = vsel %vm419, %v1005, %v986
        %v1010 = vsel %vm419, %v1006, %v988
        %v1011 = vsel %vm419, %v1007, %v990
        %v1012 = vsel %vm419, %v1008, %v992
        %v1013 = vmul.f32 %v1009, 0.125
        %v1014 = vmul.f32 %v1010, 0.125
        %v1015 = vmul.f32 %v1011, 0.125
        %v1016 = vmul.f32 %v1012, 0.125
        %v1017 = vmul.f32 %v1009, 0.5
        %v1018 = vmul.f32 %v1010, 0.5
        %v1019 = vmul.f32 %v1011, 0.5
        %v1020 = vmul.f32 %v1012, 0.5
        %1025 = vrot.lane.b32.xlu0 %v1017, 127
        %v1026 = vpop.permute.xlu0 %1025
        %1027 = vrot.lane.b32.xlu0 %v1018, 127
        %v1028 = vpop.permute.xlu0 %1027
        %1029 = vrot.lane.b32.xlu0 %v1019, 127
        %v1030 = vpop.permute.xlu0 %1029
        %1031 = vrot.lane.b32.xlu0 %v1020, 127
        %v1032 = vpop.permute.xlu0 %1031
        %v1037 = vadd.f32 %v1013, %v1026
        %v1038 = vadd.f32 %v1014, %v1028
        %v1039 = vadd.f32 %v1015, %v1030
        %v1040 = vadd.f32 %v1016, %v1032
        %v1041 = vmul.f32 %v1009, 0.75
        %v1042 = vmul.f32 %v1010, 0.75
        %v1043 = vmul.f32 %v1011, 0.75
        %v1044 = vmul.f32 %v1012, 0.75
        %1049 = vrot.lane.b32.xlu0 %v1041, 126
        %v1050 = vpop.permute.xlu0 %1049
        %1051 = vrot.lane.b32.xlu0 %v1042, 126
        %v1052 = vpop.permute.xlu0 %1051
        %1053 = vrot.lane.b32.xlu0 %v1043, 126
        %v1054 = vpop.permute.xlu0 %1053
        %1055 = vrot.lane.b32.xlu0 %v1044, 126
        %v1056 = vpop.permute.xlu0 %1055
        %v1061 = vadd.f32 %v1037, %v1050
        %v1062 = vadd.f32 %v1038, %v1052
        %v1063 = vadd.f32 %v1039, %v1054
        %v1064 = vadd.f32 %v1040, %v1056
        %1065 = vrot.lane.b32.xlu0 %v1017, 125
        %v1066 = vpop.permute.xlu0 %1065
        %1067 = vrot.lane.b32.xlu0 %v1018, 125
        %v1068 = vpop.permute.xlu0 %1067
        %1069 = vrot.lane.b32.xlu0 %v1019, 125
        %v1070 = vpop.permute.xlu0 %1069
        %1071 = vrot.lane.b32.xlu0 %v1020, 125
        %v1072 = vpop.permute.xlu0 %1071
        %v1077 = vadd.f32 %v1061, %v1066
        %v1078 = vadd.f32 %v1062, %v1068
        %v1079 = vadd.f32 %v1063, %v1070
        %v1080 = vadd.f32 %v1064, %v1072
        %1085 = vrot.lane.b32.xlu0 %v1013, 124
        %v1086 = vpop.permute.xlu0 %1085
        %1087 = vrot.lane.b32.xlu0 %v1014, 124
        %v1088 = vpop.permute.xlu0 %1087
        %1089 = vrot.lane.b32.xlu0 %v1015, 124
        %v1090 = vpop.permute.xlu0 %1089
        %1091 = vrot.lane.b32.xlu0 %v1016, 124
        %v1092 = vpop.permute.xlu0 %1091
        %v1097 = vadd.f32 %v1077, %v1086
        %v1098 = vadd.f32 %v1078, %v1088
        %v1099 = vadd.f32 %v1079, %v1090
        %v1100 = vadd.f32 %v1080, %v1092
        %v1102 = vrot.slane %v817, 2
        %v1107 = vrot.slane %v817, 6
        %v1108 = vrot.slane %v818, 6
        %v1109 = vsel %vm227, %v1107, %v1108
        %v1110 = vrot.slane %v819, 6
        %v1111 = vsel %vm227, %v1108, %v1110
        %v1112 = vrot.slane %v820, 6
        %v1113 = vsel %vm227, %v1110, %v1112
        %v1119 = vrot.slane %v820, 4
        %v1121 = vrot.slane %v820, 2
        %v1123 = vsel %vm244, %v1102, %v817
        %v1124 = vsel %vm227, %v1123, %v1107
        %v1125 = vsel %vm227, %v1112, %v1119
        %v1126 = vsel %vm248, %v1125, %v1121
        %v1127 = vmul.f32 %v1124, 0.125
        %v1128 = vmul.f32 %v1109, 0.125
        %v1129 = vmul.f32 %v1111, 0.125
        %v1130 = vmul.f32 %v1113, 0.125
        %v1131 = vmul.f32 %v1124, 0.5
        %v1132 = vmul.f32 %v1109, 0.5
        %v1133 = vmul.f32 %v1111, 0.5
        %v1134 = vmul.f32 %v1113, 0.5
        %v1135 = vmul.f32 %v1126, 0.5
        %v1141 = vrot.slane %v1131, 1
        %v1142 = vrot.slane %v1132, 1
        %v1143 = vsel %vm264, %v1141, %v1142
        %v1144 = vrot.slane %v1133, 1
        %v1145 = vsel %vm264, %v1142, %v1144
        %v1146 = vrot.slane %v1134, 1
        %v1147 = vsel %vm264, %v1144, %v1146
        %v1148 = vrot.slane %v1135, 1
        %v1149 = vsel %vm264, %v1146, %v1148
        %v1154 = vadd.f32 %v1127, %v1143
        %v1155 = vadd.f32 %v1128, %v1145
        %v1156 = vadd.f32 %v1129, %v1147
        %v1157 = vadd.f32 %v1130, %v1149
        %v1158 = vmul.f32 %v1124, 0.75
        %v1159 = vmul.f32 %v1109, 0.75
        %v1160 = vmul.f32 %v1111, 0.75
        %v1161 = vmul.f32 %v1113, 0.75
        %v1162 = vmul.f32 %v1126, 0.75
        %v1168 = vrot.slane %v1158, 2
        %v1169 = vrot.slane %v1159, 2
        %v1170 = vsel %vm292, %v1168, %v1169
        %v1171 = vrot.slane %v1160, 2
        %v1172 = vsel %vm292, %v1169, %v1171
        %v1173 = vrot.slane %v1161, 2
        %v1174 = vsel %vm292, %v1171, %v1173
        %v1175 = vrot.slane %v1162, 2
        %v1176 = vsel %vm292, %v1173, %v1175
        %v1181 = vadd.f32 %v1154, %v1170
        %v1182 = vadd.f32 %v1155, %v1172
        %v1183 = vadd.f32 %v1156, %v1174
        %v1184 = vadd.f32 %v1157, %v1176
        %v1185 = vrot.slane %v1131, 3
        %v1186 = vrot.slane %v1132, 3
        %v1187 = vsel %vm310, %v1185, %v1186
        %v1188 = vrot.slane %v1133, 3
        %v1189 = vsel %vm310, %v1186, %v1188
        %v1190 = vrot.slane %v1134, 3
        %v1191 = vsel %vm310, %v1188, %v1190
        %v1192 = vrot.slane %v1135, 3
        %v1193 = vsel %vm310, %v1190, %v1192
        %v1198 = vadd.f32 %v1181, %v1187
        %v1199 = vadd.f32 %v1182, %v1189
        %v1200 = vadd.f32 %v1183, %v1191
        %v1201 = vadd.f32 %v1184, %v1193
        %v1202 = vmul.f32 %v1126, 0.125
        %v1208 = vrot.slane %v1127, 4
        %v1209 = vrot.slane %v1128, 4
        %v1210 = vsel %vm334, %v1208, %v1209
        %v1211 = vrot.slane %v1129, 4
        %v1212 = vsel %vm334, %v1209, %v1211
        %v1213 = vrot.slane %v1130, 4
        %v1214 = vsel %vm334, %v1211, %v1213
        %v1215 = vrot.slane %v1202, 4
        %v1216 = vsel %vm334, %v1213, %v1215
        %v1221 = vadd.f32 %v1198, %v1210
        %v1222 = vadd.f32 %v1199, %v1212
        %v1223 = vadd.f32 %v1200, %v1214
        %v1224 = vadd.f32 %v1201, %v1216
        %1229 = vrot.lane.b32.xlu0 %v1221, 126
        %v1230 = vpop.permute.xlu0 %1229
        %1231 = vrot.lane.b32.xlu0 %v1222, 126
        %v1232 = vpop.permute.xlu0 %1231
        %1233 = vrot.lane.b32.xlu0 %v1223, 126
        %v1234 = vpop.permute.xlu0 %1233
        %1235 = vrot.lane.b32.xlu0 %v1224, 126
        %v1236 = vpop.permute.xlu0 %1235
        %1241 = vrot.lane.b32.xlu0 %v1221, 2
        %v1242 = vpop.permute.xlu0 %1241
        %1243 = vrot.lane.b32.xlu0 %v1222, 2
        %v1244 = vpop.permute.xlu0 %1243
        %1245 = vrot.lane.b32.xlu0 %v1223, 2
        %v1246 = vpop.permute.xlu0 %1245
        %1247 = vrot.lane.b32.xlu0 %v1224, 2
        %v1248 = vpop.permute.xlu0 %1247
        %1253 = vrot.lane.b32.xlu0 %v1221, 4
        %v1254 = vpop.permute.xlu0 %1253
        %1255 = vrot.lane.b32.xlu0 %v1222, 4
        %v1256 = vpop.permute.xlu0 %1255
        %1257 = vrot.lane.b32.xlu0 %v1223, 4
        %v1258 = vpop.permute.xlu0 %1257
        %1259 = vrot.lane.b32.xlu0 %v1224, 4
        %v1260 = vpop.permute.xlu0 %1259
        %1265 = vrot.lane.b32.xlu0 %v1221, 6
        %v1266 = vpop.permute.xlu0 %1265
        %1267 = vrot.lane.b32.xlu0 %v1222, 6
        %v1268 = vpop.permute.xlu0 %1267
        %1269 = vrot.lane.b32.xlu0 %v1223, 6
        %v1270 = vpop.permute.xlu0 %1269
        %1271 = vrot.lane.b32.xlu0 %v1224, 6
        %v1272 = vpop.permute.xlu0 %1271
        %v1277 = vsel %vm404, %v1230, %v1221
        %v1278 = vsel %vm404, %v1232, %v1222
        %v1279 = vsel %vm404, %v1234, %v1223
        %v1280 = vsel %vm404, %v1236, %v1224
        %v1281 = vsel %vm409, %v1277, %v1242
        %v1282 = vsel %vm409, %v1278, %v1244
        %v1283 = vsel %vm409, %v1279, %v1246
        %v1284 = vsel %vm409, %v1280, %v1248
        %v1285 = vsel %vm414, %v1281, %v1254
        %v1286 = vsel %vm414, %v1282, %v1256
        %v1287 = vsel %vm414, %v1283, %v1258
        %v1288 = vsel %vm414, %v1284, %v1260
        %v1289 = vsel %vm419, %v1285, %v1266
        %v1290 = vsel %vm419, %v1286, %v1268
        %v1291 = vsel %vm419, %v1287, %v1270
        %v1292 = vsel %vm419, %v1288, %v1272
        %v1293 = vmul.f32 %v1289, 0.125
        %v1294 = vmul.f32 %v1290, 0.125
        %v1295 = vmul.f32 %v1291, 0.125
        %v1296 = vmul.f32 %v1292, 0.125
        %v1297 = vmul.f32 %v1289, 0.5
        %v1298 = vmul.f32 %v1290, 0.5
        %v1299 = vmul.f32 %v1291, 0.5
        %v1300 = vmul.f32 %v1292, 0.5
        %1305 = vrot.lane.b32.xlu0 %v1297, 127
        %v1306 = vpop.permute.xlu0 %1305
        %1307 = vrot.lane.b32.xlu0 %v1298, 127
        %v1308 = vpop.permute.xlu0 %1307
        %1309 = vrot.lane.b32.xlu0 %v1299, 127
        %v1310 = vpop.permute.xlu0 %1309
        %1311 = vrot.lane.b32.xlu0 %v1300, 127
        %v1312 = vpop.permute.xlu0 %1311
        %v1317 = vadd.f32 %v1293, %v1306
        %v1318 = vadd.f32 %v1294, %v1308
        %v1319 = vadd.f32 %v1295, %v1310
        %v1320 = vadd.f32 %v1296, %v1312
        %v1321 = vmul.f32 %v1289, 0.75
        %v1322 = vmul.f32 %v1290, 0.75
        %v1323 = vmul.f32 %v1291, 0.75
        %v1324 = vmul.f32 %v1292, 0.75
        %1329 = vrot.lane.b32.xlu0 %v1321, 126
        %v1330 = vpop.permute.xlu0 %1329
        %1331 = vrot.lane.b32.xlu0 %v1322, 126
        %v1332 = vpop.permute.xlu0 %1331
        %1333 = vrot.lane.b32.xlu0 %v1323, 126
        %v1334 = vpop.permute.xlu0 %1333
        %1335 = vrot.lane.b32.xlu0 %v1324, 126
        %v1336 = vpop.permute.xlu0 %1335
        %v1341 = vadd.f32 %v1317, %v1330
        %v1342 = vadd.f32 %v1318, %v1332
        %v1343 = vadd.f32 %v1319, %v1334
        %v1344 = vadd.f32 %v1320, %v1336
        %1345 = vrot.lane.b32.xlu0 %v1297, 125
        %v1346 = vpop.permute.xlu0 %1345
        %1347 = vrot.lane.b32.xlu0 %v1298, 125
        %v1348 = vpop.permute.xlu0 %1347
        %1349 = vrot.lane.b32.xlu0 %v1299, 125
        %v1350 = vpop.permute.xlu0 %1349
        %1351 = vrot.lane.b32.xlu0 %v1300, 125
        %v1352 = vpop.permute.xlu0 %1351
        %v1357 = vadd.f32 %v1341, %v1346
        %v1358 = vadd.f32 %v1342, %v1348
        %v1359 = vadd.f32 %v1343, %v1350
        %v1360 = vadd.f32 %v1344, %v1352
        %1365 = vrot.lane.b32.xlu0 %v1293, 124
        %v1366 = vpop.permute.xlu0 %1365
        %1367 = vrot.lane.b32.xlu0 %v1294, 124
        %v1368 = vpop.permute.xlu0 %1367
        %1369 = vrot.lane.b32.xlu0 %v1295, 124
        %v1370 = vpop.permute.xlu0 %1369
        %1371 = vrot.lane.b32.xlu0 %v1296, 124
        %v1372 = vpop.permute.xlu0 %1371
        %v1377 = vadd.f32 %v1357, %v1366
        %v1378 = vadd.f32 %v1358, %v1368
        %v1379 = vadd.f32 %v1359, %v1370
        %v1380 = vadd.f32 %v1360, %v1372
        %v1381 = vsub.f32 %v206, %v1097
        %v1382 = vsub.f32 %v207, %v1098
        %v1383 = vsub.f32 %v208, %v1099
        %v1384 = vsub.f32 %v209, %v1100
        %v1385 = vsub.f32 %v210, %v1377
        %v1386 = vsub.f32 %v211, %v1378
        %v1387 = vsub.f32 %v212, %v1379
        %v1388 = vsub.f32 %v213, %v1380
        %v1389 = vsub.f32 %v1381, %v1385
        %v1390 = vsub.f32 %v1382, %v1386
        %v1391 = vsub.f32 %v1383, %v1387
        %v1392 = vsub.f32 %v1384, %v1388
        %v1393 = vand.u32 2147483647, %v1389
        %v1394 = vand.u32 2147483647, %v1390
        %v1395 = vand.u32 2147483647, %v1391
        %v1396 = vand.u32 2147483647, %v1392
        %v1397 = vmul.f32 %v1393, 0.0009765625
        %v1398 = vmul.f32 %v1394, 0.0009765625
        %v1399 = vmul.f32 %v1395, 0.0009765625
        %v1400 = vmul.f32 %v1396, 0.0009765625
        %v1401 = vrot.slane %v813, 4
        %v1403 = vrot.slane %v814, 4
        %v1404 = vsel %vm334, %v1401, %v1403
        %v1405 = vrot.slane %v815, 4
        %v1406 = vsel %vm334, %v1403, %v1405
        %v1407 = vsel %vm334, %v1405, %v839
        %v1411 = vsel %vm227, %v1401, %v813
        %v1412 = vsel %vm334, %v1411, %v1401
        %v1413 = vsel %vm334, %v839, %v816
        %v1414 = vsel %vm292, %v1413, %v839
        %v1415 = vmul.f32 %v1412, 0.0625
        %v1416 = vmul.f32 %v1404, 0.0625
        %v1417 = vmul.f32 %v1406, 0.0625
        %v1418 = vmul.f32 %v1407, 0.0625
        %v1419 = vmul.f32 %v1412, 0.25
        %v1420 = vmul.f32 %v1404, 0.25
        %v1421 = vmul.f32 %v1406, 0.25
        %v1422 = vmul.f32 %v1407, 0.25
        %v1423 = vmul.f32 %v1414, 0.25
        %v1429 = vrot.slane %v1419, 2
        %v1430 = vrot.slane %v1420, 2
        %v1431 = vsel %vm292, %v1429, %v1430
        %v1432 = vrot.slane %v1421, 2
        %v1433 = vsel %vm292, %v1430, %v1432
        %v1434 = vrot.slane %v1422, 2
        %v1435 = vsel %vm292, %v1432, %v1434
        %v1436 = vrot.slane %v1423, 2
        %v1437 = vsel %vm292, %v1434, %v1436
        %v1442 = vadd.f32 %v1415, %v1431
        %v1443 = vadd.f32 %v1416, %v1433
        %v1444 = vadd.f32 %v1417, %v1435
        %v1445 = vadd.f32 %v1418, %v1437
        %v1446 = vmul.f32 %v1412, 0.375
        %v1447 = vmul.f32 %v1404, 0.375
        %v1448 = vmul.f32 %v1406, 0.375
        %v1449 = vmul.f32 %v1407, 0.375
        %v1450 = vmul.f32 %v1414, 0.375
        %v1456 = vrot.slane %v1446, 4
        %v1457 = vrot.slane %v1447, 4
        %v1458 = vsel %vm334, %v1456, %v1457
        %v1459 = vrot.slane %v1448, 4
        %v1460 = vsel %vm334, %v1457, %v1459
        %v1461 = vrot.slane %v1449, 4
        %v1462 = vsel %vm334, %v1459, %v1461
        %v1463 = vrot.slane %v1450, 4
        %v1464 = vsel %vm334, %v1461, %v1463
        %v1469 = vadd.f32 %v1442, %v1458
        %v1470 = vadd.f32 %v1443, %v1460
        %v1471 = vadd.f32 %v1444, %v1462
        %v1472 = vadd.f32 %v1445, %v1464
        %v1473 = vrot.slane %v1419, 6
        %v1474 = vrot.slane %v1420, 6
        %v1475 = vsel %vm227, %v1473, %v1474
        %v1476 = vrot.slane %v1421, 6
        %v1477 = vsel %vm227, %v1474, %v1476
        %v1478 = vrot.slane %v1422, 6
        %v1479 = vsel %vm227, %v1476, %v1478
        %v1480 = vrot.slane %v1423, 6
        %v1481 = vsel %vm227, %v1478, %v1480
        %v1486 = vadd.f32 %v1469, %v1475
        %v1487 = vadd.f32 %v1470, %v1477
        %v1488 = vadd.f32 %v1471, %v1479
        %v1489 = vadd.f32 %v1472, %v1481
        %v1490 = vmul.f32 %v1414, 0.0625
        %v1491 = vadd.f32 %v1486, %v1416
        %v1492 = vadd.f32 %v1487, %v1417
        %v1493 = vadd.f32 %v1488, %v1418
        %v1494 = vadd.f32 %v1489, %v1490
        %1499 = vrot.lane.b32.xlu0 %v1491, 124
        %v1500 = vpop.permute.xlu0 %1499
        %1501 = vrot.lane.b32.xlu0 %v1492, 124
        %v1502 = vpop.permute.xlu0 %1501
        %1503 = vrot.lane.b32.xlu0 %v1493, 124
        %v1504 = vpop.permute.xlu0 %1503
        %1505 = vrot.lane.b32.xlu0 %v1494, 124
        %v1506 = vpop.permute.xlu0 %1505
        %1511 = vrot.lane.b32.xlu0 %v1491, 4
        %v1512 = vpop.permute.xlu0 %1511
        %1513 = vrot.lane.b32.xlu0 %v1492, 4
        %v1514 = vpop.permute.xlu0 %1513
        %1515 = vrot.lane.b32.xlu0 %v1493, 4
        %v1516 = vpop.permute.xlu0 %1515
        %1517 = vrot.lane.b32.xlu0 %v1494, 4
        %v1518 = vpop.permute.xlu0 %1517
        %1523 = vrot.lane.b32.xlu0 %v1491, 8
        %v1524 = vpop.permute.xlu0 %1523
        %1525 = vrot.lane.b32.xlu0 %v1492, 8
        %v1526 = vpop.permute.xlu0 %1525
        %1527 = vrot.lane.b32.xlu0 %v1493, 8
        %v1528 = vpop.permute.xlu0 %1527
        %1529 = vrot.lane.b32.xlu0 %v1494, 8
        %v1530 = vpop.permute.xlu0 %1529
        %1535 = vrot.lane.b32.xlu0 %v1491, 12
        %v1536 = vpop.permute.xlu0 %1535
        %1537 = vrot.lane.b32.xlu0 %v1492, 12
        %v1538 = vpop.permute.xlu0 %1537
        %1539 = vrot.lane.b32.xlu0 %v1493, 12
        %v1540 = vpop.permute.xlu0 %1539
        %1541 = vrot.lane.b32.xlu0 %v1494, 12
        %v1542 = vpop.permute.xlu0 %1541
        %v1547 = vsel %vm409, %v1500, %v1491
        %v1548 = vsel %vm409, %v1502, %v1492
        %v1549 = vsel %vm409, %v1504, %v1493
        %v1550 = vsel %vm409, %v1506, %v1494
        %vm1551 = vcmask 31744
        %v1552 = vsel %vm1551, %v1547, %v1512
        %v1553 = vsel %vm1551, %v1548, %v1514
        %v1554 = vsel %vm1551, %v1549, %v1516
        %v1555 = vsel %vm1551, %v1550, %v1518
        %vm1556 = vcmask 293888
        %v1557 = vsel %vm1556, %v1552, %v1524
        %v1558 = vsel %vm1556, %v1553, %v1526
        %v1559 = vsel %vm1556, %v1554, %v1528
        %v1560 = vsel %vm1556, %v1555, %v1530
        %vm1561 = vcmask 310272
        %v1562 = vsel %vm1561, %v1557, %v1536
        %v1563 = vsel %vm1561, %v1558, %v1538
        %v1564 = vsel %vm1561, %v1559, %v1540
        %v1565 = vsel %vm1561, %v1560, %v1542
        %v1566 = vmul.f32 %v1562, 0.0625
        %v1567 = vmul.f32 %v1563, 0.0625
        %v1568 = vmul.f32 %v1564, 0.0625
        %v1569 = vmul.f32 %v1565, 0.0625
        %v1570 = vmul.f32 %v1562, 0.25
        %v1571 = vmul.f32 %v1563, 0.25
        %v1572 = vmul.f32 %v1564, 0.25
        %v1573 = vmul.f32 %v1565, 0.25
        %1578 = vrot.lane.b32.xlu0 %v1570, 126
        %v1579 = vpop.permute.xlu0 %1578
        %1580 = vrot.lane.b32.xlu0 %v1571, 126
        %v1581 = vpop.permute.xlu0 %1580
        %1582 = vrot.lane.b32.xlu0 %v1572, 126
        %v1583 = vpop.permute.xlu0 %1582
        %1584 = vrot.lane.b32.xlu0 %v1573, 126
        %v1585 = vpop.permute.xlu0 %1584
        %v1590 = vadd.f32 %v1566, %v1579
        %v1591 = vadd.f32 %v1567, %v1581
        %v1592 = vadd.f32 %v1568, %v1583
        %v1593 = vadd.f32 %v1569, %v1585
        %v1594 = vmul.f32 %v1562, 0.375
        %v1595 = vmul.f32 %v1563, 0.375
        %v1596 = vmul.f32 %v1564, 0.375
        %v1597 = vmul.f32 %v1565, 0.375
        %1602 = vrot.lane.b32.xlu0 %v1594, 124
        %v1603 = vpop.permute.xlu0 %1602
        %1604 = vrot.lane.b32.xlu0 %v1595, 124
        %v1605 = vpop.permute.xlu0 %1604
        %1606 = vrot.lane.b32.xlu0 %v1596, 124
        %v1607 = vpop.permute.xlu0 %1606
        %1608 = vrot.lane.b32.xlu0 %v1597, 124
        %v1609 = vpop.permute.xlu0 %1608
        %v1614 = vadd.f32 %v1590, %v1603
        %v1615 = vadd.f32 %v1591, %v1605
        %v1616 = vadd.f32 %v1592, %v1607
        %v1617 = vadd.f32 %v1593, %v1609
        %1618 = vrot.lane.b32.xlu0 %v1570, 122
        %v1619 = vpop.permute.xlu0 %1618
        %1620 = vrot.lane.b32.xlu0 %v1571, 122
        %v1621 = vpop.permute.xlu0 %1620
        %1622 = vrot.lane.b32.xlu0 %v1572, 122
        %v1623 = vpop.permute.xlu0 %1622
        %1624 = vrot.lane.b32.xlu0 %v1573, 122
        %v1625 = vpop.permute.xlu0 %1624
        %v1630 = vadd.f32 %v1614, %v1619
        %v1631 = vadd.f32 %v1615, %v1621
        %v1632 = vadd.f32 %v1616, %v1623
        %v1633 = vadd.f32 %v1617, %v1625
        %1638 = vrot.lane.b32.xlu0 %v1566, 120
        %v1639 = vpop.permute.xlu0 %1638
        %1640 = vrot.lane.b32.xlu0 %v1567, 120
        %v1641 = vpop.permute.xlu0 %1640
        %1642 = vrot.lane.b32.xlu0 %v1568, 120
        %v1643 = vpop.permute.xlu0 %1642
        %1644 = vrot.lane.b32.xlu0 %v1569, 120
        %v1645 = vpop.permute.xlu0 %1644
        %v1650 = vadd.f32 %v1630, %v1639
        %v1651 = vadd.f32 %v1631, %v1641
        %v1652 = vadd.f32 %v1632, %v1643
        %v1653 = vadd.f32 %v1633, %v1645
        %v1654 = vrot.slane %v817, 4
        %v1656 = vrot.slane %v818, 4
        %v1657 = vsel %vm334, %v1654, %v1656
        %v1658 = vrot.slane %v819, 4
        %v1659 = vsel %vm334, %v1656, %v1658
        %v1660 = vsel %vm334, %v1658, %v1119
        %v1664 = vsel %vm227, %v1654, %v817
        %v1665 = vsel %vm334, %v1664, %v1654
        %v1666 = vsel %vm334, %v1119, %v820
        %v1667 = vsel %vm292, %v1666, %v1119
        %v1668 = vmul.f32 %v1665, 0.0625
        %v1669 = vmul.f32 %v1657, 0.0625
        %v1670 = vmul.f32 %v1659, 0.0625
        %v1671 = vmul.f32 %v1660, 0.0625
        %v1672 = vmul.f32 %v1665, 0.25
        %v1673 = vmul.f32 %v1657, 0.25
        %v1674 = vmul.f32 %v1659, 0.25
        %v1675 = vmul.f32 %v1660, 0.25
        %v1676 = vmul.f32 %v1667, 0.25
        %v1682 = vrot.slane %v1672, 2
        %v1683 = vrot.slane %v1673, 2
        %v1684 = vsel %vm292, %v1682, %v1683
        %v1685 = vrot.slane %v1674, 2
        %v1686 = vsel %vm292, %v1683, %v1685
        %v1687 = vrot.slane %v1675, 2
        %v1688 = vsel %vm292, %v1685, %v1687
        %v1689 = vrot.slane %v1676, 2
        %v1690 = vsel %vm292, %v1687, %v1689
        %v1695 = vadd.f32 %v1668, %v1684
        %v1696 = vadd.f32 %v1669, %v1686
        %v1697 = vadd.f32 %v1670, %v1688
        %v1698 = vadd.f32 %v1671, %v1690
        %v1699 = vmul.f32 %v1665, 0.375
        %v1700 = vmul.f32 %v1657, 0.375
        %v1701 = vmul.f32 %v1659, 0.375
        %v1702 = vmul.f32 %v1660, 0.375
        %v1703 = vmul.f32 %v1667, 0.375
        %v1709 = vrot.slane %v1699, 4
        %v1710 = vrot.slane %v1700, 4
        %v1711 = vsel %vm334, %v1709, %v1710
        %v1712 = vrot.slane %v1701, 4
        %v1713 = vsel %vm334, %v1710, %v1712
        %v1714 = vrot.slane %v1702, 4
        %v1715 = vsel %vm334, %v1712, %v1714
        %v1716 = vrot.slane %v1703, 4
        %v1717 = vsel %vm334, %v1714, %v1716
        %v1722 = vadd.f32 %v1695, %v1711
        %v1723 = vadd.f32 %v1696, %v1713
        %v1724 = vadd.f32 %v1697, %v1715
        %v1725 = vadd.f32 %v1698, %v1717
        %v1726 = vrot.slane %v1672, 6
        %v1727 = vrot.slane %v1673, 6
        %v1728 = vsel %vm227, %v1726, %v1727
        %v1729 = vrot.slane %v1674, 6
        %v1730 = vsel %vm227, %v1727, %v1729
        %v1731 = vrot.slane %v1675, 6
        %v1732 = vsel %vm227, %v1729, %v1731
        %v1733 = vrot.slane %v1676, 6
        %v1734 = vsel %vm227, %v1731, %v1733
        %v1739 = vadd.f32 %v1722, %v1728
        %v1740 = vadd.f32 %v1723, %v1730
        %v1741 = vadd.f32 %v1724, %v1732
        %v1742 = vadd.f32 %v1725, %v1734
        %v1743 = vmul.f32 %v1667, 0.0625
        %v1744 = vadd.f32 %v1739, %v1669
        %v1745 = vadd.f32 %v1740, %v1670
        %v1746 = vadd.f32 %v1741, %v1671
        %v1747 = vadd.f32 %v1742, %v1743
        %1752 = vrot.lane.b32.xlu0 %v1744, 124
        %v1753 = vpop.permute.xlu0 %1752
        %1754 = vrot.lane.b32.xlu0 %v1745, 124
        %v1755 = vpop.permute.xlu0 %1754
        %1756 = vrot.lane.b32.xlu0 %v1746, 124
        %v1757 = vpop.permute.xlu0 %1756
        %1758 = vrot.lane.b32.xlu0 %v1747, 124
        %v1759 = vpop.permute.xlu0 %1758
        %1764 = vrot.lane.b32.xlu0 %v1744, 4
        %v1765 = vpop.permute.xlu0 %1764
        %1766 = vrot.lane.b32.xlu0 %v1745, 4
        %v1767 = vpop.permute.xlu0 %1766
        %1768 = vrot.lane.b32.xlu0 %v1746, 4
        %v1769 = vpop.permute.xlu0 %1768
        %1770 = vrot.lane.b32.xlu0 %v1747, 4
        %v1771 = vpop.permute.xlu0 %1770
        %1776 = vrot.lane.b32.xlu0 %v1744, 8
        %v1777 = vpop.permute.xlu0 %1776
        %1778 = vrot.lane.b32.xlu0 %v1745, 8
        %v1779 = vpop.permute.xlu0 %1778
        %1780 = vrot.lane.b32.xlu0 %v1746, 8
        %v1781 = vpop.permute.xlu0 %1780
        %1782 = vrot.lane.b32.xlu0 %v1747, 8
        %v1783 = vpop.permute.xlu0 %1782
        %1788 = vrot.lane.b32.xlu0 %v1744, 12
        %v1789 = vpop.permute.xlu0 %1788
        %1790 = vrot.lane.b32.xlu0 %v1745, 12
        %v1791 = vpop.permute.xlu0 %1790
        %1792 = vrot.lane.b32.xlu0 %v1746, 12
        %v1793 = vpop.permute.xlu0 %1792
        %1794 = vrot.lane.b32.xlu0 %v1747, 12
        %v1795 = vpop.permute.xlu0 %1794
        %v1800 = vsel %vm409, %v1753, %v1744
        %v1801 = vsel %vm409, %v1755, %v1745
        %v1802 = vsel %vm409, %v1757, %v1746
        %v1803 = vsel %vm409, %v1759, %v1747
        %v1804 = vsel %vm1551, %v1800, %v1765
        %v1805 = vsel %vm1551, %v1801, %v1767
        %v1806 = vsel %vm1551, %v1802, %v1769
        %v1807 = vsel %vm1551, %v1803, %v1771
        %v1808 = vsel %vm1556, %v1804, %v1777
        %v1809 = vsel %vm1556, %v1805, %v1779
        %v1810 = vsel %vm1556, %v1806, %v1781
        %v1811 = vsel %vm1556, %v1807, %v1783
        %v1812 = vsel %vm1561, %v1808, %v1789
        %v1813 = vsel %vm1561, %v1809, %v1791
        %v1814 = vsel %vm1561, %v1810, %v1793
        %v1815 = vsel %vm1561, %v1811, %v1795
        %v1816 = vmul.f32 %v1812, 0.0625
        %v1817 = vmul.f32 %v1813, 0.0625
        %v1818 = vmul.f32 %v1814, 0.0625
        %v1819 = vmul.f32 %v1815, 0.0625
        %v1820 = vmul.f32 %v1812, 0.25
        %v1821 = vmul.f32 %v1813, 0.25
        %v1822 = vmul.f32 %v1814, 0.25
        %v1823 = vmul.f32 %v1815, 0.25
        %1828 = vrot.lane.b32.xlu0 %v1820, 126
        %v1829 = vpop.permute.xlu0 %1828
        %1830 = vrot.lane.b32.xlu0 %v1821, 126
        %v1831 = vpop.permute.xlu0 %1830
        %1832 = vrot.lane.b32.xlu0 %v1822, 126
        %v1833 = vpop.permute.xlu0 %1832
        %1834 = vrot.lane.b32.xlu0 %v1823, 126
        %v1835 = vpop.permute.xlu0 %1834
        %v1840 = vadd.f32 %v1816, %v1829
        %v1841 = vadd.f32 %v1817, %v1831
        %v1842 = vadd.f32 %v1818, %v1833
        %v1843 = vadd.f32 %v1819, %v1835
        %v1844 = vmul.f32 %v1812, 0.375
        %v1845 = vmul.f32 %v1813, 0.375
        %v1846 = vmul.f32 %v1814, 0.375
        %v1847 = vmul.f32 %v1815, 0.375
        %1852 = vrot.lane.b32.xlu0 %v1844, 124
        %v1853 = vpop.permute.xlu0 %1852
        %1854 = vrot.lane.b32.xlu0 %v1845, 124
        %v1855 = vpop.permute.xlu0 %1854
        %1856 = vrot.lane.b32.xlu0 %v1846, 124
        %v1857 = vpop.permute.xlu0 %1856
        %1858 = vrot.lane.b32.xlu0 %v1847, 124
        %v1859 = vpop.permute.xlu0 %1858
        %v1864 = vadd.f32 %v1840, %v1853
        %v1865 = vadd.f32 %v1841, %v1855
        %v1866 = vadd.f32 %v1842, %v1857
        %v1867 = vadd.f32 %v1843, %v1859
        %1868 = vrot.lane.b32.xlu0 %v1820, 122
        %v1869 = vpop.permute.xlu0 %1868
        %1870 = vrot.lane.b32.xlu0 %v1821, 122
        %v1871 = vpop.permute.xlu0 %1870
        %1872 = vrot.lane.b32.xlu0 %v1822, 122
        %v1873 = vpop.permute.xlu0 %1872
        %1874 = vrot.lane.b32.xlu0 %v1823, 122
        %v1875 = vpop.permute.xlu0 %1874
        %v1880 = vadd.f32 %v1864, %v1869
        %v1881 = vadd.f32 %v1865, %v1871
        %v1882 = vadd.f32 %v1866, %v1873
        %v1883 = vadd.f32 %v1867, %v1875
        %1888 = vrot.lane.b32.xlu0 %v1816, 120
        %v1889 = vpop.permute.xlu0 %1888
        %1890 = vrot.lane.b32.xlu0 %v1817, 120
        %v1891 = vpop.permute.xlu0 %1890
        %1892 = vrot.lane.b32.xlu0 %v1818, 120
        %v1893 = vpop.permute.xlu0 %1892
        %1894 = vrot.lane.b32.xlu0 %v1819, 120
        %v1895 = vpop.permute.xlu0 %1894
        %v1900 = vadd.f32 %v1880, %v1889
        %v1901 = vadd.f32 %v1881, %v1891
        %v1902 = vadd.f32 %v1882, %v1893
        %v1903 = vadd.f32 %v1883, %v1895
        %v1904 = vand.u32 %v215, 3
        %v1905 = vand.u32 %v216, 3
        %v1906 = vand.u32 %v217, 3
        %v1907 = vand.u32 %v218, 3
        %v1908 = vand.u32 %v220, 3
        %v1909 = vor.u32 %v1904, %v1908
        %v1910 = vor.u32 %v1905, %v1908
        %v1911 = vor.u32 %v1906, %v1908
        %v1912 = vor.u32 %v1907, %v1908
        %vm1913 = vcmp.eq.s32.totalorder %v1909, 0
        %vm1914 = vcmp.eq.s32.totalorder %v1910, 0
        %vm1915 = vcmp.eq.s32.totalorder %v1911, 0
        %vm1916 = vcmp.eq.s32.totalorder %v1912, 0
        %v1917 = vsel %vm1913, 1, 0
        %v1918 = vsel %vm1914, 1, 0
        %v1919 = vsel %vm1915, 1, 0
        %v1920 = vsel %vm1916, 1, 0
        %v1921 = vcvt.s32.f32 %v1917
        %v1922 = vcvt.s32.f32 %v1918
        %v1923 = vcvt.s32.f32 %v1919
        %v1924 = vcvt.s32.f32 %v1920
        %v1925 = vmul.f32 %v1650, %v1921
        %v1926 = vmul.f32 %v1651, %v1922
        %v1927 = vmul.f32 %v1652, %v1923
        %v1928 = vmul.f32 %v1653, %v1924
        %v1929 = vmul.f32 %v1900, %v1921
        %v1930 = vmul.f32 %v1901, %v1922
        %v1931 = vmul.f32 %v1902, %v1923
        %v1932 = vmul.f32 %v1903, %v1924
        %v1934 = vrot.slane %v1925, 4
        %v1939 = vrot.slane %v1926, 4
        %v1940 = vsel %vm334, %v1934, %v1939
        %v1941 = vrot.slane %v1927, 4
        %v1942 = vsel %vm334, %v1939, %v1941
        %v1943 = vrot.slane %v1928, 4
        %v1944 = vsel %vm334, %v1941, %v1943
        %v1949 = vsel %vm227, %v1934, %v1925
        %v1950 = vsel %vm334, %v1949, %v1934
        %v1951 = vsel %vm334, %v1943, %v1928
        %v1952 = vsel %vm292, %v1951, %v1943
        %v1953 = vmul.f32 %v1950, 0.125
        %v1954 = vmul.f32 %v1940, 0.125
        %v1955 = vmul.f32 %v1942, 0.125
        %v1956 = vmul.f32 %v1944, 0.125
        %v1957 = vmul.f32 %v1950, 0.5
        %v1958 = vmul.f32 %v1940, 0.5
        %v1959 = vmul.f32 %v1942, 0.5
        %v1960 = vmul.f32 %v1944, 0.5
        %v1961 = vmul.f32 %v1952, 0.5
        %v1967 = vrot.slane %v1957, 2
        %v1968 = vrot.slane %v1958, 2
        %v1969 = vsel %vm292, %v1967, %v1968
        %v1970 = vrot.slane %v1959, 2
        %v1971 = vsel %vm292, %v1968, %v1970
        %v1972 = vrot.slane %v1960, 2
        %v1973 = vsel %vm292, %v1970, %v1972
        %v1974 = vrot.slane %v1961, 2
        %v1975 = vsel %vm292, %v1972, %v1974
        %v1980 = vadd.f32 %v1953, %v1969
        %v1981 = vadd.f32 %v1954, %v1971
        %v1982 = vadd.f32 %v1955, %v1973
        %v1983 = vadd.f32 %v1956, %v1975
        %v1984 = vmul.f32 %v1950, 0.75
        %v1985 = vmul.f32 %v1940, 0.75
        %v1986 = vmul.f32 %v1942, 0.75
        %v1987 = vmul.f32 %v1944, 0.75
        %v1988 = vmul.f32 %v1952, 0.75
        %v1994 = vrot.slane %v1984, 4
        %v1995 = vrot.slane %v1985, 4
        %v1996 = vsel %vm334, %v1994, %v1995
        %v1997 = vrot.slane %v1986, 4
        %v1998 = vsel %vm334, %v1995, %v1997
        %v1999 = vrot.slane %v1987, 4
        %v2000 = vsel %vm334, %v1997, %v1999
        %v2001 = vrot.slane %v1988, 4
        %v2002 = vsel %vm334, %v1999, %v2001
        %v2007 = vadd.f32 %v1980, %v1996
        %v2008 = vadd.f32 %v1981, %v1998
        %v2009 = vadd.f32 %v1982, %v2000
        %v2010 = vadd.f32 %v1983, %v2002
        %v2011 = vrot.slane %v1957, 6
        %v2012 = vrot.slane %v1958, 6
        %v2013 = vsel %vm227, %v2011, %v2012
        %v2014 = vrot.slane %v1959, 6
        %v2015 = vsel %vm227, %v2012, %v2014
        %v2016 = vrot.slane %v1960, 6
        %v2017 = vsel %vm227, %v2014, %v2016
        %v2018 = vrot.slane %v1961, 6
        %v2019 = vsel %vm227, %v2016, %v2018
        %v2024 = vadd.f32 %v2007, %v2013
        %v2025 = vadd.f32 %v2008, %v2015
        %v2026 = vadd.f32 %v2009, %v2017
        %v2027 = vadd.f32 %v2010, %v2019
        %v2028 = vmul.f32 %v1952, 0.125
        %v2029 = vadd.f32 %v2024, %v1954
        %v2030 = vadd.f32 %v2025, %v1955
        %v2031 = vadd.f32 %v2026, %v1956
        %v2032 = vadd.f32 %v2027, %v2028
        %2037 = vrot.lane.b32.xlu0 %v2029, 124
        %v2038 = vpop.permute.xlu0 %2037
        %2039 = vrot.lane.b32.xlu0 %v2030, 124
        %v2040 = vpop.permute.xlu0 %2039
        %2041 = vrot.lane.b32.xlu0 %v2031, 124
        %v2042 = vpop.permute.xlu0 %2041
        %2043 = vrot.lane.b32.xlu0 %v2032, 124
        %v2044 = vpop.permute.xlu0 %2043
        %2049 = vrot.lane.b32.xlu0 %v2029, 4
        %v2050 = vpop.permute.xlu0 %2049
        %2051 = vrot.lane.b32.xlu0 %v2030, 4
        %v2052 = vpop.permute.xlu0 %2051
        %2053 = vrot.lane.b32.xlu0 %v2031, 4
        %v2054 = vpop.permute.xlu0 %2053
        %2055 = vrot.lane.b32.xlu0 %v2032, 4
        %v2056 = vpop.permute.xlu0 %2055
        %2061 = vrot.lane.b32.xlu0 %v2029, 8
        %v2062 = vpop.permute.xlu0 %2061
        %2063 = vrot.lane.b32.xlu0 %v2030, 8
        %v2064 = vpop.permute.xlu0 %2063
        %2065 = vrot.lane.b32.xlu0 %v2031, 8
        %v2066 = vpop.permute.xlu0 %2065
        %2067 = vrot.lane.b32.xlu0 %v2032, 8
        %v2068 = vpop.permute.xlu0 %2067
        %2073 = vrot.lane.b32.xlu0 %v2029, 12
        %v2074 = vpop.permute.xlu0 %2073
        %2075 = vrot.lane.b32.xlu0 %v2030, 12
        %v2076 = vpop.permute.xlu0 %2075
        %2077 = vrot.lane.b32.xlu0 %v2031, 12
        %v2078 = vpop.permute.xlu0 %2077
        %2079 = vrot.lane.b32.xlu0 %v2032, 12
        %v2080 = vpop.permute.xlu0 %2079
        %v2085 = vsel %vm409, %v2038, %v2029
        %v2086 = vsel %vm409, %v2040, %v2030
        %v2087 = vsel %vm409, %v2042, %v2031
        %v2088 = vsel %vm409, %v2044, %v2032
        %v2089 = vsel %vm1551, %v2085, %v2050
        %v2090 = vsel %vm1551, %v2086, %v2052
        %v2091 = vsel %vm1551, %v2087, %v2054
        %v2092 = vsel %vm1551, %v2088, %v2056
        %v2093 = vsel %vm1556, %v2089, %v2062
        %v2094 = vsel %vm1556, %v2090, %v2064
        %v2095 = vsel %vm1556, %v2091, %v2066
        %v2096 = vsel %vm1556, %v2092, %v2068
        %v2097 = vsel %vm1561, %v2093, %v2074
        %v2098 = vsel %vm1561, %v2094, %v2076
        %v2099 = vsel %vm1561, %v2095, %v2078
        %v2100 = vsel %vm1561, %v2096, %v2080
        %v2101 = vmul.f32 %v2097, 0.125
        %v2102 = vmul.f32 %v2098, 0.125
        %v2103 = vmul.f32 %v2099, 0.125
        %v2104 = vmul.f32 %v2100, 0.125
        %v2105 = vmul.f32 %v2097, 0.5
        %v2106 = vmul.f32 %v2098, 0.5
        %v2107 = vmul.f32 %v2099, 0.5
        %v2108 = vmul.f32 %v2100, 0.5
        %2113 = vrot.lane.b32.xlu0 %v2105, 126
        %v2114 = vpop.permute.xlu0 %2113
        %2115 = vrot.lane.b32.xlu0 %v2106, 126
        %v2116 = vpop.permute.xlu0 %2115
        %2117 = vrot.lane.b32.xlu0 %v2107, 126
        %v2118 = vpop.permute.xlu0 %2117
        %2119 = vrot.lane.b32.xlu0 %v2108, 126
        %v2120 = vpop.permute.xlu0 %2119
        %v2125 = vadd.f32 %v2101, %v2114
        %v2126 = vadd.f32 %v2102, %v2116
        %v2127 = vadd.f32 %v2103, %v2118
        %v2128 = vadd.f32 %v2104, %v2120
        %v2129 = vmul.f32 %v2097, 0.75
        %v2130 = vmul.f32 %v2098, 0.75
        %v2131 = vmul.f32 %v2099, 0.75
        %v2132 = vmul.f32 %v2100, 0.75
        %2137 = vrot.lane.b32.xlu0 %v2129, 124
        %v2138 = vpop.permute.xlu0 %2137
        %2139 = vrot.lane.b32.xlu0 %v2130, 124
        %v2140 = vpop.permute.xlu0 %2139
        %2141 = vrot.lane.b32.xlu0 %v2131, 124
        %v2142 = vpop.permute.xlu0 %2141
        %2143 = vrot.lane.b32.xlu0 %v2132, 124
        %v2144 = vpop.permute.xlu0 %2143
        %v2149 = vadd.f32 %v2125, %v2138
        %v2150 = vadd.f32 %v2126, %v2140
        %v2151 = vadd.f32 %v2127, %v2142
        %v2152 = vadd.f32 %v2128, %v2144
        %2153 = vrot.lane.b32.xlu0 %v2105, 122
        %v2154 = vpop.permute.xlu0 %2153
        %2155 = vrot.lane.b32.xlu0 %v2106, 122
        %v2156 = vpop.permute.xlu0 %2155
        %2157 = vrot.lane.b32.xlu0 %v2107, 122
        %v2158 = vpop.permute.xlu0 %2157
        %2159 = vrot.lane.b32.xlu0 %v2108, 122
        %v2160 = vpop.permute.xlu0 %2159
        %v2165 = vadd.f32 %v2149, %v2154
        %v2166 = vadd.f32 %v2150, %v2156
        %v2167 = vadd.f32 %v2151, %v2158
        %v2168 = vadd.f32 %v2152, %v2160
        %2173 = vrot.lane.b32.xlu0 %v2101, 120
        %v2174 = vpop.permute.xlu0 %2173
        %2175 = vrot.lane.b32.xlu0 %v2102, 120
        %v2176 = vpop.permute.xlu0 %2175
        %2177 = vrot.lane.b32.xlu0 %v2103, 120
        %v2178 = vpop.permute.xlu0 %2177
        %2179 = vrot.lane.b32.xlu0 %v2104, 120
        %v2180 = vpop.permute.xlu0 %2179
        %v2185 = vadd.f32 %v2165, %v2174
        %v2186 = vadd.f32 %v2166, %v2176
        %v2187 = vadd.f32 %v2167, %v2178
        %v2188 = vadd.f32 %v2168, %v2180
        %v2190 = vrot.slane %v1929, 4
        %v2195 = vrot.slane %v1930, 4
        %v2196 = vsel %vm334, %v2190, %v2195
        %v2197 = vrot.slane %v1931, 4
        %v2198 = vsel %vm334, %v2195, %v2197
        %v2199 = vrot.slane %v1932, 4
        %v2200 = vsel %vm334, %v2197, %v2199
        %v2205 = vsel %vm227, %v2190, %v1929
        %v2206 = vsel %vm334, %v2205, %v2190
        %v2207 = vsel %vm334, %v2199, %v1932
        %v2208 = vsel %vm292, %v2207, %v2199
        %v2209 = vmul.f32 %v2206, 0.125
        %v2210 = vmul.f32 %v2196, 0.125
        %v2211 = vmul.f32 %v2198, 0.125
        %v2212 = vmul.f32 %v2200, 0.125
        %v2213 = vmul.f32 %v2206, 0.5
        %v2214 = vmul.f32 %v2196, 0.5
        %v2215 = vmul.f32 %v2198, 0.5
        %v2216 = vmul.f32 %v2200, 0.5
        %v2217 = vmul.f32 %v2208, 0.5
        %v2223 = vrot.slane %v2213, 2
        %v2224 = vrot.slane %v2214, 2
        %v2225 = vsel %vm292, %v2223, %v2224
        %v2226 = vrot.slane %v2215, 2
        %v2227 = vsel %vm292, %v2224, %v2226
        %v2228 = vrot.slane %v2216, 2
        %v2229 = vsel %vm292, %v2226, %v2228
        %v2230 = vrot.slane %v2217, 2
        %v2231 = vsel %vm292, %v2228, %v2230
        %v2236 = vadd.f32 %v2209, %v2225
        %v2237 = vadd.f32 %v2210, %v2227
        %v2238 = vadd.f32 %v2211, %v2229
        %v2239 = vadd.f32 %v2212, %v2231
        %v2240 = vmul.f32 %v2206, 0.75
        %v2241 = vmul.f32 %v2196, 0.75
        %v2242 = vmul.f32 %v2198, 0.75
        %v2243 = vmul.f32 %v2200, 0.75
        %v2244 = vmul.f32 %v2208, 0.75
        %v2250 = vrot.slane %v2240, 4
        %v2251 = vrot.slane %v2241, 4
        %v2252 = vsel %vm334, %v2250, %v2251
        %v2253 = vrot.slane %v2242, 4
        %v2254 = vsel %vm334, %v2251, %v2253
        %v2255 = vrot.slane %v2243, 4
        %v2256 = vsel %vm334, %v2253, %v2255
        %v2257 = vrot.slane %v2244, 4
        %v2258 = vsel %vm334, %v2255, %v2257
        %v2263 = vadd.f32 %v2236, %v2252
        %v2264 = vadd.f32 %v2237, %v2254
        %v2265 = vadd.f32 %v2238, %v2256
        %v2266 = vadd.f32 %v2239, %v2258
        %v2267 = vrot.slane %v2213, 6
        %v2268 = vrot.slane %v2214, 6
        %v2269 = vsel %vm227, %v2267, %v2268
        %v2270 = vrot.slane %v2215, 6
        %v2271 = vsel %vm227, %v2268, %v2270
        %v2272 = vrot.slane %v2216, 6
        %v2273 = vsel %vm227, %v2270, %v2272
        %v2274 = vrot.slane %v2217, 6
        %v2275 = vsel %vm227, %v2272, %v2274
        %v2280 = vadd.f32 %v2263, %v2269
        %v2281 = vadd.f32 %v2264, %v2271
        %v2282 = vadd.f32 %v2265, %v2273
        %v2283 = vadd.f32 %v2266, %v2275
        %v2284 = vmul.f32 %v2208, 0.125
        %v2285 = vadd.f32 %v2280, %v2210
        %v2286 = vadd.f32 %v2281, %v2211
        %v2287 = vadd.f32 %v2282, %v2212
        %v2288 = vadd.f32 %v2283, %v2284
        %2293 = vrot.lane.b32.xlu0 %v2285, 124
        %v2294 = vpop.permute.xlu0 %2293
        %2295 = vrot.lane.b32.xlu0 %v2286, 124
        %v2296 = vpop.permute.xlu0 %2295
        %2297 = vrot.lane.b32.xlu0 %v2287, 124
        %v2298 = vpop.permute.xlu0 %2297
        %2299 = vrot.lane.b32.xlu0 %v2288, 124
        %v2300 = vpop.permute.xlu0 %2299
        %2305 = vrot.lane.b32.xlu0 %v2285, 4
        %v2306 = vpop.permute.xlu0 %2305
        %2307 = vrot.lane.b32.xlu0 %v2286, 4
        %v2308 = vpop.permute.xlu0 %2307
        %2309 = vrot.lane.b32.xlu0 %v2287, 4
        %v2310 = vpop.permute.xlu0 %2309
        %2311 = vrot.lane.b32.xlu0 %v2288, 4
        %v2312 = vpop.permute.xlu0 %2311
        %2317 = vrot.lane.b32.xlu0 %v2285, 8
        %v2318 = vpop.permute.xlu0 %2317
        %2319 = vrot.lane.b32.xlu0 %v2286, 8
        %v2320 = vpop.permute.xlu0 %2319
        %2321 = vrot.lane.b32.xlu0 %v2287, 8
        %v2322 = vpop.permute.xlu0 %2321
        %2323 = vrot.lane.b32.xlu0 %v2288, 8
        %v2324 = vpop.permute.xlu0 %2323
        %2329 = vrot.lane.b32.xlu0 %v2285, 12
        %v2330 = vpop.permute.xlu0 %2329
        %2331 = vrot.lane.b32.xlu0 %v2286, 12
        %v2332 = vpop.permute.xlu0 %2331
        %2333 = vrot.lane.b32.xlu0 %v2287, 12
        %v2334 = vpop.permute.xlu0 %2333
        %2335 = vrot.lane.b32.xlu0 %v2288, 12
        %v2336 = vpop.permute.xlu0 %2335
        %v2341 = vsel %vm409, %v2294, %v2285
        %v2342 = vsel %vm409, %v2296, %v2286
        %v2343 = vsel %vm409, %v2298, %v2287
        %v2344 = vsel %vm409, %v2300, %v2288
        %v2345 = vsel %vm1551, %v2341, %v2306
        %v2346 = vsel %vm1551, %v2342, %v2308
        %v2347 = vsel %vm1551, %v2343, %v2310
        %v2348 = vsel %vm1551, %v2344, %v2312
        %v2349 = vsel %vm1556, %v2345, %v2318
        %v2350 = vsel %vm1556, %v2346, %v2320
        %v2351 = vsel %vm1556, %v2347, %v2322
        %v2352 = vsel %vm1556, %v2348, %v2324
        %v2353 = vsel %vm1561, %v2349, %v2330
        %v2354 = vsel %vm1561, %v2350, %v2332
        %v2355 = vsel %vm1561, %v2351, %v2334
        %v2356 = vsel %vm1561, %v2352, %v2336
        %v2357 = vmul.f32 %v2353, 0.125
        %v2358 = vmul.f32 %v2354, 0.125
        %v2359 = vmul.f32 %v2355, 0.125
        %v2360 = vmul.f32 %v2356, 0.125
        %v2361 = vmul.f32 %v2353, 0.5
        %v2362 = vmul.f32 %v2354, 0.5
        %v2363 = vmul.f32 %v2355, 0.5
        %v2364 = vmul.f32 %v2356, 0.5
        %2369 = vrot.lane.b32.xlu0 %v2361, 126
        %v2370 = vpop.permute.xlu0 %2369
        %2371 = vrot.lane.b32.xlu0 %v2362, 126
        %v2372 = vpop.permute.xlu0 %2371
        %2373 = vrot.lane.b32.xlu0 %v2363, 126
        %v2374 = vpop.permute.xlu0 %2373
        %2375 = vrot.lane.b32.xlu0 %v2364, 126
        %v2376 = vpop.permute.xlu0 %2375
        %v2381 = vadd.f32 %v2357, %v2370
        %v2382 = vadd.f32 %v2358, %v2372
        %v2383 = vadd.f32 %v2359, %v2374
        %v2384 = vadd.f32 %v2360, %v2376
        %v2385 = vmul.f32 %v2353, 0.75
        %v2386 = vmul.f32 %v2354, 0.75
        %v2387 = vmul.f32 %v2355, 0.75
        %v2388 = vmul.f32 %v2356, 0.75
        %2393 = vrot.lane.b32.xlu0 %v2385, 124
        %v2394 = vpop.permute.xlu0 %2393
        %2395 = vrot.lane.b32.xlu0 %v2386, 124
        %v2396 = vpop.permute.xlu0 %2395
        %2397 = vrot.lane.b32.xlu0 %v2387, 124
        %v2398 = vpop.permute.xlu0 %2397
        %2399 = vrot.lane.b32.xlu0 %v2388, 124
        %v2400 = vpop.permute.xlu0 %2399
        %v2405 = vadd.f32 %v2381, %v2394
        %v2406 = vadd.f32 %v2382, %v2396
        %v2407 = vadd.f32 %v2383, %v2398
        %v2408 = vadd.f32 %v2384, %v2400
        %2409 = vrot.lane.b32.xlu0 %v2361, 122
        %v2410 = vpop.permute.xlu0 %2409
        %2411 = vrot.lane.b32.xlu0 %v2362, 122
        %v2412 = vpop.permute.xlu0 %2411
        %2413 = vrot.lane.b32.xlu0 %v2363, 122
        %v2414 = vpop.permute.xlu0 %2413
        %2415 = vrot.lane.b32.xlu0 %v2364, 122
        %v2416 = vpop.permute.xlu0 %2415
        %v2421 = vadd.f32 %v2405, %v2410
        %v2422 = vadd.f32 %v2406, %v2412
        %v2423 = vadd.f32 %v2407, %v2414
        %v2424 = vadd.f32 %v2408, %v2416
        %2429 = vrot.lane.b32.xlu0 %v2357, 120
        %v2430 = vpop.permute.xlu0 %2429
        %2431 = vrot.lane.b32.xlu0 %v2358, 120
        %v2432 = vpop.permute.xlu0 %2431
        %2433 = vrot.lane.b32.xlu0 %v2359, 120
        %v2434 = vpop.permute.xlu0 %2433
        %2435 = vrot.lane.b32.xlu0 %v2360, 120
        %v2436 = vpop.permute.xlu0 %2435
        %v2441 = vadd.f32 %v2421, %v2430
        %v2442 = vadd.f32 %v2422, %v2432
        %v2443 = vadd.f32 %v2423, %v2434
        %v2444 = vadd.f32 %v2424, %v2436
        %v2445 = vsub.f32 %v813, %v2185
        %v2446 = vsub.f32 %v814, %v2186
        %v2447 = vsub.f32 %v815, %v2187
        %v2448 = vsub.f32 %v816, %v2188
        %v2449 = vsub.f32 %v817, %v2441
        %v2450 = vsub.f32 %v818, %v2442
        %v2451 = vsub.f32 %v819, %v2443
        %v2452 = vsub.f32 %v820, %v2444
        %v2453 = vsub.f32 %v2445, %v2449
        %v2454 = vsub.f32 %v2446, %v2450
        %v2455 = vsub.f32 %v2447, %v2451
        %v2456 = vsub.f32 %v2448, %v2452
        %v2457 = vand.u32 2147483647, %v2453
        %v2458 = vand.u32 2147483647, %v2454
        %v2459 = vand.u32 2147483647, %v2455
        %v2460 = vand.u32 2147483647, %v2456
        %v2461 = vmul.f32 %v809, 0.00390625
        %v2462 = vmul.f32 %v810, 0.00390625
        %v2463 = vmul.f32 %v811, 0.00390625
        %v2464 = vmul.f32 %v812, 0.00390625
        %v2465 = vmul.f32 %v2461, %v2457
        %v2466 = vmul.f32 %v2462, %v2458
        %v2467 = vmul.f32 %v2463, %v2459
        %v2468 = vmul.f32 %v2464, %v2460
        %v2469 = vadd.f32 %v1397, %v2465
        %v2470 = vadd.f32 %v1398, %v2466
        %v2471 = vadd.f32 %v1399, %v2467
        %v2472 = vadd.f32 %v1400, %v2468
        %v2473 = vsel %vm334, %v1926, %v1925
        %v2474 = vsel %vm334, %v1928, %v1927
        %v2475 = vmul.f32 %v2473, 0.0625
        %v2476 = vmul.f32 %v1925, 0.0625
        %v2477 = vmul.f32 %v1926, 0.0625
        %v2478 = vmul.f32 %v1927, 0.0625
        %v2479 = vmul.f32 %v2473, 0.25
        %v2480 = vmul.f32 %v1925, 0.25
        %v2481 = vmul.f32 %v1926, 0.25
        %v2482 = vmul.f32 %v1927, 0.25
        %v2483 = vmul.f32 %v1928, 0.25
        %v2489 = vrot.slane %v2479, 4
        %v2490 = vrot.slane %v2480, 4
        %v2491 = vsel %vm334, %v2489, %v2490
        %v2492 = vrot.slane %v2481, 4
        %v2493 = vsel %vm334, %v2490, %v2492
        %v2494 = vrot.slane %v2482, 4
        %v2495 = vsel %vm334, %v2492, %v2494
        %v2496 = vrot.slane %v2483, 4
        %v2497 = vsel %vm334, %v2494, %v2496
        %v2502 = vadd.f32 %v2475, %v2491
        %v2503 = vadd.f32 %v2476, %v2493
        %v2504 = vadd.f32 %v2477, %v2495
        %v2505 = vadd.f32 %v2478, %v2497
        %v2506 = vmul.f32 %v1925, 0.375
        %v2507 = vmul.f32 %v1926, 0.375
        %v2508 = vmul.f32 %v1927, 0.375
        %v2509 = vmul.f32 %v1928, 0.375
        %v2510 = vadd.f32 %v2502, %v2506
        %v2511 = vadd.f32 %v2503, %v2507
        %v2512 = vadd.f32 %v2504, %v2508
        %v2513 = vadd.f32 %v2505, %v2509
        %v2514 = vmul.f32 %v2474, 0.25
        %v2516 = vrot.slane %v2514, 4
        %v2517 = vsel %vm334, %v2496, %v2516
        %v2519 = vadd.f32 %v2510, %v2493
        %v2520 = vadd.f32 %v2511, %v2495
        %v2521 = vadd.f32 %v2512, %v2497
        %v2522 = vadd.f32 %v2513, %v2517
        %v2523 = vmul.f32 %v1928, 0.0625
        %v2524 = vmul.f32 %v2474, 0.0625
        %v2525 = vadd.f32 %v2519, %v2477
        %v2526 = vadd.f32 %v2520, %v2478
        %v2527 = vadd.f32 %v2521, %v2523
        %v2528 = vadd.f32 %v2522, %v2524
        %2533 = vrot.lane.b32.xlu0 %v2525, 120
        %v2534 = vpop.permute.xlu0 %2533
        %2535 = vrot.lane.b32.xlu0 %v2526, 120
        %v2536 = vpop.permute.xlu0 %2535
        %2537 = vrot.lane.b32.xlu0 %v2527, 120
        %v2538 = vpop.permute.xlu0 %2537
        %2539 = vrot.lane.b32.xlu0 %v2528, 120
        %v2540 = vpop.permute.xlu0 %2539
        %2545 = vrot.lane.b32.xlu0 %v2525, 8
        %v2546 = vpop.permute.xlu0 %2545
        %2547 = vrot.lane.b32.xlu0 %v2526, 8
        %v2548 = vpop.permute.xlu0 %2547
        %2549 = vrot.lane.b32.xlu0 %v2527, 8
        %v2550 = vpop.permute.xlu0 %2549
        %2551 = vrot.lane.b32.xlu0 %v2528, 8
        %v2552 = vpop.permute.xlu0 %2551
        %2557 = vrot.lane.b32.xlu0 %v2525, 16
        %v2558 = vpop.permute.xlu0 %2557
        %2559 = vrot.lane.b32.xlu0 %v2526, 16
        %v2560 = vpop.permute.xlu0 %2559
        %2561 = vrot.lane.b32.xlu0 %v2527, 16
        %v2562 = vpop.permute.xlu0 %2561
        %2563 = vrot.lane.b32.xlu0 %v2528, 16
        %v2564 = vpop.permute.xlu0 %2563
        %2569 = vrot.lane.b32.xlu0 %v2525, 24
        %v2570 = vpop.permute.xlu0 %2569
        %2571 = vrot.lane.b32.xlu0 %v2526, 24
        %v2572 = vpop.permute.xlu0 %2571
        %2573 = vrot.lane.b32.xlu0 %v2527, 24
        %v2574 = vpop.permute.xlu0 %2573
        %2575 = vrot.lane.b32.xlu0 %v2528, 24
        %v2576 = vpop.permute.xlu0 %2575
        %v2581 = vsel %vm1551, %v2534, %v2525
        %v2582 = vsel %vm1551, %v2536, %v2526
        %v2583 = vsel %vm1551, %v2538, %v2527
        %v2584 = vsel %vm1551, %v2540, %v2528
        %vm2585 = vcmask 64512
        %v2586 = vsel %vm2585, %v2581, %v2546
        %v2587 = vsel %vm2585, %v2582, %v2548
        %v2588 = vsel %vm2585, %v2583, %v2550
        %v2589 = vsel %vm2585, %v2584, %v2552
        %vm2590 = vcmask 326656
        %v2591 = vsel %vm2590, %v2586, %v2558
        %v2592 = vsel %vm2590, %v2587, %v2560
        %v2593 = vsel %vm2590, %v2588, %v2562
        %v2594 = vsel %vm2590, %v2589, %v2564
        %vm2595 = vcmask 359424
        %v2596 = vsel %vm2595, %v2591, %v2570
        %v2597 = vsel %vm2595, %v2592, %v2572
        %v2598 = vsel %vm2595, %v2593, %v2574
        %v2599 = vsel %vm2595, %v2594, %v2576
        %v2600 = vmul.f32 %v2596, 0.0625
        %v2601 = vmul.f32 %v2597, 0.0625
        %v2602 = vmul.f32 %v2598, 0.0625
        %v2603 = vmul.f32 %v2599, 0.0625
        %v2604 = vmul.f32 %v2596, 0.25
        %v2605 = vmul.f32 %v2597, 0.25
        %v2606 = vmul.f32 %v2598, 0.25
        %v2607 = vmul.f32 %v2599, 0.25
        %2612 = vrot.lane.b32.xlu0 %v2604, 124
        %v2613 = vpop.permute.xlu0 %2612
        %2614 = vrot.lane.b32.xlu0 %v2605, 124
        %v2615 = vpop.permute.xlu0 %2614
        %2616 = vrot.lane.b32.xlu0 %v2606, 124
        %v2617 = vpop.permute.xlu0 %2616
        %2618 = vrot.lane.b32.xlu0 %v2607, 124
        %v2619 = vpop.permute.xlu0 %2618
        %v2624 = vadd.f32 %v2600, %v2613
        %v2625 = vadd.f32 %v2601, %v2615
        %v2626 = vadd.f32 %v2602, %v2617
        %v2627 = vadd.f32 %v2603, %v2619
        %v2628 = vmul.f32 %v2596, 0.375
        %v2629 = vmul.f32 %v2597, 0.375
        %v2630 = vmul.f32 %v2598, 0.375
        %v2631 = vmul.f32 %v2599, 0.375
        %2636 = vrot.lane.b32.xlu0 %v2628, 120
        %v2637 = vpop.permute.xlu0 %2636
        %2638 = vrot.lane.b32.xlu0 %v2629, 120
        %v2639 = vpop.permute.xlu0 %2638
        %2640 = vrot.lane.b32.xlu0 %v2630, 120
        %v2641 = vpop.permute.xlu0 %2640
        %2642 = vrot.lane.b32.xlu0 %v2631, 120
        %v2643 = vpop.permute.xlu0 %2642
        %v2648 = vadd.f32 %v2624, %v2637
        %v2649 = vadd.f32 %v2625, %v2639
        %v2650 = vadd.f32 %v2626, %v2641
        %v2651 = vadd.f32 %v2627, %v2643
        %2652 = vrot.lane.b32.xlu0 %v2604, 116
        %v2653 = vpop.permute.xlu0 %2652
        %2654 = vrot.lane.b32.xlu0 %v2605, 116
        %v2655 = vpop.permute.xlu0 %2654
        %2656 = vrot.lane.b32.xlu0 %v2606, 116
        %v2657 = vpop.permute.xlu0 %2656
        %2658 = vrot.lane.b32.xlu0 %v2607, 116
        %v2659 = vpop.permute.xlu0 %2658
        %v2664 = vadd.f32 %v2648, %v2653
        %v2665 = vadd.f32 %v2649, %v2655
        %v2666 = vadd.f32 %v2650, %v2657
        %v2667 = vadd.f32 %v2651, %v2659
        %2672 = vrot.lane.b32.xlu0 %v2600, 112
        %v2673 = vpop.permute.xlu0 %2672
        %2674 = vrot.lane.b32.xlu0 %v2601, 112
        %v2675 = vpop.permute.xlu0 %2674
        %2676 = vrot.lane.b32.xlu0 %v2602, 112
        %v2677 = vpop.permute.xlu0 %2676
        %2678 = vrot.lane.b32.xlu0 %v2603, 112
        %v2679 = vpop.permute.xlu0 %2678
        %v2684 = vadd.f32 %v2664, %v2673
        %v2685 = vadd.f32 %v2665, %v2675
        %v2686 = vadd.f32 %v2666, %v2677
        %v2687 = vadd.f32 %v2667, %v2679
        %v2688 = vsel %vm334, %v1930, %v1929
        %v2689 = vsel %vm334, %v1932, %v1931
        %v2690 = vmul.f32 %v2688, 0.0625
        %v2691 = vmul.f32 %v1929, 0.0625
        %v2692 = vmul.f32 %v1930, 0.0625
        %v2693 = vmul.f32 %v1931, 0.0625
        %v2694 = vmul.f32 %v2688, 0.25
        %v2695 = vmul.f32 %v1929, 0.25
        %v2696 = vmul.f32 %v1930, 0.25
        %v2697 = vmul.f32 %v1931, 0.25
        %v2698 = vmul.f32 %v1932, 0.25
        %v2704 = vrot.slane %v2694, 4
        %v2705 = vrot.slane %v2695, 4
        %v2706 = vsel %vm334, %v2704, %v2705
        %v2707 = vrot.slane %v2696, 4
        %v2708 = vsel %vm334, %v2705, %v2707
        %v2709 = vrot.slane %v2697, 4
        %v2710 = vsel %vm334, %v2707, %v2709
        %v2711 = vrot.slane %v2698, 4
        %v2712 = vsel %vm334, %v2709, %v2711
        %v2717 = vadd.f32 %v2690, %v2706
        %v2718 = vadd.f32 %v2691, %v2708
        %v2719 = vadd.f32 %v2692, %v2710
        %v2720 = vadd.f32 %v2693, %v2712
        %v2721 = vmul.f32 %v1929, 0.375
        %v2722 = vmul.f32 %v1930, 0.375
        %v2723 = vmul.f32 %v1931, 0.375
        %v2724 = vmul.f32 %v1932, 0.375
        %v2725 = vadd.f32 %v2717, %v2721
        %v2726 = vadd.f32 %v2718, %v2722
        %v2727 = vadd.f32 %v2719, %v2723
        %v2728 = vadd.f32 %v2720, %v2724
        %v2729 = vmul.f32 %v2689, 0.25
        %v2731 = vrot.slane %v2729, 4
        %v2732 = vsel %vm334, %v2711, %v2731
        %v2734 = vadd.f32 %v2725, %v2708
        %v2735 = vadd.f32 %v2726, %v2710
        %v2736 = vadd.f32 %v2727, %v2712
        %v2737 = vadd.f32 %v2728, %v2732
        %v2738 = vmul.f32 %v1932, 0.0625
        %v2739 = vmul.f32 %v2689, 0.0625
        %v2740 = vadd.f32 %v2734, %v2692
        %v2741 = vadd.f32 %v2735, %v2693
        %v2742 = vadd.f32 %v2736, %v2738
        %v2743 = vadd.f32 %v2737, %v2739
        %2748 = vrot.lane.b32.xlu0 %v2740, 120
        %v2749 = vpop.permute.xlu0 %2748
        %2750 = vrot.lane.b32.xlu0 %v2741, 120
        %v2751 = vpop.permute.xlu0 %2750
        %2752 = vrot.lane.b32.xlu0 %v2742, 120
        %v2753 = vpop.permute.xlu0 %2752
        %2754 = vrot.lane.b32.xlu0 %v2743, 120
        %v2755 = vpop.permute.xlu0 %2754
        %2760 = vrot.lane.b32.xlu0 %v2740, 8
        %v2761 = vpop.permute.xlu0 %2760
        %2762 = vrot.lane.b32.xlu0 %v2741, 8
        %v2763 = vpop.permute.xlu0 %2762
        %2764 = vrot.lane.b32.xlu0 %v2742, 8
        %v2765 = vpop.permute.xlu0 %2764
        %2766 = vrot.lane.b32.xlu0 %v2743, 8
        %v2767 = vpop.permute.xlu0 %2766
        %2772 = vrot.lane.b32.xlu0 %v2740, 16
        %v2773 = vpop.permute.xlu0 %2772
        %2774 = vrot.lane.b32.xlu0 %v2741, 16
        %v2775 = vpop.permute.xlu0 %2774
        %2776 = vrot.lane.b32.xlu0 %v2742, 16
        %v2777 = vpop.permute.xlu0 %2776
        %2778 = vrot.lane.b32.xlu0 %v2743, 16
        %v2779 = vpop.permute.xlu0 %2778
        %2784 = vrot.lane.b32.xlu0 %v2740, 24
        %v2785 = vpop.permute.xlu0 %2784
        %2786 = vrot.lane.b32.xlu0 %v2741, 24
        %v2787 = vpop.permute.xlu0 %2786
        %2788 = vrot.lane.b32.xlu0 %v2742, 24
        %v2789 = vpop.permute.xlu0 %2788
        %2790 = vrot.lane.b32.xlu0 %v2743, 24
        %v2791 = vpop.permute.xlu0 %2790
        %v2796 = vsel %vm1551, %v2749, %v2740
        %v2797 = vsel %vm1551, %v2751, %v2741
        %v2798 = vsel %vm1551, %v2753, %v2742
        %v2799 = vsel %vm1551, %v2755, %v2743
        %v2800 = vsel %vm2585, %v2796, %v2761
        %v2801 = vsel %vm2585, %v2797, %v2763
        %v2802 = vsel %vm2585, %v2798, %v2765
        %v2803 = vsel %vm2585, %v2799, %v2767
        %v2804 = vsel %vm2590, %v2800, %v2773
        %v2805 = vsel %vm2590, %v2801, %v2775
        %v2806 = vsel %vm2590, %v2802, %v2777
        %v2807 = vsel %vm2590, %v2803, %v2779
        %v2808 = vsel %vm2595, %v2804, %v2785
        %v2809 = vsel %vm2595, %v2805, %v2787
        %v2810 = vsel %vm2595, %v2806, %v2789
        %v2811 = vsel %vm2595, %v2807, %v2791
        %v2812 = vmul.f32 %v2808, 0.0625
        %v2813 = vmul.f32 %v2809, 0.0625
        %v2814 = vmul.f32 %v2810, 0.0625
        %v2815 = vmul.f32 %v2811, 0.0625
        %v2816 = vmul.f32 %v2808, 0.25
        %v2817 = vmul.f32 %v2809, 0.25
        %v2818 = vmul.f32 %v2810, 0.25
        %v2819 = vmul.f32 %v2811, 0.25
        %2824 = vrot.lane.b32.xlu0 %v2816, 124
        %v2825 = vpop.permute.xlu0 %2824
        %2826 = vrot.lane.b32.xlu0 %v2817, 124
        %v2827 = vpop.permute.xlu0 %2826
        %2828 = vrot.lane.b32.xlu0 %v2818, 124
        %v2829 = vpop.permute.xlu0 %2828
        %2830 = vrot.lane.b32.xlu0 %v2819, 124
        %v2831 = vpop.permute.xlu0 %2830
        %v2836 = vadd.f32 %v2812, %v2825
        %v2837 = vadd.f32 %v2813, %v2827
        %v2838 = vadd.f32 %v2814, %v2829
        %v2839 = vadd.f32 %v2815, %v2831
        %v2840 = vmul.f32 %v2808, 0.375
        %v2841 = vmul.f32 %v2809, 0.375
        %v2842 = vmul.f32 %v2810, 0.375
        %v2843 = vmul.f32 %v2811, 0.375
        %2848 = vrot.lane.b32.xlu0 %v2840, 120
        %v2849 = vpop.permute.xlu0 %2848
        %2850 = vrot.lane.b32.xlu0 %v2841, 120
        %v2851 = vpop.permute.xlu0 %2850
        %2852 = vrot.lane.b32.xlu0 %v2842, 120
        %v2853 = vpop.permute.xlu0 %2852
        %2854 = vrot.lane.b32.xlu0 %v2843, 120
        %v2855 = vpop.permute.xlu0 %2854
        %v2860 = vadd.f32 %v2836, %v2849
        %v2861 = vadd.f32 %v2837, %v2851
        %v2862 = vadd.f32 %v2838, %v2853
        %v2863 = vadd.f32 %v2839, %v2855
        %2864 = vrot.lane.b32.xlu0 %v2816, 116
        %v2865 = vpop.permute.xlu0 %2864
        %2866 = vrot.lane.b32.xlu0 %v2817, 116
        %v2867 = vpop.permute.xlu0 %2866
        %2868 = vrot.lane.b32.xlu0 %v2818, 116
        %v2869 = vpop.permute.xlu0 %2868
        %2870 = vrot.lane.b32.xlu0 %v2819, 116
        %v2871 = vpop.permute.xlu0 %2870
        %v2876 = vadd.f32 %v2860, %v2865
        %v2877 = vadd.f32 %v2861, %v2867
        %v2878 = vadd.f32 %v2862, %v2869
        %v2879 = vadd.f32 %v2863, %v2871
        %2884 = vrot.lane.b32.xlu0 %v2812, 112
        %v2885 = vpop.permute.xlu0 %2884
        %2886 = vrot.lane.b32.xlu0 %v2813, 112
        %v2887 = vpop.permute.xlu0 %2886
        %2888 = vrot.lane.b32.xlu0 %v2814, 112
        %v2889 = vpop.permute.xlu0 %2888
        %2890 = vrot.lane.b32.xlu0 %v2815, 112
        %v2891 = vpop.permute.xlu0 %2890
        %v2896 = vadd.f32 %v2876, %v2885
        %v2897 = vadd.f32 %v2877, %v2887
        %v2898 = vadd.f32 %v2878, %v2889
        %v2899 = vadd.f32 %v2879, %v2891
        %v2900 = vand.u32 %v215, 7
        %v2901 = vand.u32 %v216, 7
        %v2902 = vand.u32 %v217, 7
        %v2903 = vand.u32 %v218, 7
        %v2904 = vand.u32 %v220, 7
        %v2905 = vor.u32 %v2900, %v2904
        %v2906 = vor.u32 %v2901, %v2904
        %v2907 = vor.u32 %v2902, %v2904
        %v2908 = vor.u32 %v2903, %v2904
        %vm2909 = vcmp.eq.s32.totalorder %v2905, 0
        %vm2910 = vcmp.eq.s32.totalorder %v2906, 0
        %vm2911 = vcmp.eq.s32.totalorder %v2907, 0
        %vm2912 = vcmp.eq.s32.totalorder %v2908, 0
        %v2913 = vsel %vm2909, 1, 0
        %v2914 = vsel %vm2910, 1, 0
        %v2915 = vsel %vm2911, 1, 0
        %v2916 = vsel %vm2912, 1, 0
        %v2917 = vcvt.s32.f32 %v2913
        %v2918 = vcvt.s32.f32 %v2914
        %v2919 = vcvt.s32.f32 %v2915
        %v2920 = vcvt.s32.f32 %v2916
        %v2921 = vmul.f32 %v2684, %v2917
        %v2922 = vmul.f32 %v2685, %v2918
        %v2923 = vmul.f32 %v2686, %v2919
        %v2924 = vmul.f32 %v2687, %v2920
        %v2925 = vmul.f32 %v2896, %v2917
        %v2926 = vmul.f32 %v2897, %v2918
        %v2927 = vmul.f32 %v2898, %v2919
        %v2928 = vmul.f32 %v2899, %v2920
        %v2929 = vsel %vm334, %v2922, %v2921
        %v2930 = vsel %vm334, %v2924, %v2923
        %v2931 = vmul.f32 %v2929, 0.125
        %v2932 = vmul.f32 %v2921, 0.125
        %v2933 = vmul.f32 %v2922, 0.125
        %v2934 = vmul.f32 %v2923, 0.125
        %v2935 = vmul.f32 %v2929, 0.5
        %v2936 = vmul.f32 %v2921, 0.5
        %v2937 = vmul.f32 %v2922, 0.5
        %v2938 = vmul.f32 %v2923, 0.5
        %v2939 = vmul.f32 %v2924, 0.5
        %v2945 = vrot.slane %v2935, 4
        %v2946 = vrot.slane %v2936, 4
        %v2947 = vsel %vm334, %v2945, %v2946
        %v2948 = vrot.slane %v2937, 4
        %v2949 = vsel %vm334, %v2946, %v2948
        %v2950 = vrot.slane %v2938, 4
        %v2951 = vsel %vm334, %v2948, %v2950
        %v2952 = vrot.slane %v2939, 4
        %v2953 = vsel %vm334, %v2950, %v2952
        %v2958 = vadd.f32 %v2931, %v2947
        %v2959 = vadd.f32 %v2932, %v2949
        %v2960 = vadd.f32 %v2933, %v2951
        %v2961 = vadd.f32 %v2934, %v2953
        %v2962 = vmul.f32 %v2921, 0.75
        %v2963 = vmul.f32 %v2922, 0.75
        %v2964 = vmul.f32 %v2923, 0.75
        %v2965 = vmul.f32 %v2924, 0.75
        %v2966 = vadd.f32 %v2958, %v2962
        %v2967 = vadd.f32 %v2959, %v2963
        %v2968 = vadd.f32 %v2960, %v2964
        %v2969 = vadd.f32 %v2961, %v2965
        %v2970 = vmul.f32 %v2930, 0.5
        %v2972 = vrot.slane %v2970, 4
        %v2973 = vsel %vm334, %v2952, %v2972
        %v2975 = vadd.f32 %v2966, %v2949
        %v2976 = vadd.f32 %v2967, %v2951
        %v2977 = vadd.f32 %v2968, %v2953
        %v2978 = vadd.f32 %v2969, %v2973
        %v2979 = vmul.f32 %v2924, 0.125
        %v2980 = vmul.f32 %v2930, 0.125
        %v2981 = vadd.f32 %v2975, %v2933
        %v2982 = vadd.f32 %v2976, %v2934
        %v2983 = vadd.f32 %v2977, %v2979
        %v2984 = vadd.f32 %v2978, %v2980
        %2989 = vrot.lane.b32.xlu0 %v2981, 120
        %v2990 = vpop.permute.xlu0 %2989
        %2991 = vrot.lane.b32.xlu0 %v2982, 120
        %v2992 = vpop.permute.xlu0 %2991
        %2993 = vrot.lane.b32.xlu0 %v2983, 120
        %v2994 = vpop.permute.xlu0 %2993
        %2995 = vrot.lane.b32.xlu0 %v2984, 120
        %v2996 = vpop.permute.xlu0 %2995
        %3001 = vrot.lane.b32.xlu0 %v2981, 8
        %v3002 = vpop.permute.xlu0 %3001
        %3003 = vrot.lane.b32.xlu0 %v2982, 8
        %v3004 = vpop.permute.xlu0 %3003
        %3005 = vrot.lane.b32.xlu0 %v2983, 8
        %v3006 = vpop.permute.xlu0 %3005
        %3007 = vrot.lane.b32.xlu0 %v2984, 8
        %v3008 = vpop.permute.xlu0 %3007
        %3013 = vrot.lane.b32.xlu0 %v2981, 16
        %v3014 = vpop.permute.xlu0 %3013
        %3015 = vrot.lane.b32.xlu0 %v2982, 16
        %v3016 = vpop.permute.xlu0 %3015
        %3017 = vrot.lane.b32.xlu0 %v2983, 16
        %v3018 = vpop.permute.xlu0 %3017
        %3019 = vrot.lane.b32.xlu0 %v2984, 16
        %v3020 = vpop.permute.xlu0 %3019
        %3025 = vrot.lane.b32.xlu0 %v2981, 24
        %v3026 = vpop.permute.xlu0 %3025
        %3027 = vrot.lane.b32.xlu0 %v2982, 24
        %v3028 = vpop.permute.xlu0 %3027
        %3029 = vrot.lane.b32.xlu0 %v2983, 24
        %v3030 = vpop.permute.xlu0 %3029
        %3031 = vrot.lane.b32.xlu0 %v2984, 24
        %v3032 = vpop.permute.xlu0 %3031
        %v3037 = vsel %vm1551, %v2990, %v2981
        %v3038 = vsel %vm1551, %v2992, %v2982
        %v3039 = vsel %vm1551, %v2994, %v2983
        %v3040 = vsel %vm1551, %v2996, %v2984
        %v3041 = vsel %vm2585, %v3037, %v3002
        %v3042 = vsel %vm2585, %v3038, %v3004
        %v3043 = vsel %vm2585, %v3039, %v3006
        %v3044 = vsel %vm2585, %v3040, %v3008
        %v3045 = vsel %vm2590, %v3041, %v3014
        %v3046 = vsel %vm2590, %v3042, %v3016
        %v3047 = vsel %vm2590, %v3043, %v3018
        %v3048 = vsel %vm2590, %v3044, %v3020
        %v3049 = vsel %vm2595, %v3045, %v3026
        %v3050 = vsel %vm2595, %v3046, %v3028
        %v3051 = vsel %vm2595, %v3047, %v3030
        %v3052 = vsel %vm2595, %v3048, %v3032
        %v3053 = vmul.f32 %v3049, 0.125
        %v3054 = vmul.f32 %v3050, 0.125
        %v3055 = vmul.f32 %v3051, 0.125
        %v3056 = vmul.f32 %v3052, 0.125
        %v3057 = vmul.f32 %v3049, 0.5
        %v3058 = vmul.f32 %v3050, 0.5
        %v3059 = vmul.f32 %v3051, 0.5
        %v3060 = vmul.f32 %v3052, 0.5
        %3065 = vrot.lane.b32.xlu0 %v3057, 124
        %v3066 = vpop.permute.xlu0 %3065
        %3067 = vrot.lane.b32.xlu0 %v3058, 124
        %v3068 = vpop.permute.xlu0 %3067
        %3069 = vrot.lane.b32.xlu0 %v3059, 124
        %v3070 = vpop.permute.xlu0 %3069
        %3071 = vrot.lane.b32.xlu0 %v3060, 124
        %v3072 = vpop.permute.xlu0 %3071
        %v3077 = vadd.f32 %v3053, %v3066
        %v3078 = vadd.f32 %v3054, %v3068
        %v3079 = vadd.f32 %v3055, %v3070
        %v3080 = vadd.f32 %v3056, %v3072
        %v3081 = vmul.f32 %v3049, 0.75
        %v3082 = vmul.f32 %v3050, 0.75
        %v3083 = vmul.f32 %v3051, 0.75
        %v3084 = vmul.f32 %v3052, 0.75
        %3089 = vrot.lane.b32.xlu0 %v3081, 120
        %v3090 = vpop.permute.xlu0 %3089
        %3091 = vrot.lane.b32.xlu0 %v3082, 120
        %v3092 = vpop.permute.xlu0 %3091
        %3093 = vrot.lane.b32.xlu0 %v3083, 120
        %v3094 = vpop.permute.xlu0 %3093
        %3095 = vrot.lane.b32.xlu0 %v3084, 120
        %v3096 = vpop.permute.xlu0 %3095
        %v3101 = vadd.f32 %v3077, %v3090
        %v3102 = vadd.f32 %v3078, %v3092
        %v3103 = vadd.f32 %v3079, %v3094
        %v3104 = vadd.f32 %v3080, %v3096
        %3105 = vrot.lane.b32.xlu0 %v3057, 116
        %v3106 = vpop.permute.xlu0 %3105
        %3107 = vrot.lane.b32.xlu0 %v3058, 116
        %v3108 = vpop.permute.xlu0 %3107
        %3109 = vrot.lane.b32.xlu0 %v3059, 116
        %v3110 = vpop.permute.xlu0 %3109
        %3111 = vrot.lane.b32.xlu0 %v3060, 116
        %v3112 = vpop.permute.xlu0 %3111
        %v3117 = vadd.f32 %v3101, %v3106
        %v3118 = vadd.f32 %v3102, %v3108
        %v3119 = vadd.f32 %v3103, %v3110
        %v3120 = vadd.f32 %v3104, %v3112
        %3125 = vrot.lane.b32.xlu0 %v3053, 112
        %v3126 = vpop.permute.xlu0 %3125
        %3127 = vrot.lane.b32.xlu0 %v3054, 112
        %v3128 = vpop.permute.xlu0 %3127
        %3129 = vrot.lane.b32.xlu0 %v3055, 112
        %v3130 = vpop.permute.xlu0 %3129
        %3131 = vrot.lane.b32.xlu0 %v3056, 112
        %v3132 = vpop.permute.xlu0 %3131
        %v3137 = vadd.f32 %v3117, %v3126
        %v3138 = vadd.f32 %v3118, %v3128
        %v3139 = vadd.f32 %v3119, %v3130
        %v3140 = vadd.f32 %v3120, %v3132
        %v3141 = vsel %vm334, %v2926, %v2925
        %v3142 = vsel %vm334, %v2928, %v2927
        %v3143 = vmul.f32 %v3141, 0.125
        %v3144 = vmul.f32 %v2925, 0.125
        %v3145 = vmul.f32 %v2926, 0.125
        %v3146 = vmul.f32 %v2927, 0.125
        %v3147 = vmul.f32 %v3141, 0.5
        %v3148 = vmul.f32 %v2925, 0.5
        %v3149 = vmul.f32 %v2926, 0.5
        %v3150 = vmul.f32 %v2927, 0.5
        %v3151 = vmul.f32 %v2928, 0.5
        %v3157 = vrot.slane %v3147, 4
        %v3158 = vrot.slane %v3148, 4
        %v3159 = vsel %vm334, %v3157, %v3158
        %v3160 = vrot.slane %v3149, 4
        %v3161 = vsel %vm334, %v3158, %v3160
        %v3162 = vrot.slane %v3150, 4
        %v3163 = vsel %vm334, %v3160, %v3162
        %v3164 = vrot.slane %v3151, 4
        %v3165 = vsel %vm334, %v3162, %v3164
        %v3170 = vadd.f32 %v3143, %v3159
        %v3171 = vadd.f32 %v3144, %v3161
        %v3172 = vadd.f32 %v3145, %v3163
        %v3173 = vadd.f32 %v3146, %v3165
        %v3174 = vmul.f32 %v2925, 0.75
        %v3175 = vmul.f32 %v2926, 0.75
        %v3176 = vmul.f32 %v2927, 0.75
        %v3177 = vmul.f32 %v2928, 0.75
        %v3178 = vadd.f32 %v3170, %v3174
        %v3179 = vadd.f32 %v3171, %v3175
        %v3180 = vadd.f32 %v3172, %v3176
        %v3181 = vadd.f32 %v3173, %v3177
        %v3182 = vmul.f32 %v3142, 0.5
        %v3184 = vrot.slane %v3182, 4
        %v3185 = vsel %vm334, %v3164, %v3184
        %v3187 = vadd.f32 %v3178, %v3161
        %v3188 = vadd.f32 %v3179, %v3163
        %v3189 = vadd.f32 %v3180, %v3165
        %v3190 = vadd.f32 %v3181, %v3185
        %v3191 = vmul.f32 %v2928, 0.125
        %v3192 = vmul.f32 %v3142, 0.125
        %v3193 = vadd.f32 %v3187, %v3145
        %v3194 = vadd.f32 %v3188, %v3146
        %v3195 = vadd.f32 %v3189, %v3191
        %v3196 = vadd.f32 %v3190, %v3192
        %3201 = vrot.lane.b32.xlu0 %v3193, 120
        %v3202 = vpop.permute.xlu0 %3201
        %3203 = vrot.lane.b32.xlu0 %v3194, 120
        %v3204 = vpop.permute.xlu0 %3203
        %3205 = vrot.lane.b32.xlu0 %v3195, 120
        %v3206 = vpop.permute.xlu0 %3205
        %3207 = vrot.lane.b32.xlu0 %v3196, 120
        %v3208 = vpop.permute.xlu0 %3207
        %3213 = vrot.lane.b32.xlu0 %v3193, 8
        %v3214 = vpop.permute.xlu0 %3213
        %3215 = vrot.lane.b32.xlu0 %v3194, 8
        %v3216 = vpop.permute.xlu0 %3215
        %3217 = vrot.lane.b32.xlu0 %v3195, 8
        %v3218 = vpop.permute.xlu0 %3217
        %3219 = vrot.lane.b32.xlu0 %v3196, 8
        %v3220 = vpop.permute.xlu0 %3219
        %3225 = vrot.lane.b32.xlu0 %v3193, 16
        %v3226 = vpop.permute.xlu0 %3225
        %3227 = vrot.lane.b32.xlu0 %v3194, 16
        %v3228 = vpop.permute.xlu0 %3227
        %3229 = vrot.lane.b32.xlu0 %v3195, 16
        %v3230 = vpop.permute.xlu0 %3229
        %3231 = vrot.lane.b32.xlu0 %v3196, 16
        %v3232 = vpop.permute.xlu0 %3231
        %3237 = vrot.lane.b32.xlu0 %v3193, 24
        %v3238 = vpop.permute.xlu0 %3237
        %3239 = vrot.lane.b32.xlu0 %v3194, 24
        %v3240 = vpop.permute.xlu0 %3239
        %3241 = vrot.lane.b32.xlu0 %v3195, 24
        %v3242 = vpop.permute.xlu0 %3241
        %3243 = vrot.lane.b32.xlu0 %v3196, 24
        %v3244 = vpop.permute.xlu0 %3243
        %v3249 = vsel %vm1551, %v3202, %v3193
        %v3250 = vsel %vm1551, %v3204, %v3194
        %v3251 = vsel %vm1551, %v3206, %v3195
        %v3252 = vsel %vm1551, %v3208, %v3196
        %v3253 = vsel %vm2585, %v3249, %v3214
        %v3254 = vsel %vm2585, %v3250, %v3216
        %v3255 = vsel %vm2585, %v3251, %v3218
        %v3256 = vsel %vm2585, %v3252, %v3220
        %v3257 = vsel %vm2590, %v3253, %v3226
        %v3258 = vsel %vm2590, %v3254, %v3228
        %v3259 = vsel %vm2590, %v3255, %v3230
        %v3260 = vsel %vm2590, %v3256, %v3232
        %v3261 = vsel %vm2595, %v3257, %v3238
        %v3262 = vsel %vm2595, %v3258, %v3240
        %v3263 = vsel %vm2595, %v3259, %v3242
        %v3264 = vsel %vm2595, %v3260, %v3244
        %v3265 = vmul.f32 %v3261, 0.125
        %v3266 = vmul.f32 %v3262, 0.125
        %v3267 = vmul.f32 %v3263, 0.125
        %v3268 = vmul.f32 %v3264, 0.125
        %v3269 = vmul.f32 %v3261, 0.5
        %v3270 = vmul.f32 %v3262, 0.5
        %v3271 = vmul.f32 %v3263, 0.5
        %v3272 = vmul.f32 %v3264, 0.5
        %3277 = vrot.lane.b32.xlu0 %v3269, 124
        %v3278 = vpop.permute.xlu0 %3277
        %3279 = vrot.lane.b32.xlu0 %v3270, 124
        %v3280 = vpop.permute.xlu0 %3279
        %3281 = vrot.lane.b32.xlu0 %v3271, 124
        %v3282 = vpop.permute.xlu0 %3281
        %3283 = vrot.lane.b32.xlu0 %v3272, 124
        %v3284 = vpop.permute.xlu0 %3283
        %v3289 = vadd.f32 %v3265, %v3278
        %v3290 = vadd.f32 %v3266, %v3280
        %v3291 = vadd.f32 %v3267, %v3282
        %v3292 = vadd.f32 %v3268, %v3284
        %v3293 = vmul.f32 %v3261, 0.75
        %v3294 = vmul.f32 %v3262, 0.75
        %v3295 = vmul.f32 %v3263, 0.75
        %v3296 = vmul.f32 %v3264, 0.75
        %3301 = vrot.lane.b32.xlu0 %v3293, 120
        %v3302 = vpop.permute.xlu0 %3301
        %3303 = vrot.lane.b32.xlu0 %v3294, 120
        %v3304 = vpop.permute.xlu0 %3303
        %3305 = vrot.lane.b32.xlu0 %v3295, 120
        %v3306 = vpop.permute.xlu0 %3305
        %3307 = vrot.lane.b32.xlu0 %v3296, 120
        %v3308 = vpop.permute.xlu0 %3307
        %v3313 = vadd.f32 %v3289, %v3302
        %v3314 = vadd.f32 %v3290, %v3304
        %v3315 = vadd.f32 %v3291, %v3306
        %v3316 = vadd.f32 %v3292, %v3308
        %3317 = vrot.lane.b32.xlu0 %v3269, 116
        %v3318 = vpop.permute.xlu0 %3317
        %3319 = vrot.lane.b32.xlu0 %v3270, 116
        %v3320 = vpop.permute.xlu0 %3319
        %3321 = vrot.lane.b32.xlu0 %v3271, 116
        %v3322 = vpop.permute.xlu0 %3321
        %3323 = vrot.lane.b32.xlu0 %v3272, 116
        %v3324 = vpop.permute.xlu0 %3323
        %v3329 = vadd.f32 %v3313, %v3318
        %v3330 = vadd.f32 %v3314, %v3320
        %v3331 = vadd.f32 %v3315, %v3322
        %v3332 = vadd.f32 %v3316, %v3324
        %3337 = vrot.lane.b32.xlu0 %v3265, 112
        %v3338 = vpop.permute.xlu0 %3337
        %3339 = vrot.lane.b32.xlu0 %v3266, 112
        %v3340 = vpop.permute.xlu0 %3339
        %3341 = vrot.lane.b32.xlu0 %v3267, 112
        %v3342 = vpop.permute.xlu0 %3341
        %3343 = vrot.lane.b32.xlu0 %v3268, 112
        %v3344 = vpop.permute.xlu0 %3343
        %v3349 = vadd.f32 %v3329, %v3338
        %v3350 = vadd.f32 %v3330, %v3340
        %v3351 = vadd.f32 %v3331, %v3342
        %v3352 = vadd.f32 %v3332, %v3344
        %v3353 = vsub.f32 %v1925, %v3137
        %v3354 = vsub.f32 %v1926, %v3138
        %v3355 = vsub.f32 %v1927, %v3139
        %v3356 = vsub.f32 %v1928, %v3140
        %v3357 = vsub.f32 %v1929, %v3349
        %v3358 = vsub.f32 %v1930, %v3350
        %v3359 = vsub.f32 %v1931, %v3351
        %v3360 = vsub.f32 %v1932, %v3352
        %v3361 = vsub.f32 %v3353, %v3357
        %v3362 = vsub.f32 %v3354, %v3358
        %v3363 = vsub.f32 %v3355, %v3359
        %v3364 = vsub.f32 %v3356, %v3360
        %v3365 = vand.u32 2147483647, %v3361
        %v3366 = vand.u32 2147483647, %v3362
        %v3367 = vand.u32 2147483647, %v3363
        %v3368 = vand.u32 2147483647, %v3364
        %v3369 = vmul.f32 %v1921, 0.015625
        %v3370 = vmul.f32 %v1922, 0.015625
        %v3371 = vmul.f32 %v1923, 0.015625
        %v3372 = vmul.f32 %v1924, 0.015625
        %v3373 = vmul.f32 %v3369, %v3365
        %v3374 = vmul.f32 %v3370, %v3366
        %v3375 = vmul.f32 %v3371, %v3367
        %v3376 = vmul.f32 %v3372, %v3368
        %v3377 = vadd.f32 %v2469, %v3373
        %v3378 = vadd.f32 %v2470, %v3374
        %v3379 = vadd.f32 %v2471, %v3375
        %v3380 = vadd.f32 %v2472, %v3376
        %vm3381 = vcmask 261120
        %v3382 = vsel %vm3381, %v3377, 0.0
        %v3383 = vsel %vm3381, %v3378, 0.0
        %v3384 = vadd.f32 %v3382, %v3383
        %v3385 = vsel %vm3381, %v3379, 0.0
        %v3386 = vadd.f32 %v3384, %v3385
        %v3387 = vsel %vm3381, %v3380, 0.0
        %v3388 = vadd.f32 %v3386, %v3387
        %3389 = vadd.xlane.f32.xlu0 %v3388
        %v3390 = vpop.xlane.xlu0 %3389
        %v3391 = vrot.slane %v3390, 4
        %v3392 = vadd.f32 %v3390, %v3391
        %v3393 = vrot.slane %v3392, 2
        %v3394 = vadd.f32 %v3392, %v3393
        %v3395 = vrot.slane %v3394, 1
        %v3396 = vadd.f32 %v3394, %v3395
        %s3397 = vtos %v3396
        %v3398 = vstv %s3397
        %3399 = vst [vmem:[%s205] sm:$0xff] %v3398
        %p3400 = scmp.lt.s32.totalorder %s19, 1
        %s3401 = scalar_select %p3400, %s19, 1
        %s3402 = smul.addr %s3401, 8
        %s3403 = scalar_lea.vmem %s2, %s3402
        // Predicated region
        $region37: #{lap_loss.1} parent=27 // pred_check
          %p3404 = pneg %p89
        $region38: #{lap_loss.1} parent=27 // pred_check_branch
          %3406 = sbr.rel (%p3404) target = $region40
        $region39: #{lap_loss.1} parent=27 // pred_region
          _
        $region40: #{lap_loss.1} parent=27 // pred_fallthru
          _
      $region28: #{lap_loss.1} parent=5 // pred_fallthru
        _
      %p3407 = scmp.le.s32.totalorder 2, %s14
      // Predicated region
      $region41: #{lap_loss.1} parent=5 // pred_check
        %p3408 = pneg %p3407
      $region42: #{lap_loss.1} parent=5 // pred_check_branch
        %3410 = sbr.rel (%p3408) target = $region44
      $region43: #{lap_loss.1} parent=5 // pred_region
        %s3411 = ssub.s32 %s14, 2
        // Predicated region
        $region45: #{lap_loss.1} parent=43 // pred_check
          %p3412 = pneg %p95
        $region46: #{lap_loss.1} parent=43 // pred_check_branch
          %3414 = sbr.rel (%p3412) target = $region48
        $region47: #{lap_loss.1} parent=43 // pred_region
          %p3415 = scmp.lt.s32.totalorder %s20, 1
          %s3416 = scalar_select %p3415, %s20, 1
          %s3417 = smul.addr %s3416, 8
          %s3418 = scalar_lea.vmem %s2, %s3417
        $region48: #{lap_loss.1} parent=43 // pred_fallthru
          _
      $region44: #{lap_loss.1} parent=5 // pred_fallthru
        _
    $region6: #{lap_loss.1} parent=1 // loop_footer
      %s18 = sadd.s32 1, %s14
    $region7: #{lap_loss.1} parent=1 // loop_footer_branch
      %13 = sbr.rel target = $region3
    $region8: #{lap_loss.1} parent=1 // loop_exit
      _
    %3419 = vsyncpa [#allocation3], 1
    %s3420 = scalar_lea.sflag [#allocation3], 1
    %3421 = vsyncpa %s3420, 1
    %3422 = vsyncpa [#allocation5], 1
    %s3423 = scalar_lea.sflag [#allocation5], 1
    %3424 = vsyncpa %s3423, 1

</llo_original>
